<compile_context>
chip_gen: v7x
topology: tpu7x:2x2x1
jax: 0.10.0
libtpu: 0.0.40
codegen_flags: <defaults>
</compile_context>

<pallas_src>
import functools

import jax
import jax.numpy as jnp
import numpy as np
from jax.experimental import pallas as pl
from jax.experimental.pallas import tpu as pltpu


# ----------------------------------------------------------------------------
# Pallas kernel: multi-layer LSTM recurrence (wavefront) + final Linear.
# ----------------------------------------------------------------------------
def lstm_kernel(x_ref, w_ih0_ref, w_hh0_ref, w_cat_ref, b_ref,
                w_fc_ref, b_fc_ref, out_ref, gx_ref, *, num_layers):
    # x_ref     : (T, Bp, I)          bf16 time-major input
    # w_ih0_ref : (I, 4H)             bf16 layer-0 input->gates (transposed)
    # w_hh0_ref : (H, 4H)             bf16 layer-0 hidden->gates
    # w_cat_ref : (max(L-1,1),2H,4H)  bf16 [W_ih_l ; W_hh_l] for layers >= 1
    # b_ref     : (L, 1, 4H)          f32  b_ih + b_hh, gate order [i,f,o,g]
    # w_fc_ref  : (H, Op)             f32  final linear weight (lane-padded)
    # b_fc_ref  : (1, Op)             f32  final linear bias  (lane-padded)
    # out_ref   : (Bp, Op)            f32
    # gx_ref    : (T, Bp, 4H)         f32  scratch: hoisted layer-0 projection
    T, Bp, _ = gx_ref.shape
    H = w_hh0_ref.shape[0]
    L = num_layers

    # ---- hoisted layer-0 input projection, stored one timestep chunk at a
    # time (keeps only ~4 vregs of projection live; no big spill region). ----
    b0 = jnp.broadcast_to(b_ref[0], (Bp, 4 * H))            # hoisted broadcast
    for t in range(T):
        gx_ref[t] = jnp.dot(x_ref[t], w_ih0_ref[...],
                            preferred_element_type=jnp.float32) + b0

    # Hoisted per-layer bias broadcasts for layers >= 1 (JAX doesn't CSE
    # broadcast_in_dim, so do it once per layer, not per timestep).
    b_bcast = [jnp.broadcast_to(b_ref[l], (Bp, 4 * H)) for l in range(1, L)]

    def cell(gates, c):
        # sigmoid(x) = 0.5*tanh(0.5*x) + 0.5  -> single EUP push per vreg,
        # covering the contiguous [i|f|o] (Bp, 3H) slab; one more for g.
        ifo = 0.5 * jnp.tanh(0.5 * gates[:, :3 * H]) + 0.5
        g = jnp.tanh(gates[:, 3 * H:])
        c_new = ifo[:, H:2 * H] * c + ifo[:, :H] * g
        h_new = ifo[:, 2 * H:] * jnp.tanh(c_new)
        return h_new, c_new

    zeros = jnp.zeros((Bp, H), jnp.float32)
    h = [zeros] * L                       # f32 activations (v5e: no bf16 VPU)
    c = [zeros] * L

    # ---- wavefront over (time, layer): super-step s runs layer l at t = s-l.
    # Every layer's update in a super-step depends only on the PREVIOUS
    # super-step's h values, so the updates are independent and the LLO
    # scheduler can overlap one layer's MXU matmul with another's EUP chain.
    for s in range(T + L - 1):
        h_prev = list(h)                  # snapshot of previous super-step
        for l in range(L):
            t = s - l
            if t < 0 or t >= T:
                continue
            if l == 0:
                gates = gx_ref[t] + jnp.dot(
                    h_prev[0].astype(jnp.bfloat16), w_hh0_ref[...],
                    preferred_element_type=jnp.float32)
            else:
                # Fused projection: [h_{l-1}(t) ; h_l(t-1)] @ [W_ih ; W_hh].
                lhs = jnp.concatenate(
                    [h_prev[l - 1], h_prev[l]], axis=1).astype(jnp.bfloat16)
                gates = b_bcast[l - 1] + jnp.dot(
                    lhs, w_cat_ref[l - 1],
                    preferred_element_type=jnp.float32)
            h[l], c[l] = cell(gates, c[l])

    # fc(last-layer output at the last time step) == fc(final h of layer L-1).
    # Kept in f32 (single tiny matmul, off the recurrence, best numerics).
    out_ref[...] = (jnp.dot(h[L - 1], w_fc_ref[...],
                            preferred_element_type=jnp.float32)
                    + b_fc_ref[...])


# ----------------------------------------------------------------------------
# Wrapper
# ----------------------------------------------------------------------------
def lstm_pallas(x, kernel_params, hidden_size, num_layers, output_size):
    w_ih0, w_hh0, w_cat, b_stack, w_fc_pad, b_fc_pad = kernel_params
    B, T, I = x.shape
    H = hidden_size
    assert H % 128 == 0, "hidden_size must be a multiple of 128 (lane tile)"
    Op = w_fc_pad.shape[1]

    # Pad batch to the f32 sublane minimum (8) so every vreg op is full-width.
    Bp = max(8, ((B + 7) // 8) * 8)
    x_p = jnp.pad(x.astype(jnp.float32), ((0, Bp - B), (0, 0), (0, 0)))
    x_tm = jnp.transpose(x_p, (1, 0, 2)).astype(jnp.bfloat16)   # (T, Bp, I)

    vmem = pl.BlockSpec(memory_space=pltpu.MemorySpace.VMEM)
    out = pl.pallas_call(
        functools.partial(lstm_kernel, num_layers=num_layers),
        out_shape=jax.ShapeDtypeStruct((Bp, Op), jnp.float32),
        in_specs=[vmem] * 7,
        out_specs=vmem,
        scratch_shapes=[
            pltpu.VMEM((T, Bp, 4 * H), jnp.float32),    # hoisted x-projection
        ],
    )(x_tm, w_ih0, w_hh0, w_cat, b_stack, w_fc_pad, b_fc_pad)
    return out[:B, :output_size]


# ----------------------------------------------------------------------------
# Parameter init (mimics PyTorch uniform(-1/sqrt(H), 1/sqrt(H)))
# ----------------------------------------------------------------------------
def _permute_gates_ifgo_to_ifog(w, H):
    # PyTorch gate order along the 4H axis is [i, f, g, o]; kernel uses
    # [i, f, o, g] so one activation covers a contiguous 3H slice.
    return jnp.concatenate([w[0:2 * H], w[3 * H:4 * H], w[2 * H:3 * H]], axis=0)


def init_params(key, input_size, hidden_size, num_layers, output_size):
    H = hidden_size
    bound = 1.0 / float(np.sqrt(H))
    keys = jax.random.split(key, 4 * num_layers + 2)
    k = 0
    raw_layers = []
    w_ih0 = w_hh0 = None
    w_cat_list, b_list = [], []
    for l in range(num_layers):
        in_l = input_size if l == 0 else H
        w_ih = jax.random.uniform(keys[k], (4 * H, in_l), jnp.float32,
                                  -bound, bound); k += 1
        w_hh = jax.random.uniform(keys[k], (4 * H, H), jnp.float32,
                                  -bound, bound); k += 1
        b_ih = jax.random.uniform(keys[k], (4 * H,), jnp.float32,
                                  -bound, bound); k += 1
        b_hh = jax.random.uniform(keys[k], (4 * H,), jnp.float32,
                                  -bound, bound); k += 1
        raw_layers.append((w_ih, w_hh, b_ih, b_hh))

        w_ih_p = _permute_gates_ifgo_to_ifog(w_ih, H).T      # (in_l, 4H)
        w_hh_p = _permute_gates_ifgo_to_ifog(w_hh, H).T      # (H, 4H)
        b_p = _permute_gates_ifgo_to_ifog(b_ih + b_hh, H)    # (4H,)
        if l == 0:
            w_ih0 = w_ih_p.astype(jnp.bfloat16)
            w_hh0 = w_hh_p.astype(jnp.bfloat16)
        else:
            # Fused [W_ih ; W_hh] for the (Bp, 2H)@(2H, 4H) per-step matmul.
            w_cat_list.append(
                jnp.concatenate([w_ih_p, w_hh_p], axis=0).astype(jnp.bfloat16))
        b_list.append(b_p[None, :])
    if not w_cat_list:          # keep the stacked input well-formed when L==1
        w_cat_list.append(jnp.zeros((2 * H, 4 * H), jnp.bfloat16))

    w_fc = jax.random.uniform(keys[k], (output_size, H), jnp.float32,
                              -bound, bound); k += 1
    b_fc = jax.random.uniform(keys[k], (output_size,), jnp.float32,
                              -bound, bound)

    # Pad fc output to a full 128-lane width -> unmasked final store.
    Op = max(128, ((output_size + 127) // 128) * 128)
    w_fc_pad = jnp.zeros((H, Op), jnp.float32).at[:, :output_size].set(w_fc.T)
    b_fc_pad = jnp.zeros((1, Op), jnp.float32).at[0, :output_size].set(b_fc)

    kernel_params = (w_ih0, w_hh0, jnp.stack(w_cat_list), jnp.stack(b_list),
                     w_fc_pad, b_fc_pad)
    raw_params = {"layers": raw_layers, "w_fc": w_fc, "b_fc": b_fc}
    return kernel_params, raw_params


# ----------------------------------------------------------------------------
# Pure-JAX reference (mirrors torch.nn.LSTM + Linear forward exactly, f32)
# ----------------------------------------------------------------------------
def lstm_ref(x, raw_params, hidden_size, num_layers):
    B, T, _ = x.shape
    H = hidden_size
    inp = x.astype(jnp.float32)
    for l in range(num_layers):
        w_ih, w_hh, b_ih, b_hh = raw_params["layers"][l]
        h = jnp.zeros((B, H), jnp.float32)
        c = jnp.zeros((B, H), jnp.float32)
        outs = []
        for t in range(T):
            gates = inp[:, t, :] @ w_ih.T + b_ih + h @ w_hh.T + b_hh
            i_g = jax.nn.sigmoid(gates[:, 0 * H:1 * H])
            f_g = jax.nn.sigmoid(gates[:, 1 * H:2 * H])
            g_g = jnp.tanh(gates[:, 2 * H:3 * H])
            o_g = jax.nn.sigmoid(gates[:, 3 * H:4 * H])
            c = f_g * c + i_g * g_g
            h = o_g * jnp.tanh(c)
            outs.append(h)
        inp = jnp.stack(outs, axis=1)
    return inp[:, -1, :] @ raw_params["w_fc"].T + raw_params["b_fc"]


# ----------------------------------------------------------------------------
if __name__ == "__main__":
    # Model hyper-parameters (small, but lane-aligned hidden size).
    batch = 2
    seq_len = 8
    input_size = 16
    hidden_size = 128
    num_layers = 2
    output_size = 8

    key = jax.random.PRNGKey(0)
    k_x, k_p = jax.random.split(key)
    x = jax.random.normal(k_x, (batch, seq_len, input_size), jnp.float32)

    kernel_params, raw_params = init_params(
        k_p, input_size, hidden_size, num_layers, output_size)

    out = lstm_pallas(x, kernel_params, hidden_size, num_layers, output_size)
    out = jax.block_until_ready(out)

    ref = lstm_ref(x, raw_params, hidden_size, num_layers)
    assert out.shape == (batch, output_size)
    # bf16 MXU operands in the recurrence -> tolerance relaxed vs f32 ref.
    np.testing.assert_allclose(np.asarray(out), np.asarray(ref),
                               rtol=3e-2, atol=3e-2)
    print("KERNEL_OK")
</pallas_src>

<mosaic_0001>
module attributes {stable_mosaic.version = 11 : i64} {
  func.func @lstm_kernel(%arg0: memref<8x8x16xbf16, #tpu.memory_space<vmem>>, %arg1: memref<16x512xbf16, #tpu.memory_space<vmem>>, %arg2: memref<128x512xbf16, #tpu.memory_space<vmem>>, %arg3: memref<1x256x512xbf16, #tpu.memory_space<vmem>>, %arg4: memref<2x1x512xf32, #tpu.memory_space<vmem>>, %arg5: memref<128x128xf32, #tpu.memory_space<vmem>>, %arg6: memref<1x128xf32, #tpu.memory_space<vmem>>, %arg7: memref<8x128xf32, #tpu.memory_space<vmem>>, %arg8: memref<8x8x512xf32, #tpu.memory_space<vmem>>) attributes {dimension_semantics = [], scalar_prefetch = 0 : i64, scratch_operands = 1 : i64, tpu.core_type = #tpu.core_type<tc>} {
    %c0 = arith.constant 0 : index
    %c0_0 = arith.constant 0 : index
    %c0_1 = arith.constant 0 : index
    %0 = vector.load %arg4[%c0, %c0_0, %c0_1] : memref<2x1x512xf32, #tpu.memory_space<vmem>>, vector<1x1x512xf32>
    %1 = vector.shape_cast %0 : vector<1x1x512xf32> to vector<1x512xf32>
    %2 = vector.shape_cast %1 : vector<1x512xf32> to vector<1x512xf32>
    %3 = vector.broadcast %2 : vector<1x512xf32> to vector<8x512xf32>
    %c0_2 = arith.constant 0 : index
    %c0_3 = arith.constant 0 : index
    %c0_4 = arith.constant 0 : index
    %4 = vector.load %arg0[%c0_2, %c0_3, %c0_4] : memref<8x8x16xbf16, #tpu.memory_space<vmem>>, vector<1x8x16xbf16>
    %5 = vector.shape_cast %4 : vector<1x8x16xbf16> to vector<8x16xbf16>
    %c0_5 = arith.constant 0 : index
    %c0_6 = arith.constant 0 : index
    %6 = vector.load %arg1[%c0_5, %c0_6] : memref<16x512xbf16, #tpu.memory_space<vmem>>, vector<16x512xbf16>
    %cst = arith.constant dense<0.000000e+00> : vector<8x512xf32>
    %7 = tpu.matmul %5, %6, %cst {dimension_numbers = #tpu.dot_dimension_numbers<[1], [0], [0], [1], [0, 0, 1, 1], [], []>} : vector<8x16xbf16>, vector<16x512xbf16>, vector<8x512xf32> -> vector<8x512xf32>
    %8 = arith.addf %7, %3 : vector<8x512xf32>
    %c0_7 = arith.constant 0 : index
    %c0_8 = arith.constant 0 : index
    %c0_9 = arith.constant 0 : index
    %9 = vector.load %arg8[%c0_7, %c0_8, %c0_9] : memref<8x8x512xf32, #tpu.memory_space<vmem>>, vector<1x8x512xf32>
    %10 = vector.shape_cast %9 : vector<1x8x512xf32> to vector<8x512xf32>
    %11 = vector.shape_cast %8 : vector<8x512xf32> to vector<1x8x512xf32>
    tpu.vector_store %arg8[%c0_7, %c0_8, %c0_9], %11 {strides = array<i32>} : memref<8x8x512xf32, #tpu.memory_space<vmem>>, vector<1x8x512xf32>,
    %c1 = arith.constant 1 : index
    %c0_10 = arith.constant 0 : index
    %c0_11 = arith.constant 0 : index
    %12 = vector.load %arg0[%c1, %c0_10, %c0_11] : memref<8x8x16xbf16, #tpu.memory_space<vmem>>, vector<1x8x16xbf16>
    %13 = vector.shape_cast %12 : vector<1x8x16xbf16> to vector<8x16xbf16>
    %c0_12 = arith.constant 0 : index
    %c0_13 = arith.constant 0 : index
    %14 = vector.load %arg1[%c0_12, %c0_13] : memref<16x512xbf16, #tpu.memory_space<vmem>>, vector<16x512xbf16>
    %cst_14 = arith.constant dense<0.000000e+00> : vector<8x512xf32>
    %15 = tpu.matmul %13, %14, %cst_14 {dimension_numbers = #tpu.dot_dimension_numbers<[1], [0], [0], [1], [0, 0, 1, 1], [], []>} : vector<8x16xbf16>, vector<16x512xbf16>, vector<8x512xf32> -> vector<8x512xf32>
    %16 = arith.addf %15, %3 : vector<8x512xf32>
    %c1_15 = arith.constant 1 : index
    %c0_16 = arith.constant 0 : index
    %c0_17 = arith.constant 0 : index
    %17 = vector.load %arg8[%c1_15, %c0_16, %c0_17] : memref<8x8x512xf32, #tpu.memory_space<vmem>>, vector<1x8x512xf32>
    %18 = vector.shape_cast %17 : vector<1x8x512xf32> to vector<8x512xf32>
    %19 = vector.shape_cast %16 : vector<8x512xf32> to vector<1x8x512xf32>
    tpu.vector_store %arg8[%c1_15, %c0_16, %c0_17], %19 {strides = array<i32>} : memref<8x8x512xf32, #tpu.memory_space<vmem>>, vector<1x8x512xf32>,
    %c2 = arith.constant 2 : index
    %c0_18 = arith.constant 0 : index
    %c0_19 = arith.constant 0 : index
    %20 = vector.load %arg0[%c2, %c0_18, %c0_19] : memref<8x8x16xbf16, #tpu.memory_space<vmem>>, vector<1x8x16xbf16>
    %21 = vector.shape_cast %20 : vector<1x8x16xbf16> to vector<8x16xbf16>
    %c0_20 = arith.constant 0 : index
    %c0_21 = arith.constant 0 : index
    %22 = vector.load %arg1[%c0_20, %c0_21] : memref<16x512xbf16, #tpu.memory_space<vmem>>, vector<16x512xbf16>
    %cst_22 = arith.constant dense<0.000000e+00> : vector<8x512xf32>
    %23 = tpu.matmul %21, %22, %cst_22 {dimension_numbers = #tpu.dot_dimension_numbers<[1], [0], [0], [1], [0, 0, 1, 1], [], []>} : vector<8x16xbf16>, vector<16x512xbf16>, vector<8x512xf32> -> vector<8x512xf32>
    %24 = arith.addf %23, %3 : vector<8x512xf32>
    %c2_23 = arith.constant 2 : index
    %c0_24 = arith.constant 0 : index
    %c0_25 = arith.constant 0 : index
    %25 = vector.load %arg8[%c2_23, %c0_24, %c0_25] : memref<8x8x512xf32, #tpu.memory_space<vmem>>, vector<1x8x512xf32>
    %26 = vector.shape_cast %25 : vector<1x8x512xf32> to vector<8x512xf32>
    %27 = vector.shape_cast %24 : vector<8x512xf32> to vector<1x8x512xf32>
    tpu.vector_store %arg8[%c2_23, %c0_24, %c0_25], %27 {strides = array<i32>} : memref<8x8x512xf32, #tpu.memory_space<vmem>>, vector<1x8x512xf32>,
    %c3 = arith.constant 3 : index
    %c0_26 = arith.constant 0 : index
    %c0_27 = arith.constant 0 : index
    %28 = vector.load %arg0[%c3, %c0_26, %c0_27] : memref<8x8x16xbf16, #tpu.memory_space<vmem>>, vector<1x8x16xbf16>
    %29 = vector.shape_cast %28 : vector<1x8x16xbf16> to vector<8x16xbf16>
    %c0_28 = arith.constant 0 : index
    %c0_29 = arith.constant 0 : index
    %30 = vector.load %arg1[%c0_28, %c0_29] : memref<16x512xbf16, #tpu.memory_space<vmem>>, vector<16x512xbf16>
    %cst_30 = arith.constant dense<0.000000e+00> : vector<8x512xf32>
    %31 = tpu.matmul %29, %30, %cst_30 {dimension_numbers = #tpu.dot_dimension_numbers<[1], [0], [0], [1], [0, 0, 1, 1], [], []>} : vector<8x16xbf16>, vector<16x512xbf16>, vector<8x512xf32> -> vector<8x512xf32>
    %32 = arith.addf %31, %3 : vector<8x512xf32>
    %c3_31 = arith.constant 3 : index
    %c0_32 = arith.constant 0 : index
    %c0_33 = arith.constant 0 : index
    %33 = vector.load %arg8[%c3_31, %c0_32, %c0_33] : memref<8x8x512xf32, #tpu.memory_space<vmem>>, vector<1x8x512xf32>
    %34 = vector.shape_cast %33 : vector<1x8x512xf32> to vector<8x512xf32>
    %35 = vector.shape_cast %32 : vector<8x512xf32> to vector<1x8x512xf32>
    tpu.vector_store %arg8[%c3_31, %c0_32, %c0_33], %35 {strides = array<i32>} : memref<8x8x512xf32, #tpu.memory_space<vmem>>, vector<1x8x512xf32>,
    %c4 = arith.constant 4 : index
    %c0_34 = arith.constant 0 : index
    %c0_35 = arith.constant 0 : index
    %36 = vector.load %arg0[%c4, %c0_34, %c0_35] : memref<8x8x16xbf16, #tpu.memory_space<vmem>>, vector<1x8x16xbf16>
    %37 = vector.shape_cast %36 : vector<1x8x16xbf16> to vector<8x16xbf16>
    %c0_36 = arith.constant 0 : index
    %c0_37 = arith.constant 0 : index
    %38 = vector.load %arg1[%c0_36, %c0_37] : memref<16x512xbf16, #tpu.memory_space<vmem>>, vector<16x512xbf16>
    %cst_38 = arith.constant dense<0.000000e+00> : vector<8x512xf32>
    %39 = tpu.matmul %37, %38, %cst_38 {dimension_numbers = #tpu.dot_dimension_numbers<[1], [0], [0], [1], [0, 0, 1, 1], [], []>} : vector<8x16xbf16>, vector<16x512xbf16>, vector<8x512xf32> -> vector<8x512xf32>
    %40 = arith.addf %39, %3 : vector<8x512xf32>
    %c4_39 = arith.constant 4 : index
    %c0_40 = arith.constant 0 : index
    %c0_41 = arith.constant 0 : index
    %41 = vector.load %arg8[%c4_39, %c0_40, %c0_41] : memref<8x8x512xf32, #tpu.memory_space<vmem>>, vector<1x8x512xf32>
    %42 = vector.shape_cast %41 : vector<1x8x512xf32> to vector<8x512xf32>
    %43 = vector.shape_cast %40 : vector<8x512xf32> to vector<1x8x512xf32>
    tpu.vector_store %arg8[%c4_39, %c0_40, %c0_41], %43 {strides = array<i32>} : memref<8x8x512xf32, #tpu.memory_space<vmem>>, vector<1x8x512xf32>,
    %c5 = arith.constant 5 : index
    %c0_42 = arith.constant 0 : index
    %c0_43 = arith.constant 0 : index
    %44 = vector.load %arg0[%c5, %c0_42, %c0_43] : memref<8x8x16xbf16, #tpu.memory_space<vmem>>, vector<1x8x16xbf16>
    %45 = vector.shape_cast %44 : vector<1x8x16xbf16> to vector<8x16xbf16>
    %c0_44 = arith.constant 0 : index
    %c0_45 = arith.constant 0 : index
    %46 = vector.load %arg1[%c0_44, %c0_45] : memref<16x512xbf16, #tpu.memory_space<vmem>>, vector<16x512xbf16>
    %cst_46 = arith.constant dense<0.000000e+00> : vector<8x512xf32>
    %47 = tpu.matmul %45, %46, %cst_46 {dimension_numbers = #tpu.dot_dimension_numbers<[1], [0], [0], [1], [0, 0, 1, 1], [], []>} : vector<8x16xbf16>, vector<16x512xbf16>, vector<8x512xf32> -> vector<8x512xf32>
    %48 = arith.addf %47, %3 : vector<8x512xf32>
    %c5_47 = arith.constant 5 : index
    %c0_48 = arith.constant 0 : index
    %c0_49 = arith.constant 0 : index
    %49 = vector.load %arg8[%c5_47, %c0_48, %c0_49] : memref<8x8x512xf32, #tpu.memory_space<vmem>>, vector<1x8x512xf32>
    %50 = vector.shape_cast %49 : vector<1x8x512xf32> to vector<8x512xf32>
    %51 = vector.shape_cast %48 : vector<8x512xf32> to vector<1x8x512xf32>
    tpu.vector_store %arg8[%c5_47, %c0_48, %c0_49], %51 {strides = array<i32>} : memref<8x8x512xf32, #tpu.memory_space<vmem>>, vector<1x8x512xf32>,
    %c6 = arith.constant 6 : index
    %c0_50 = arith.constant 0 : index
    %c0_51 = arith.constant 0 : index
    %52 = vector.load %arg0[%c6, %c0_50, %c0_51] : memref<8x8x16xbf16, #tpu.memory_space<vmem>>, vector<1x8x16xbf16>
    %53 = vector.shape_cast %52 : vector<1x8x16xbf16> to vector<8x16xbf16>
    %c0_52 = arith.constant 0 : index
    %c0_53 = arith.constant 0 : index
    %54 = vector.load %arg1[%c0_52, %c0_53] : memref<16x512xbf16, #tpu.memory_space<vmem>>, vector<16x512xbf16>
    %cst_54 = arith.constant dense<0.000000e+00> : vector<8x512xf32>
    %55 = tpu.matmul %53, %54, %cst_54 {dimension_numbers = #tpu.dot_dimension_numbers<[1], [0], [0], [1], [0, 0, 1, 1], [], []>} : vector<8x16xbf16>, vector<16x512xbf16>, vector<8x512xf32> -> vector<8x512xf32>
    %56 = arith.addf %55, %3 : vector<8x512xf32>
    %c6_55 = arith.constant 6 : index
    %c0_56 = arith.constant 0 : index
    %c0_57 = arith.constant 0 : index
    %57 = vector.load %arg8[%c6_55, %c0_56, %c0_57] : memref<8x8x512xf32, #tpu.memory_space<vmem>>, vector<1x8x512xf32>
    %58 = vector.shape_cast %57 : vector<1x8x512xf32> to vector<8x512xf32>
    %59 = vector.shape_cast %56 : vector<8x512xf32> to vector<1x8x512xf32>
    tpu.vector_store %arg8[%c6_55, %c0_56, %c0_57], %59 {strides = array<i32>} : memref<8x8x512xf32, #tpu.memory_space<vmem>>, vector<1x8x512xf32>,
    %c7 = arith.constant 7 : index
    %c0_58 = arith.constant 0 : index
    %c0_59 = arith.constant 0 : index
    %60 = vector.load %arg0[%c7, %c0_58, %c0_59] : memref<8x8x16xbf16, #tpu.memory_space<vmem>>, vector<1x8x16xbf16>
    %61 = vector.shape_cast %60 : vector<1x8x16xbf16> to vector<8x16xbf16>
    %c0_60 = arith.constant 0 : index
    %c0_61 = arith.constant 0 : index
    %62 = vector.load %arg1[%c0_60, %c0_61] : memref<16x512xbf16, #tpu.memory_space<vmem>>, vector<16x512xbf16>
    %cst_62 = arith.constant dense<0.000000e+00> : vector<8x512xf32>
    %63 = tpu.matmul %61, %62, %cst_62 {dimension_numbers = #tpu.dot_dimension_numbers<[1], [0], [0], [1], [0, 0, 1, 1], [], []>} : vector<8x16xbf16>, vector<16x512xbf16>, vector<8x512xf32> -> vector<8x512xf32>
    %64 = arith.addf %63, %3 : vector<8x512xf32>
    %c7_63 = arith.constant 7 : index
    %c0_64 = arith.constant 0 : index
    %c0_65 = arith.constant 0 : index
    %65 = vector.load %arg8[%c7_63, %c0_64, %c0_65] : memref<8x8x512xf32, #tpu.memory_space<vmem>>, vector<1x8x512xf32>
    %66 = vector.shape_cast %65 : vector<1x8x512xf32> to vector<8x512xf32>
    %67 = vector.shape_cast %64 : vector<8x512xf32> to vector<1x8x512xf32>
    tpu.vector_store %arg8[%c7_63, %c0_64, %c0_65], %67 {strides = array<i32>} : memref<8x8x512xf32, #tpu.memory_space<vmem>>, vector<1x8x512xf32>,
    %c1_66 = arith.constant 1 : index
    %c0_67 = arith.constant 0 : index
    %c0_68 = arith.constant 0 : index
    %68 = vector.load %arg4[%c1_66, %c0_67, %c0_68] : memref<2x1x512xf32, #tpu.memory_space<vmem>>, vector<1x1x512xf32>
    %69 = vector.shape_cast %68 : vector<1x1x512xf32> to vector<1x512xf32>
    %70 = vector.shape_cast %69 : vector<1x512xf32> to vector<1x512xf32>
    %71 = vector.broadcast %70 : vector<1x512xf32> to vector<8x512xf32>
    %cst_69 = arith.constant 0.000000e+00 : f32
    %72 = vector.broadcast %cst_69 : f32 to vector<8x128xf32>
    %c0_70 = arith.constant 0 : index
    %c0_71 = arith.constant 0 : index
    %c0_72 = arith.constant 0 : index
    %73 = vector.load %arg8[%c0_70, %c0_71, %c0_72] : memref<8x8x512xf32, #tpu.memory_space<vmem>>, vector<1x8x512xf32>
    %74 = vector.shape_cast %73 : vector<1x8x512xf32> to vector<8x512xf32>
    %75 = arith.truncf %72 : vector<8x128xf32> to vector<8x128xbf16>
    %c0_73 = arith.constant 0 : index
    %c0_74 = arith.constant 0 : index
    %76 = vector.load %arg2[%c0_73, %c0_74] : memref<128x512xbf16, #tpu.memory_space<vmem>>, vector<128x512xbf16>
    %cst_75 = arith.constant dense<0.000000e+00> : vector<8x512xf32>
    %77 = tpu.matmul %75, %76, %cst_75 {dimension_numbers = #tpu.dot_dimension_numbers<[1], [0], [0], [1], [0, 0, 1, 1], [], []>} : vector<8x128xbf16>, vector<128x512xbf16>, vector<8x512xf32> -> vector<8x512xf32>
    %78 = arith.addf %74, %77 : vector<8x512xf32>
    %79 = vector.extract_strided_slice %78 {offsets = [0, 0], sizes = [8, 384], strides = [1, 1]} : vector<8x512xf32> to vector<8x384xf32>
    %cst_76 = arith.constant 5.000000e-01 : f32
    %80 = vector.broadcast %cst_76 : f32 to vector<8x384xf32>
    %81 = arith.mulf %80, %79 : vector<8x384xf32>
    %82 = math.tanh %81 : vector<8x384xf32>
    %cst_77 = arith.constant 5.000000e-01 : f32
    %83 = vector.broadcast %cst_77 : f32 to vector<8x384xf32>
    %84 = arith.mulf %83, %82 : vector<8x384xf32>
    %cst_78 = arith.constant 5.000000e-01 : f32
    %85 = vector.broadcast %cst_78 : f32 to vector<8x384xf32>
    %86 = arith.addf %84, %85 : vector<8x384xf32>
    %87 = vector.extract_strided_slice %78 {offsets = [0, 384], sizes = [8, 128], strides = [1, 1]} : vector<8x512xf32> to vector<8x128xf32>
    %88 = math.tanh %87 : vector<8x128xf32>
    %89 = vector.extract_strided_slice %86 {offsets = [0, 128], sizes = [8, 128], strides = [1, 1]} : vector<8x384xf32> to vector<8x128xf32>
    %90 = arith.mulf %89, %72 : vector<8x128xf32>
    %91 = vector.extract_strided_slice %86 {offsets = [0, 0], sizes = [8, 128], strides = [1, 1]} : vector<8x384xf32> to vector<8x128xf32>
    %92 = arith.mulf %91, %88 : vector<8x128xf32>
    %93 = arith.addf %90, %92 : vector<8x128xf32>
    %94 = vector.extract_strided_slice %86 {offsets = [0, 256], sizes = [8, 128], strides = [1, 1]} : vector<8x384xf32> to vector<8x128xf32>
    %95 = math.tanh %93 : vector<8x128xf32>
    %96 = arith.mulf %94, %95 : vector<8x128xf32>
    %c1_79 = arith.constant 1 : index
    %c0_80 = arith.constant 0 : index
    %c0_81 = arith.constant 0 : index
    %97 = vector.load %arg8[%c1_79, %c0_80, %c0_81] : memref<8x8x512xf32, #tpu.memory_space<vmem>>, vector<1x8x512xf32>
    %98 = vector.shape_cast %97 : vector<1x8x512xf32> to vector<8x512xf32>
    %99 = arith.truncf %96 : vector<8x128xf32> to vector<8x128xbf16>
    %c0_82 = arith.constant 0 : index
    %c0_83 = arith.constant 0 : index
    %100 = vector.load %arg2[%c0_82, %c0_83] : memref<128x512xbf16, #tpu.memory_space<vmem>>, vector<128x512xbf16>
    %cst_84 = arith.constant dense<0.000000e+00> : vector<8x512xf32>
    %101 = tpu.matmul %99, %100, %cst_84 {dimension_numbers = #tpu.dot_dimension_numbers<[1], [0], [0], [1], [0, 0, 1, 1], [], []>} : vector<8x128xbf16>, vector<128x512xbf16>, vector<8x512xf32> -> vector<8x512xf32>
    %102 = arith.addf %98, %101 : vector<8x512xf32>
    %103 = vector.extract_strided_slice %102 {offsets = [0, 0], sizes = [8, 384], strides = [1, 1]} : vector<8x512xf32> to vector<8x384xf32>
    %cst_85 = arith.constant 5.000000e-01 : f32
    %104 = vector.broadcast %cst_85 : f32 to vector<8x384xf32>
    %105 = arith.mulf %104, %103 : vector<8x384xf32>
    %106 = math.tanh %105 : vector<8x384xf32>
    %cst_86 = arith.constant 5.000000e-01 : f32
    %107 = vector.broadcast %cst_86 : f32 to vector<8x384xf32>
    %108 = arith.mulf %107, %106 : vector<8x384xf32>
    %cst_87 = arith.constant 5.000000e-01 : f32
    %109 = vector.broadcast %cst_87 : f32 to vector<8x384xf32>
    %110 = arith.addf %108, %109 : vector<8x384xf32>
    %111 = vector.extract_strided_slice %102 {offsets = [0, 384], sizes = [8, 128], strides = [1, 1]} : vector<8x512xf32> to vector<8x128xf32>
    %112 = math.tanh %111 : vector<8x128xf32>
    %113 = vector.extract_strided_slice %110 {offsets = [0, 128], sizes = [8, 128], strides = [1, 1]} : vector<8x384xf32> to vector<8x128xf32>
    %114 = arith.mulf %113, %93 : vector<8x128xf32>
    %115 = vector.extract_strided_slice %110 {offsets = [0, 0], sizes = [8, 128], strides = [1, 1]} : vector<8x384xf32> to vector<8x128xf32>
    %116 = arith.mulf %115, %112 : vector<8x128xf32>
    %117 = arith.addf %114, %116 : vector<8x128xf32>
    %118 = vector.extract_strided_slice %110 {offsets = [0, 256], sizes = [8, 128], strides = [1, 1]} : vector<8x384xf32> to vector<8x128xf32>
    %119 = math.tanh %117 : vector<8x128xf32>
    %120 = arith.mulf %118, %119 : vector<8x128xf32>
    %121 = tpu.concatenate %96, %72 in 1 : vector<8x128xf32>, vector<8x128xf32> -> vector<8x256xf32>
    %122 = arith.truncf %121 : vector<8x256xf32> to vector<8x256xbf16>
    %c0_88 = arith.constant 0 : index
    %c0_89 = arith.constant 0 : index
    %c0_90 = arith.constant 0 : index
    %123 = vector.load %arg3[%c0_88, %c0_89, %c0_90] : memref<1x256x512xbf16, #tpu.memory_space<vmem>>, vector<1x256x512xbf16>
    %124 = vector.shape_cast %123 : vector<1x256x512xbf16> to vector<256x512xbf16>
    %cst_91 = arith.constant dense<0.000000e+00> : vector<8x512xf32>
    %125 = tpu.matmul %122, %124, %cst_91 {dimension_numbers = #tpu.dot_dimension_numbers<[1], [0], [0], [1], [0, 0, 1, 1], [], []>} : vector<8x256xbf16>, vector<256x512xbf16>, vector<8x512xf32> -> vector<8x512xf32>
    %126 = arith.addf %71, %125 : vector<8x512xf32>
    %127 = vector.extract_strided_slice %126 {offsets = [0, 0], sizes = [8, 384], strides = [1, 1]} : vector<8x512xf32> to vector<8x384xf32>
    %cst_92 = arith.constant 5.000000e-01 : f32
    %128 = vector.broadcast %cst_92 : f32 to vector<8x384xf32>
    %129 = arith.mulf %128, %127 : vector<8x384xf32>
    %130 = math.tanh %129 : vector<8x384xf32>
    %cst_93 = arith.constant 5.000000e-01 : f32
    %131 = vector.broadcast %cst_93 : f32 to vector<8x384xf32>
    %132 = arith.mulf %131, %130 : vector<8x384xf32>
    %cst_94 = arith.constant 5.000000e-01 : f32
    %133 = vector.broadcast %cst_94 : f32 to vector<8x384xf32>
    %134 = arith.addf %132, %133 : vector<8x384xf32>
    %135 = vector.extract_strided_slice %126 {offsets = [0, 384], sizes = [8, 128], strides = [1, 1]} : vector<8x512xf32> to vector<8x128xf32>
    %136 = math.tanh %135 : vector<8x128xf32>
    %137 = vector.extract_strided_slice %134 {offsets = [0, 128], sizes = [8, 128], strides = [1, 1]} : vector<8x384xf32> to vector<8x128xf32>
    %138 = arith.mulf %137, %72 : vector<8x128xf32>
    %139 = vector.extract_strided_slice %134 {offsets = [0, 0], sizes = [8, 128], strides = [1, 1]} : vector<8x384xf32> to vector<8x128xf32>
    %140 = arith.mulf %139, %136 : vector<8x128xf32>
    %141 = arith.addf %138, %140 : vector<8x128xf32>
    %142 = vector.extract_strided_slice %134 {offsets = [0, 256], sizes = [8, 128], strides = [1, 1]} : vector<8x384xf32> to vector<8x128xf32>
    %143 = math.tanh %141 : vector<8x128xf32>
    %144 = arith.mulf %142, %143 : vector<8x128xf32>
    %c2_95 = arith.constant 2 : index
    %c0_96 = arith.constant 0 : index
    %c0_97 = arith.constant 0 : index
    %145 = vector.load %arg8[%c2_95, %c0_96, %c0_97] : memref<8x8x512xf32, #tpu.memory_space<vmem>>, vector<1x8x512xf32>
    %146 = vector.shape_cast %145 : vector<1x8x512xf32> to vector<8x512xf32>
    %147 = arith.truncf %120 : vector<8x128xf32> to vector<8x128xbf16>
    %c0_98 = arith.constant 0 : index
    %c0_99 = arith.constant 0 : index
    %148 = vector.load %arg2[%c0_98, %c0_99] : memref<128x512xbf16, #tpu.memory_space<vmem>>, vector<128x512xbf16>
    %cst_100 = arith.constant dense<0.000000e+00> : vector<8x512xf32>
    %149 = tpu.matmul %147, %148, %cst_100 {dimension_numbers = #tpu.dot_dimension_numbers<[1], [0], [0], [1], [0, 0, 1, 1], [], []>} : vector<8x128xbf16>, vector<128x512xbf16>, vector<8x512xf32> -> vector<8x512xf32>
    %150 = arith.addf %146, %149 : vector<8x512xf32>
    %151 = vector.extract_strided_slice %150 {offsets = [0, 0], sizes = [8, 384], strides = [1, 1]} : vector<8x512xf32> to vector<8x384xf32>
    %cst_101 = arith.constant 5.000000e-01 : f32
    %152 = vector.broadcast %cst_101 : f32 to vector<8x384xf32>
    %153 = arith.mulf %152, %151 : vector<8x384xf32>
    %154 = math.tanh %153 : vector<8x384xf32>
    %cst_102 = arith.constant 5.000000e-01 : f32
    %155 = vector.broadcast %cst_102 : f32 to vector<8x384xf32>
    %156 = arith.mulf %155, %154 : vector<8x384xf32>
    %cst_103 = arith.constant 5.000000e-01 : f32
    %157 = vector.broadcast %cst_103 : f32 to vector<8x384xf32>
    %158 = arith.addf %156, %157 : vector<8x384xf32>
    %159 = vector.extract_strided_slice %150 {offsets = [0, 384], sizes = [8, 128], strides = [1, 1]} : vector<8x512xf32> to vector<8x128xf32>
    %160 = math.tanh %159 : vector<8x128xf32>
    %161 = vector.extract_strided_slice %158 {offsets = [0, 128], sizes = [8, 128], strides = [1, 1]} : vector<8x384xf32> to vector<8x128xf32>
    %162 = arith.mulf %161, %117 : vector<8x128xf32>
    %163 = vector.extract_strided_slice %158 {offsets = [0, 0], sizes = [8, 128], strides = [1, 1]} : vector<8x384xf32> to vector<8x128xf32>
    %164 = arith.mulf %163, %160 : vector<8x128xf32>
    %165 = arith.addf %162, %164 : vector<8x128xf32>
    %166 = vector.extract_strided_slice %158 {offsets = [0, 256], sizes = [8, 128], strides = [1, 1]} : vector<8x384xf32> to vector<8x128xf32>
    %167 = math.tanh %165 : vector<8x128xf32>
    %168 = arith.mulf %166, %167 : vector<8x128xf32>
    %169 = tpu.concatenate %120, %144 in 1 : vector<8x128xf32>, vector<8x128xf32> -> vector<8x256xf32>
    %170 = arith.truncf %169 : vector<8x256xf32> to vector<8x256xbf16>
    %c0_104 = arith.constant 0 : index
    %c0_105 = arith.constant 0 : index
    %c0_106 = arith.constant 0 : index
    %171 = vector.load %arg3[%c0_104, %c0_105, %c0_106] : memref<1x256x512xbf16, #tpu.memory_space<vmem>>, vector<1x256x512xbf16>
    %172 = vector.shape_cast %171 : vector<1x256x512xbf16> to vector<256x512xbf16>
    %cst_107 = arith.constant dense<0.000000e+00> : vector<8x512xf32>
    %173 = tpu.matmul %170, %172, %cst_107 {dimension_numbers = #tpu.dot_dimension_numbers<[1], [0], [0], [1], [0, 0, 1, 1], [], []>} : vector<8x256xbf16>, vector<256x512xbf16>, vector<8x512xf32> -> vector<8x512xf32>
    %174 = arith.addf %71, %173 : vector<8x512xf32>
    %175 = vector.extract_strided_slice %174 {offsets = [0, 0], sizes = [8, 384], strides = [1, 1]} : vector<8x512xf32> to vector<8x384xf32>
    %cst_108 = arith.constant 5.000000e-01 : f32
    %176 = vector.broadcast %cst_108 : f32 to vector<8x384xf32>
    %177 = arith.mulf %176, %175 : vector<8x384xf32>
    %178 = math.tanh %177 : vector<8x384xf32>
    %cst_109 = arith.constant 5.000000e-01 : f32
    %179 = vector.broadcast %cst_109 : f32 to vector<8x384xf32>
    %180 = arith.mulf %179, %178 : vector<8x384xf32>
    %cst_110 = arith.constant 5.000000e-01 : f32
    %181 = vector.broadcast %cst_110 : f32 to vector<8x384xf32>
    %182 = arith.addf %180, %181 : vector<8x384xf32>
    %183 = vector.extract_strided_slice %174 {offsets = [0, 384], sizes = [8, 128], strides = [1, 1]} : vector<8x512xf32> to vector<8x128xf32>
    %184 = math.tanh %183 : vector<8x128xf32>
    %185 = vector.extract_strided_slice %182 {offsets = [0, 128], sizes = [8, 128], strides = [1, 1]} : vector<8x384xf32> to vector<8x128xf32>
    %186 = arith.mulf %185, %141 : vector<8x128xf32>
    %187 = vector.extract_strided_slice %182 {offsets = [0, 0], sizes = [8, 128], strides = [1, 1]} : vector<8x384xf32> to vector<8x128xf32>
    %188 = arith.mulf %187, %184 : vector<8x128xf32>
    %189 = arith.addf %186, %188 : vector<8x128xf32>
    %190 = vector.extract_strided_slice %182 {offsets = [0, 256], sizes = [8, 128], strides = [1, 1]} : vector<8x384xf32> to vector<8x128xf32>
    %191 = math.tanh %189 : vector<8x128xf32>
    %192 = arith.mulf %190, %191 : vector<8x128xf32>
    %c3_111 = arith.constant 3 : index
    %c0_112 = arith.constant 0 : index
    %c0_113 = arith.constant 0 : index
    %193 = vector.load %arg8[%c3_111, %c0_112, %c0_113] : memref<8x8x512xf32, #tpu.memory_space<vmem>>, vector<1x8x512xf32>
    %194 = vector.shape_cast %193 : vector<1x8x512xf32> to vector<8x512xf32>
    %195 = arith.truncf %168 : vector<8x128xf32> to vector<8x128xbf16>
    %c0_114 = arith.constant 0 : index
    %c0_115 = arith.constant 0 : index
    %196 = vector.load %arg2[%c0_114, %c0_115] : memref<128x512xbf16, #tpu.memory_space<vmem>>, vector<128x512xbf16>
    %cst_116 = arith.constant dense<0.000000e+00> : vector<8x512xf32>
    %197 = tpu.matmul %195, %196, %cst_116 {dimension_numbers = #tpu.dot_dimension_numbers<[1], [0], [0], [1], [0, 0, 1, 1], [], []>} : vector<8x128xbf16>, vector<128x512xbf16>, vector<8x512xf32> -> vector<8x512xf32>
    %198 = arith.addf %194, %197 : vector<8x512xf32>
    %199 = vector.extract_strided_slice %198 {offsets = [0, 0], sizes = [8, 384], strides = [1, 1]} : vector<8x512xf32> to vector<8x384xf32>
    %cst_117 = arith.constant 5.000000e-01 : f32
    %200 = vector.broadcast %cst_117 : f32 to vector<8x384xf32>
    %201 = arith.mulf %200, %199 : vector<8x384xf32>
    %202 = math.tanh %201 : vector<8x384xf32>
    %cst_118 = arith.constant 5.000000e-01 : f32
    %203 = vector.broadcast %cst_118 : f32 to vector<8x384xf32>
    %204 = arith.mulf %203, %202 : vector<8x384xf32>
    %cst_119 = arith.constant 5.000000e-01 : f32
    %205 = vector.broadcast %cst_119 : f32 to vector<8x384xf32>
    %206 = arith.addf %204, %205 : vector<8x384xf32>
    %207 = vector.extract_strided_slice %198 {offsets = [0, 384], sizes = [8, 128], strides = [1, 1]} : vector<8x512xf32> to vector<8x128xf32>
    %208 = math.tanh %207 : vector<8x128xf32>
    %209 = vector.extract_strided_slice %206 {offsets = [0, 128], sizes = [8, 128], strides = [1, 1]} : vector<8x384xf32> to vector<8x128xf32>
    %210 = arith.mulf %209, %165 : vector<8x128xf32>
    %211 = vector.extract_strided_slice %206 {offsets = [0, 0], sizes = [8, 128], strides = [1, 1]} : vector<8x384xf32> to vector<8x128xf32>
    %212 = arith.mulf %211, %208 : vector<8x128xf32>
    %213 = arith.addf %210, %212 : vector<8x128xf32>
    %214 = vector.extract_strided_slice %206 {offsets = [0, 256], sizes = [8, 128], strides = [1, 1]} : vector<8x384xf32> to vector<8x128xf32>
    %215 = math.tanh %213 : vector<8x128xf32>
    %216 = arith.mulf %214, %215 : vector<8x128xf32>
    %217 = tpu.concatenate %168, %192 in 1 : vector<8x128xf32>, vector<8x128xf32> -> vector<8x256xf32>
    %218 = arith.truncf %217 : vector<8x256xf32> to vector<8x256xbf16>
    %c0_120 = arith.constant 0 : index
    %c0_121 = arith.constant 0 : index
    %c0_122 = arith.constant 0 : index
    %219 = vector.load %arg3[%c0_120, %c0_121, %c0_122] : memref<1x256x512xbf16, #tpu.memory_space<vmem>>, vector<1x256x512xbf16>
    %220 = vector.shape_cast %219 : vector<1x256x512xbf16> to vector<256x512xbf16>
    %cst_123 = arith.constant dense<0.000000e+00> : vector<8x512xf32>
    %221 = tpu.matmul %218, %220, %cst_123 {dimension_numbers = #tpu.dot_dimension_numbers<[1], [0], [0], [1], [0, 0, 1, 1], [], []>} : vector<8x256xbf16>, vector<256x512xbf16>, vector<8x512xf32> -> vector<8x512xf32>
    %222 = arith.addf %71, %221 : vector<8x512xf32>
    %223 = vector.extract_strided_slice %222 {offsets = [0, 0], sizes = [8, 384], strides = [1, 1]} : vector<8x512xf32> to vector<8x384xf32>
    %cst_124 = arith.constant 5.000000e-01 : f32
    %224 = vector.broadcast %cst_124 : f32 to vector<8x384xf32>
    %225 = arith.mulf %224, %223 : vector<8x384xf32>
    %226 = math.tanh %225 : vector<8x384xf32>
    %cst_125 = arith.constant 5.000000e-01 : f32
    %227 = vector.broadcast %cst_125 : f32 to vector<8x384xf32>
    %228 = arith.mulf %227, %226 : vector<8x384xf32>
    %cst_126 = arith.constant 5.000000e-01 : f32
    %229 = vector.broadcast %cst_126 : f32 to vector<8x384xf32>
    %230 = arith.addf %228, %229 : vector<8x384xf32>
    %231 = vector.extract_strided_slice %222 {offsets = [0, 384], sizes = [8, 128], strides = [1, 1]} : vector<8x512xf32> to vector<8x128xf32>
    %232 = math.tanh %231 : vector<8x128xf32>
    %233 = vector.extract_strided_slice %230 {offsets = [0, 128], sizes = [8, 128], strides = [1, 1]} : vector<8x384xf32> to vector<8x128xf32>
    %234 = arith.mulf %233, %189 : vector<8x128xf32>
    %235 = vector.extract_strided_slice %230 {offsets = [0, 0], sizes = [8, 128], strides = [1, 1]} : vector<8x384xf32> to vector<8x128xf32>
    %236 = arith.mulf %235, %232 : vector<8x128xf32>
    %237 = arith.addf %234, %236 : vector<8x128xf32>
    %238 = vector.extract_strided_slice %230 {offsets = [0, 256], sizes = [8, 128], strides = [1, 1]} : vector<8x384xf32> to vector<8x128xf32>
    %239 = math.tanh %237 : vector<8x128xf32>
    %240 = arith.mulf %238, %239 : vector<8x128xf32>
    %c4_127 = arith.constant 4 : index
    %c0_128 = arith.constant 0 : index
    %c0_129 = arith.constant 0 : index
    %241 = vector.load %arg8[%c4_127, %c0_128, %c0_129] : memref<8x8x512xf32, #tpu.memory_space<vmem>>, vector<1x8x512xf32>
    %242 = vector.shape_cast %241 : vector<1x8x512xf32> to vector<8x512xf32>
    %243 = arith.truncf %216 : vector<8x128xf32> to vector<8x128xbf16>
    %c0_130 = arith.constant 0 : index
    %c0_131 = arith.constant 0 : index
    %244 = vector.load %arg2[%c0_130, %c0_131] : memref<128x512xbf16, #tpu.memory_space<vmem>>, vector<128x512xbf16>
    %cst_132 = arith.constant dense<0.000000e+00> : vector<8x512xf32>
    %245 = tpu.matmul %243, %244, %cst_132 {dimension_numbers = #tpu.dot_dimension_numbers<[1], [0], [0], [1], [0, 0, 1, 1], [], []>} : vector<8x128xbf16>, vector<128x512xbf16>, vector<8x512xf32> -> vector<8x512xf32>
    %246 = arith.addf %242, %245 : vector<8x512xf32>
    %247 = vector.extract_strided_slice %246 {offsets = [0, 0], sizes = [8, 384], strides = [1, 1]} : vector<8x512xf32> to vector<8x384xf32>
    %cst_133 = arith.constant 5.000000e-01 : f32
    %248 = vector.broadcast %cst_133 : f32 to vector<8x384xf32>
    %249 = arith.mulf %248, %247 : vector<8x384xf32>
    %250 = math.tanh %249 : vector<8x384xf32>
    %cst_134 = arith.constant 5.000000e-01 : f32
    %251 = vector.broadcast %cst_134 : f32 to vector<8x384xf32>
    %252 = arith.mulf %251, %250 : vector<8x384xf32>
    %cst_135 = arith.constant 5.000000e-01 : f32
    %253 = vector.broadcast %cst_135 : f32 to vector<8x384xf32>
    %254 = arith.addf %252, %253 : vector<8x384xf32>
    %255 = vector.extract_strided_slice %246 {offsets = [0, 384], sizes = [8, 128], strides = [1, 1]} : vector<8x512xf32> to vector<8x128xf32>
    %256 = math.tanh %255 : vector<8x128xf32>
    %257 = vector.extract_strided_slice %254 {offsets = [0, 128], sizes = [8, 128], strides = [1, 1]} : vector<8x384xf32> to vector<8x128xf32>
    %258 = arith.mulf %257, %213 : vector<8x128xf32>
    %259 = vector.extract_strided_slice %254 {offsets = [0, 0], sizes = [8, 128], strides = [1, 1]} : vector<8x384xf32> to vector<8x128xf32>
    %260 = arith.mulf %259, %256 : vector<8x128xf32>
    %261 = arith.addf %258, %260 : vector<8x128xf32>
    %262 = vector.extract_strided_slice %254 {offsets = [0, 256], sizes = [8, 128], strides = [1, 1]} : vector<8x384xf32> to vector<8x128xf32>
    %263 = math.tanh %261 : vector<8x128xf32>
    %264 = arith.mulf %262, %263 : vector<8x128xf32>
    %265 = tpu.concatenate %216, %240 in 1 : vector<8x128xf32>, vector<8x128xf32> -> vector<8x256xf32>
    %266 = arith.truncf %265 : vector<8x256xf32> to vector<8x256xbf16>
    %c0_136 = arith.constant 0 : index
    %c0_137 = arith.constant 0 : index
    %c0_138 = arith.constant 0 : index
    %267 = vector.load %arg3[%c0_136, %c0_137, %c0_138] : memref<1x256x512xbf16, #tpu.memory_space<vmem>>, vector<1x256x512xbf16>
    %268 = vector.shape_cast %267 : vector<1x256x512xbf16> to vector<256x512xbf16>
    %cst_139 = arith.constant dense<0.000000e+00> : vector<8x512xf32>
    %269 = tpu.matmul %266, %268, %cst_139 {dimension_numbers = #tpu.dot_dimension_numbers<[1], [0], [0], [1], [0, 0, 1, 1], [], []>} : vector<8x256xbf16>, vector<256x512xbf16>, vector<8x512xf32> -> vector<8x512xf32>
    %270 = arith.addf %71, %269 : vector<8x512xf32>
    %271 = vector.extract_strided_slice %270 {offsets = [0, 0], sizes = [8, 384], strides = [1, 1]} : vector<8x512xf32> to vector<8x384xf32>
    %cst_140 = arith.constant 5.000000e-01 : f32
    %272 = vector.broadcast %cst_140 : f32 to vector<8x384xf32>
    %273 = arith.mulf %272, %271 : vector<8x384xf32>
    %274 = math.tanh %273 : vector<8x384xf32>
    %cst_141 = arith.constant 5.000000e-01 : f32
    %275 = vector.broadcast %cst_141 : f32 to vector<8x384xf32>
    %276 = arith.mulf %275, %274 : vector<8x384xf32>
    %cst_142 = arith.constant 5.000000e-01 : f32
    %277 = vector.broadcast %cst_142 : f32 to vector<8x384xf32>
    %278 = arith.addf %276, %277 : vector<8x384xf32>
    %279 = vector.extract_strided_slice %270 {offsets = [0, 384], sizes = [8, 128], strides = [1, 1]} : vector<8x512xf32> to vector<8x128xf32>
    %280 = math.tanh %279 : vector<8x128xf32>
    %281 = vector.extract_strided_slice %278 {offsets = [0, 128], sizes = [8, 128], strides = [1, 1]} : vector<8x384xf32> to vector<8x128xf32>
    %282 = arith.mulf %281, %237 : vector<8x128xf32>
    %283 = vector.extract_strided_slice %278 {offsets = [0, 0], sizes = [8, 128], strides = [1, 1]} : vector<8x384xf32> to vector<8x128xf32>
    %284 = arith.mulf %283, %280 : vector<8x128xf32>
    %285 = arith.addf %282, %284 : vector<8x128xf32>
    %286 = vector.extract_strided_slice %278 {offsets = [0, 256], sizes = [8, 128], strides = [1, 1]} : vector<8x384xf32> to vector<8x128xf32>
    %287 = math.tanh %285 : vector<8x128xf32>
    %288 = arith.mulf %286, %287 : vector<8x128xf32>
    %c5_143 = arith.constant 5 : index
    %c0_144 = arith.constant 0 : index
    %c0_145 = arith.constant 0 : index
    %289 = vector.load %arg8[%c5_143, %c0_144, %c0_145] : memref<8x8x512xf32, #tpu.memory_space<vmem>>, vector<1x8x512xf32>
    %290 = vector.shape_cast %289 : vector<1x8x512xf32> to vector<8x512xf32>
    %291 = arith.truncf %264 : vector<8x128xf32> to vector<8x128xbf16>
    %c0_146 = arith.constant 0 : index
    %c0_147 = arith.constant 0 : index
    %292 = vector.load %arg2[%c0_146, %c0_147] : memref<128x512xbf16, #tpu.memory_space<vmem>>, vector<128x512xbf16>
    %cst_148 = arith.constant dense<0.000000e+00> : vector<8x512xf32>
    %293 = tpu.matmul %291, %292, %cst_148 {dimension_numbers = #tpu.dot_dimension_numbers<[1], [0], [0], [1], [0, 0, 1, 1], [], []>} : vector<8x128xbf16>, vector<128x512xbf16>, vector<8x512xf32> -> vector<8x512xf32>
    %294 = arith.addf %290, %293 : vector<8x512xf32>
    %295 = vector.extract_strided_slice %294 {offsets = [0, 0], sizes = [8, 384], strides = [1, 1]} : vector<8x512xf32> to vector<8x384xf32>
    %cst_149 = arith.constant 5.000000e-01 : f32
    %296 = vector.broadcast %cst_149 : f32 to vector<8x384xf32>
    %297 = arith.mulf %296, %295 : vector<8x384xf32>
    %298 = math.tanh %297 : vector<8x384xf32>
    %cst_150 = arith.constant 5.000000e-01 : f32
    %299 = vector.broadcast %cst_150 : f32 to vector<8x384xf32>
    %300 = arith.mulf %299, %298 : vector<8x384xf32>
    %cst_151 = arith.constant 5.000000e-01 : f32
    %301 = vector.broadcast %cst_151 : f32 to vector<8x384xf32>
    %302 = arith.addf %300, %301 : vector<8x384xf32>
    %303 = vector.extract_strided_slice %294 {offsets = [0, 384], sizes = [8, 128], strides = [1, 1]} : vector<8x512xf32> to vector<8x128xf32>
    %304 = math.tanh %303 : vector<8x128xf32>
    %305 = vector.extract_strided_slice %302 {offsets = [0, 128], sizes = [8, 128], strides = [1, 1]} : vector<8x384xf32> to vector<8x128xf32>
    %306 = arith.mulf %305, %261 : vector<8x128xf32>
    %307 = vector.extract_strided_slice %302 {offsets = [0, 0], sizes = [8, 128], strides = [1, 1]} : vector<8x384xf32> to vector<8x128xf32>
    %308 = arith.mulf %307, %304 : vector<8x128xf32>
    %309 = arith.addf %306, %308 : vector<8x128xf32>
    %310 = vector.extract_strided_slice %302 {offsets = [0, 256], sizes = [8, 128], strides = [1, 1]} : vector<8x384xf32> to vector<8x128xf32>
    %311 = math.tanh %309 : vector<8x128xf32>
    %312 = arith.mulf %310, %311 : vector<8x128xf32>
    %313 = tpu.concatenate %264, %288 in 1 : vector<8x128xf32>, vector<8x128xf32> -> vector<8x256xf32>
    %314 = arith.truncf %313 : vector<8x256xf32> to vector<8x256xbf16>
    %c0_152 = arith.constant 0 : index
    %c0_153 = arith.constant 0 : index
    %c0_154 = arith.constant 0 : index
    %315 = vector.load %arg3[%c0_152, %c0_153, %c0_154] : memref<1x256x512xbf16, #tpu.memory_space<vmem>>, vector<1x256x512xbf16>
    %316 = vector.shape_cast %315 : vector<1x256x512xbf16> to vector<256x512xbf16>
    %cst_155 = arith.constant dense<0.000000e+00> : vector<8x512xf32>
    %317 = tpu.matmul %314, %316, %cst_155 {dimension_numbers = #tpu.dot_dimension_numbers<[1], [0], [0], [1], [0, 0, 1, 1], [], []>} : vector<8x256xbf16>, vector<256x512xbf16>, vector<8x512xf32> -> vector<8x512xf32>
    %318 = arith.addf %71, %317 : vector<8x512xf32>
    %319 = vector.extract_strided_slice %318 {offsets = [0, 0], sizes = [8, 384], strides = [1, 1]} : vector<8x512xf32> to vector<8x384xf32>
    %cst_156 = arith.constant 5.000000e-01 : f32
    %320 = vector.broadcast %cst_156 : f32 to vector<8x384xf32>
    %321 = arith.mulf %320, %319 : vector<8x384xf32>
    %322 = math.tanh %321 : vector<8x384xf32>
    %cst_157 = arith.constant 5.000000e-01 : f32
    %323 = vector.broadcast %cst_157 : f32 to vector<8x384xf32>
    %324 = arith.mulf %323, %322 : vector<8x384xf32>
    %cst_158 = arith.constant 5.000000e-01 : f32
    %325 = vector.broadcast %cst_158 : f32 to vector<8x384xf32>
    %326 = arith.addf %324, %325 : vector<8x384xf32>
    %327 = vector.extract_strided_slice %318 {offsets = [0, 384], sizes = [8, 128], strides = [1, 1]} : vector<8x512xf32> to vector<8x128xf32>
    %328 = math.tanh %327 : vector<8x128xf32>
    %329 = vector.extract_strided_slice %326 {offsets = [0, 128], sizes = [8, 128], strides = [1, 1]} : vector<8x384xf32> to vector<8x128xf32>
    %330 = arith.mulf %329, %285 : vector<8x128xf32>
    %331 = vector.extract_strided_slice %326 {offsets = [0, 0], sizes = [8, 128], strides = [1, 1]} : vector<8x384xf32> to vector<8x128xf32>
    %332 = arith.mulf %331, %328 : vector<8x128xf32>
    %333 = arith.addf %330, %332 : vector<8x128xf32>
    %334 = vector.extract_strided_slice %326 {offsets = [0, 256], sizes = [8, 128], strides = [1, 1]} : vector<8x384xf32> to vector<8x128xf32>
    %335 = math.tanh %333 : vector<8x128xf32>
    %336 = arith.mulf %334, %335 : vector<8x128xf32>
    %c6_159 = arith.constant 6 : index
    %c0_160 = arith.constant 0 : index
    %c0_161 = arith.constant 0 : index
    %337 = vector.load %arg8[%c6_159, %c0_160, %c0_161] : memref<8x8x512xf32, #tpu.memory_space<vmem>>, vector<1x8x512xf32>
    %338 = vector.shape_cast %337 : vector<1x8x512xf32> to vector<8x512xf32>
    %339 = arith.truncf %312 : vector<8x128xf32> to vector<8x128xbf16>
    %c0_162 = arith.constant 0 : index
    %c0_163 = arith.constant 0 : index
    %340 = vector.load %arg2[%c0_162, %c0_163] : memref<128x512xbf16, #tpu.memory_space<vmem>>, vector<128x512xbf16>
    %cst_164 = arith.constant dense<0.000000e+00> : vector<8x512xf32>
    %341 = tpu.matmul %339, %340, %cst_164 {dimension_numbers = #tpu.dot_dimension_numbers<[1], [0], [0], [1], [0, 0, 1, 1], [], []>} : vector<8x128xbf16>, vector<128x512xbf16>, vector<8x512xf32> -> vector<8x512xf32>
    %342 = arith.addf %338, %341 : vector<8x512xf32>
    %343 = vector.extract_strided_slice %342 {offsets = [0, 0], sizes = [8, 384], strides = [1, 1]} : vector<8x512xf32> to vector<8x384xf32>
    %cst_165 = arith.constant 5.000000e-01 : f32
    %344 = vector.broadcast %cst_165 : f32 to vector<8x384xf32>
    %345 = arith.mulf %344, %343 : vector<8x384xf32>
    %346 = math.tanh %345 : vector<8x384xf32>
    %cst_166 = arith.constant 5.000000e-01 : f32
    %347 = vector.broadcast %cst_166 : f32 to vector<8x384xf32>
    %348 = arith.mulf %347, %346 : vector<8x384xf32>
    %cst_167 = arith.constant 5.000000e-01 : f32
    %349 = vector.broadcast %cst_167 : f32 to vector<8x384xf32>
    %350 = arith.addf %348, %349 : vector<8x384xf32>
    %351 = vector.extract_strided_slice %342 {offsets = [0, 384], sizes = [8, 128], strides = [1, 1]} : vector<8x512xf32> to vector<8x128xf32>
    %352 = math.tanh %351 : vector<8x128xf32>
    %353 = vector.extract_strided_slice %350 {offsets = [0, 128], sizes = [8, 128], strides = [1, 1]} : vector<8x384xf32> to vector<8x128xf32>
    %354 = arith.mulf %353, %309 : vector<8x128xf32>
    %355 = vector.extract_strided_slice %350 {offsets = [0, 0], sizes = [8, 128], strides = [1, 1]} : vector<8x384xf32> to vector<8x128xf32>
    %356 = arith.mulf %355, %352 : vector<8x128xf32>
    %357 = arith.addf %354, %356 : vector<8x128xf32>
    %358 = vector.extract_strided_slice %350 {offsets = [0, 256], sizes = [8, 128], strides = [1, 1]} : vector<8x384xf32> to vector<8x128xf32>
    %359 = math.tanh %357 : vector<8x128xf32>
    %360 = arith.mulf %358, %359 : vector<8x128xf32>
    %361 = tpu.concatenate %312, %336 in 1 : vector<8x128xf32>, vector<8x128xf32> -> vector<8x256xf32>
    %362 = arith.truncf %361 : vector<8x256xf32> to vector<8x256xbf16>
    %c0_168 = arith.constant 0 : index
    %c0_169 = arith.constant 0 : index
    %c0_170 = arith.constant 0 : index
    %363 = vector.load %arg3[%c0_168, %c0_169, %c0_170] : memref<1x256x512xbf16, #tpu.memory_space<vmem>>, vector<1x256x512xbf16>
    %364 = vector.shape_cast %363 : vector<1x256x512xbf16> to vector<256x512xbf16>
    %cst_171 = arith.constant dense<0.000000e+00> : vector<8x512xf32>
    %365 = tpu.matmul %362, %364, %cst_171 {dimension_numbers = #tpu.dot_dimension_numbers<[1], [0], [0], [1], [0, 0, 1, 1], [], []>} : vector<8x256xbf16>, vector<256x512xbf16>, vector<8x512xf32> -> vector<8x512xf32>
    %366 = arith.addf %71, %365 : vector<8x512xf32>
    %367 = vector.extract_strided_slice %366 {offsets = [0, 0], sizes = [8, 384], strides = [1, 1]} : vector<8x512xf32> to vector<8x384xf32>
    %cst_172 = arith.constant 5.000000e-01 : f32
    %368 = vector.broadcast %cst_172 : f32 to vector<8x384xf32>
    %369 = arith.mulf %368, %367 : vector<8x384xf32>
    %370 = math.tanh %369 : vector<8x384xf32>
    %cst_173 = arith.constant 5.000000e-01 : f32
    %371 = vector.broadcast %cst_173 : f32 to vector<8x384xf32>
    %372 = arith.mulf %371, %370 : vector<8x384xf32>
    %cst_174 = arith.constant 5.000000e-01 : f32
    %373 = vector.broadcast %cst_174 : f32 to vector<8x384xf32>
    %374 = arith.addf %372, %373 : vector<8x384xf32>
    %375 = vector.extract_strided_slice %366 {offsets = [0, 384], sizes = [8, 128], strides = [1, 1]} : vector<8x512xf32> to vector<8x128xf32>
    %376 = math.tanh %375 : vector<8x128xf32>
    %377 = vector.extract_strided_slice %374 {offsets = [0, 128], sizes = [8, 128], strides = [1, 1]} : vector<8x384xf32> to vector<8x128xf32>
    %378 = arith.mulf %377, %333 : vector<8x128xf32>
    %379 = vector.extract_strided_slice %374 {offsets = [0, 0], sizes = [8, 128], strides = [1, 1]} : vector<8x384xf32> to vector<8x128xf32>
    %380 = arith.mulf %379, %376 : vector<8x128xf32>
    %381 = arith.addf %378, %380 : vector<8x128xf32>
    %382 = vector.extract_strided_slice %374 {offsets = [0, 256], sizes = [8, 128], strides = [1, 1]} : vector<8x384xf32> to vector<8x128xf32>
    %383 = math.tanh %381 : vector<8x128xf32>
    %384 = arith.mulf %382, %383 : vector<8x128xf32>
    %c7_175 = arith.constant 7 : index
    %c0_176 = arith.constant 0 : index
    %c0_177 = arith.constant 0 : index
    %385 = vector.load %arg8[%c7_175, %c0_176, %c0_177] : memref<8x8x512xf32, #tpu.memory_space<vmem>>, vector<1x8x512xf32>
    %386 = vector.shape_cast %385 : vector<1x8x512xf32> to vector<8x512xf32>
    %387 = arith.truncf %360 : vector<8x128xf32> to vector<8x128xbf16>
    %c0_178 = arith.constant 0 : index
    %c0_179 = arith.constant 0 : index
    %388 = vector.load %arg2[%c0_178, %c0_179] : memref<128x512xbf16, #tpu.memory_space<vmem>>, vector<128x512xbf16>
    %cst_180 = arith.constant dense<0.000000e+00> : vector<8x512xf32>
    %389 = tpu.matmul %387, %388, %cst_180 {dimension_numbers = #tpu.dot_dimension_numbers<[1], [0], [0], [1], [0, 0, 1, 1], [], []>} : vector<8x128xbf16>, vector<128x512xbf16>, vector<8x512xf32> -> vector<8x512xf32>
    %390 = arith.addf %386, %389 : vector<8x512xf32>
    %391 = vector.extract_strided_slice %390 {offsets = [0, 0], sizes = [8, 384], strides = [1, 1]} : vector<8x512xf32> to vector<8x384xf32>
    %cst_181 = arith.constant 5.000000e-01 : f32
    %392 = vector.broadcast %cst_181 : f32 to vector<8x384xf32>
    %393 = arith.mulf %392, %391 : vector<8x384xf32>
    %394 = math.tanh %393 : vector<8x384xf32>
    %cst_182 = arith.constant 5.000000e-01 : f32
    %395 = vector.broadcast %cst_182 : f32 to vector<8x384xf32>
    %396 = arith.mulf %395, %394 : vector<8x384xf32>
    %cst_183 = arith.constant 5.000000e-01 : f32
    %397 = vector.broadcast %cst_183 : f32 to vector<8x384xf32>
    %398 = arith.addf %396, %397 : vector<8x384xf32>
    %399 = vector.extract_strided_slice %390 {offsets = [0, 384], sizes = [8, 128], strides = [1, 1]} : vector<8x512xf32> to vector<8x128xf32>
    %400 = math.tanh %399 : vector<8x128xf32>
    %401 = vector.extract_strided_slice %398 {offsets = [0, 128], sizes = [8, 128], strides = [1, 1]} : vector<8x384xf32> to vector<8x128xf32>
    %402 = arith.mulf %401, %357 : vector<8x128xf32>
    %403 = vector.extract_strided_slice %398 {offsets = [0, 0], sizes = [8, 128], strides = [1, 1]} : vector<8x384xf32> to vector<8x128xf32>
    %404 = arith.mulf %403, %400 : vector<8x128xf32>
    %405 = arith.addf %402, %404 : vector<8x128xf32>
    %406 = vector.extract_strided_slice %398 {offsets = [0, 256], sizes = [8, 128], strides = [1, 1]} : vector<8x384xf32> to vector<8x128xf32>
    %407 = math.tanh %405 : vector<8x128xf32>
    %408 = arith.mulf %406, %407 : vector<8x128xf32>
    %409 = tpu.concatenate %360, %384 in 1 : vector<8x128xf32>, vector<8x128xf32> -> vector<8x256xf32>
    %410 = arith.truncf %409 : vector<8x256xf32> to vector<8x256xbf16>
    %c0_184 = arith.constant 0 : index
    %c0_185 = arith.constant 0 : index
    %c0_186 = arith.constant 0 : index
    %411 = vector.load %arg3[%c0_184, %c0_185, %c0_186] : memref<1x256x512xbf16, #tpu.memory_space<vmem>>, vector<1x256x512xbf16>
    %412 = vector.shape_cast %411 : vector<1x256x512xbf16> to vector<256x512xbf16>
    %cst_187 = arith.constant dense<0.000000e+00> : vector<8x512xf32>
    %413 = tpu.matmul %410, %412, %cst_187 {dimension_numbers = #tpu.dot_dimension_numbers<[1], [0], [0], [1], [0, 0, 1, 1], [], []>} : vector<8x256xbf16>, vector<256x512xbf16>, vector<8x512xf32> -> vector<8x512xf32>
    %414 = arith.addf %71, %413 : vector<8x512xf32>
    %415 = vector.extract_strided_slice %414 {offsets = [0, 0], sizes = [8, 384], strides = [1, 1]} : vector<8x512xf32> to vector<8x384xf32>
    %cst_188 = arith.constant 5.000000e-01 : f32
    %416 = vector.broadcast %cst_188 : f32 to vector<8x384xf32>
    %417 = arith.mulf %416, %415 : vector<8x384xf32>
    %418 = math.tanh %417 : vector<8x384xf32>
    %cst_189 = arith.constant 5.000000e-01 : f32
    %419 = vector.broadcast %cst_189 : f32 to vector<8x384xf32>
    %420 = arith.mulf %419, %418 : vector<8x384xf32>
    %cst_190 = arith.constant 5.000000e-01 : f32
    %421 = vector.broadcast %cst_190 : f32 to vector<8x384xf32>
    %422 = arith.addf %420, %421 : vector<8x384xf32>
    %423 = vector.extract_strided_slice %414 {offsets = [0, 384], sizes = [8, 128], strides = [1, 1]} : vector<8x512xf32> to vector<8x128xf32>
    %424 = math.tanh %423 : vector<8x128xf32>
    %425 = vector.extract_strided_slice %422 {offsets = [0, 128], sizes = [8, 128], strides = [1, 1]} : vector<8x384xf32> to vector<8x128xf32>
    %426 = arith.mulf %425, %381 : vector<8x128xf32>
    %427 = vector.extract_strided_slice %422 {offsets = [0, 0], sizes = [8, 128], strides = [1, 1]} : vector<8x384xf32> to vector<8x128xf32>
    %428 = arith.mulf %427, %424 : vector<8x128xf32>
    %429 = arith.addf %426, %428 : vector<8x128xf32>
    %430 = vector.extract_strided_slice %422 {offsets = [0, 256], sizes = [8, 128], strides = [1, 1]} : vector<8x384xf32> to vector<8x128xf32>
    %431 = math.tanh %429 : vector<8x128xf32>
    %432 = arith.mulf %430, %431 : vector<8x128xf32>
    %433 = tpu.concatenate %408, %432 in 1 : vector<8x128xf32>, vector<8x128xf32> -> vector<8x256xf32>
    %434 = arith.truncf %433 : vector<8x256xf32> to vector<8x256xbf16>
    %c0_191 = arith.constant 0 : index
    %c0_192 = arith.constant 0 : index
    %c0_193 = arith.constant 0 : index
    %435 = vector.load %arg3[%c0_191, %c0_192, %c0_193] : memref<1x256x512xbf16, #tpu.memory_space<vmem>>, vector<1x256x512xbf16>
    %436 = vector.shape_cast %435 : vector<1x256x512xbf16> to vector<256x512xbf16>
    %cst_194 = arith.constant dense<0.000000e+00> : vector<8x512xf32>
    %437 = tpu.matmul %434, %436, %cst_194 {dimension_numbers = #tpu.dot_dimension_numbers<[1], [0], [0], [1], [0, 0, 1, 1], [], []>} : vector<8x256xbf16>, vector<256x512xbf16>, vector<8x512xf32> -> vector<8x512xf32>
    %438 = arith.addf %71, %437 : vector<8x512xf32>
    %439 = vector.extract_strided_slice %438 {offsets = [0, 0], sizes = [8, 384], strides = [1, 1]} : vector<8x512xf32> to vector<8x384xf32>
    %cst_195 = arith.constant 5.000000e-01 : f32
    %440 = vector.broadcast %cst_195 : f32 to vector<8x384xf32>
    %441 = arith.mulf %440, %439 : vector<8x384xf32>
    %442 = math.tanh %441 : vector<8x384xf32>
    %cst_196 = arith.constant 5.000000e-01 : f32
    %443 = vector.broadcast %cst_196 : f32 to vector<8x384xf32>
    %444 = arith.mulf %443, %442 : vector<8x384xf32>
    %cst_197 = arith.constant 5.000000e-01 : f32
    %445 = vector.broadcast %cst_197 : f32 to vector<8x384xf32>
    %446 = arith.addf %444, %445 : vector<8x384xf32>
    %447 = vector.extract_strided_slice %438 {offsets = [0, 384], sizes = [8, 128], strides = [1, 1]} : vector<8x512xf32> to vector<8x128xf32>
    %448 = math.tanh %447 : vector<8x128xf32>
    %449 = vector.extract_strided_slice %446 {offsets = [0, 128], sizes = [8, 128], strides = [1, 1]} : vector<8x384xf32> to vector<8x128xf32>
    %450 = arith.mulf %449, %429 : vector<8x128xf32>
    %451 = vector.extract_strided_slice %446 {offsets = [0, 0], sizes = [8, 128], strides = [1, 1]} : vector<8x384xf32> to vector<8x128xf32>
    %452 = arith.mulf %451, %448 : vector<8x128xf32>
    %453 = arith.addf %450, %452 : vector<8x128xf32>
    %454 = vector.extract_strided_slice %446 {offsets = [0, 256], sizes = [8, 128], strides = [1, 1]} : vector<8x384xf32> to vector<8x128xf32>
    %455 = math.tanh %453 : vector<8x128xf32>
    %456 = arith.mulf %454, %455 : vector<8x128xf32>
    %c0_198 = arith.constant 0 : index
    %c0_199 = arith.constant 0 : index
    %457 = vector.load %arg5[%c0_198, %c0_199] : memref<128x128xf32, #tpu.memory_space<vmem>>, vector<128x128xf32>
    %cst_200 = arith.constant dense<0.000000e+00> : vector<8x128xf32>
    %458 = tpu.matmul %456, %457, %cst_200 {dimension_numbers = #tpu.dot_dimension_numbers<[1], [0], [0], [1], [0, 0, 1, 1], [], []>} : vector<8x128xf32>, vector<128x128xf32>, vector<8x128xf32> -> vector<8x128xf32>
    %c0_201 = arith.constant 0 : index
    %c0_202 = arith.constant 0 : index
    %459 = vector.load %arg6[%c0_201, %c0_202] : memref<1x128xf32, #tpu.memory_space<vmem>>, vector<1x128xf32>
    %460 = vector.broadcast %459 : vector<1x128xf32> to vector<8x128xf32>
    %461 = arith.addf %458, %460 : vector<8x128xf32>
    %c0_203 = arith.constant 0 : index
    %c0_204 = arith.constant 0 : index
    %462 = vector.load %arg7[%c0_203, %c0_204] : memref<8x128xf32, #tpu.memory_space<vmem>>, vector<8x128xf32>
    tpu.vector_store %arg7[%c0_203, %c0_204], %461 {strides = array<i32>} : memref<8x128xf32, #tpu.memory_space<vmem>>, vector<8x128xf32>,
    return
  }
}

</mosaic_0001>

<llo_original>
// kernel: tpu_custom_call.1
$region0: #{tpu_custom_call.1}
  #allocation0 [shape = 'u32[]', space=smem, size = 0x4, offset = 0x4, fixed_abs, tag = 'smem constant byte address 0x4 - core index']
  #allocation1 [shape = 'u32[144,128]{1,0:T(1,128)}', space=vmem, size = 0x12000, scoped, tag = 'internal scratch']
  #allocation2 [shape = 'f32[8,8,512]{2,1,0:T(8,128)}', space=vmem, size = 0x20000, scoped, tag = 'scratch operand']
  %s0 = inlined_call_operand.hbm [shape: bf16[8,8,16], index: 0, kind: input, shape index: {}]
  %s1 = inlined_call_operand.hbm [shape: bf16[16,512], index: 1, kind: input, shape index: {}]
  %s2 = inlined_call_operand.hbm [shape: bf16[128,512], index: 2, kind: input, shape index: {}]
  %s3 = inlined_call_operand.hbm [shape: bf16[1,256,512], index: 3, kind: input, shape index: {}]
  %s4 = inlined_call_operand.vmem [shape: f32[2,1,512], index: 4, kind: input, shape index: {}]
  %s5 = inlined_call_operand.hbm [shape: f32[128,128], index: 5, kind: input, shape index: {}]
  %s6 = inlined_call_operand.vmem [shape: f32[1,128], index: 6, kind: input, shape index: {}]
  %s7 = inlined_call_operand.hbm [shape: f32[8,128], index: 7, kind: output, shape index: {}]
  %s8 = sld [smem:[#allocation0]]
  $region58: #{tpu_custom_call.1} parent=0
    _
  %s10 = ssub.s32 1, %s8
  %s11 = scalar_select 0, %s10, %s8
  $region1: #{tpu_custom_call.1} parent=0
    #allocation3 [shape = 'u8[16384]{0}', space=vmem, size = 0x4000, scoped, tag = 'input window, operand 0, single buffered']
    #allocation4 [shape = 's32[1]{0}', space=sflag, size = 0x4, scoped, tag = 'scoped memory for tpu_custom_call.1']
    #allocation5 [shape = 's32[1]{0}', space=sflag, size = 0x4, scoped, tag = 'scoped memory for tpu_custom_call.1']
    #allocation6 [shape = 'u8[16384]{0}', space=vmem, size = 0x4000, scoped, tag = 'input window, operand 1, single buffered']
    #allocation7 [shape = 's32[1]{0}', space=sflag, size = 0x4, scoped, tag = 'scoped memory for tpu_custom_call.1']
    #allocation8 [shape = 'u8[131072]{0}', space=vmem, size = 0x20000, scoped, tag = 'input window, operand 2, single buffered']
    #allocation9 [shape = 'u8[262144]{0}', space=vmem, size = 0x40000, scoped, tag = 'input window, operand 3, single buffered']
    #allocation10 [shape = 's32[1]{0}', space=sflag, size = 0x4, scoped, tag = 'scoped memory for tpu_custom_call.1']
    #allocation11 [shape = 'u8[65536]{0}', space=vmem, size = 0x10000, scoped, tag = 'input window, operand 5, single buffered']
    #allocation12 [shape = 'u8[4096]{0}', space=vmem, size = 0x1000, scoped, tag = 'output window, operand 0, single buffered']
    %12 = vsyncpa [#allocation4], 0
    %13 = vsyncpa [#allocation7], 0
    %14 = vsyncpa [#allocation10], 0
    %15 = vsyncpa [#allocation5], 0
    // Predicated region
    $region2: #{tpu_custom_call.1} parent=1 // pred_check
      _
    $region3: #{tpu_custom_call.1} parent=1 // pred_check_branch
      %17 = sbr.rel (0) target = $region5
    $region4: #{tpu_custom_call.1} parent=1 // pred_region
      %s19 = ssub.s32 512, 512
      %20 = vsyncadd [#allocation4], %s19
      %s21 = sshll.u32 [#allocation3], 4
      %s22 = int_to_ptr.vmem [resolvable:$true] %s21
      %27 = dma.hbm_to_vmem [thread:$0]  %s0, 512, %s22, [#allocation4], 64, 64, 4
    $region5: #{tpu_custom_call.1} parent=1 // pred_fallthru
      _
    // Predicated region
    $region6: #{tpu_custom_call.1} parent=1 // pred_check
      _
    $region7: #{tpu_custom_call.1} parent=1 // pred_check_branch
      %29 = sbr.rel (0) target = $region9
    $region8: #{tpu_custom_call.1} parent=1 // pred_region
      %s31 = ssub.s32 512, 512
      %32 = vsyncadd [#allocation7], %s31
      %s33 = sshll.u32 [#allocation6], 4
      %s34 = int_to_ptr.vmem [resolvable:$true] %s33
      %39 = dma.hbm_to_vmem [thread:$0]  %s1, 512, %s34, [#allocation7], 256, 256, 16
    $region9: #{tpu_custom_call.1} parent=1 // pred_fallthru
      _
    // Predicated region
    $region10: #{tpu_custom_call.1} parent=1 // pred_check
      _
    $region11: #{tpu_custom_call.1} parent=1 // pred_check_branch
      %41 = sbr.rel (0) target = $region13
    $region12: #{tpu_custom_call.1} parent=1 // pred_region
      %s43 = ssub.s32 4096, 4096
      %44 = vsyncadd [#allocation7], %s43
      %s45 = sshll.u32 [#allocation8], 4
      %s46 = int_to_ptr.vmem [resolvable:$true] %s45
      %51 = dma.hbm_to_vmem [thread:$0]  %s2, 4096, %s46, [#allocation7], 256, 256, 16
    $region13: #{tpu_custom_call.1} parent=1 // pred_fallthru
      _
    // Predicated region
    $region14: #{tpu_custom_call.1} parent=1 // pred_check
      _
    $region15: #{tpu_custom_call.1} parent=1 // pred_check_branch
      %53 = sbr.rel (0) target = $region17
    $region16: #{tpu_custom_call.1} parent=1 // pred_region
      %s55 = ssub.s32 8192, 8192
      %56 = vsyncadd [#allocation10], %s55
      %s57 = sshll.u32 [#allocation9], 4
      %s58 = int_to_ptr.vmem [resolvable:$true] %s57
      %63 = dma.hbm_to_vmem [thread:$0]  %s3, 8192, %s58, [#allocation10], 256, 256, 16
    $region17: #{tpu_custom_call.1} parent=1 // pred_fallthru
      _
    // Predicated region
    $region18: #{tpu_custom_call.1} parent=1 // pred_check
      _
    $region19: #{tpu_custom_call.1} parent=1 // pred_check_branch
      %65 = sbr.rel (0) target = $region21
    $region20: #{tpu_custom_call.1} parent=1 // pred_region
      _
    $region21: #{tpu_custom_call.1} parent=1 // pred_fallthru
      _
    // Predicated region
    $region22: #{tpu_custom_call.1} parent=1 // pred_check
      _
    $region23: #{tpu_custom_call.1} parent=1 // pred_check_branch
      %67 = sbr.rel (0) target = $region25
    $region24: #{tpu_custom_call.1} parent=1 // pred_region
      %s69 = ssub.s32 2048, 2048
      %70 = vsyncadd [#allocation10], %s69
      %s71 = sshll.u32 [#allocation11], 4
      %s72 = int_to_ptr.vmem [resolvable:$true] %s71
      %77 = dma.hbm_to_vmem [thread:$0]  %s5, 2048, %s72, [#allocation10], 128, 128, 8
    $region25: #{tpu_custom_call.1} parent=1 // pred_fallthru
      _
    // Predicated region
    $region26: #{tpu_custom_call.1} parent=1 // pred_check
      _
    $region27: #{tpu_custom_call.1} parent=1 // pred_check_branch
      %79 = sbr.rel (0) target = $region29
    $region28: #{tpu_custom_call.1} parent=1 // pred_region
      _
    $region29: #{tpu_custom_call.1} parent=1 // pred_fallthru
      _
    // Predicated region
    $region30: #{tpu_custom_call.1} parent=1 // pred_check
      _
    $region31: #{tpu_custom_call.1} parent=1 // pred_check_branch
      %81 = sbr.rel (0) target = $region33
    $region32: #{tpu_custom_call.1} parent=1 // pred_region
      %82 = dma.done [#allocation4], 512
    $region33: #{tpu_custom_call.1} parent=1 // pred_fallthru
      _
    // Predicated region
    $region34: #{tpu_custom_call.1} parent=1 // pred_check
      _
    $region35: #{tpu_custom_call.1} parent=1 // pred_check_branch
      %84 = sbr.rel (0) target = $region37
    $region36: #{tpu_custom_call.1} parent=1 // pred_region
      %85 = dma.done [#allocation7], 512
    $region37: #{tpu_custom_call.1} parent=1 // pred_fallthru
      _
    // Predicated region
    $region38: #{tpu_custom_call.1} parent=1 // pred_check
      _
    $region39: #{tpu_custom_call.1} parent=1 // pred_check_branch
      %87 = sbr.rel (0) target = $region41
    $region40: #{tpu_custom_call.1} parent=1 // pred_region
      %88 = dma.done [#allocation7], 4096
    $region41: #{tpu_custom_call.1} parent=1 // pred_fallthru
      _
    // Predicated region
    $region42: #{tpu_custom_call.1} parent=1 // pred_check
      _
    $region43: #{tpu_custom_call.1} parent=1 // pred_check_branch
      %90 = sbr.rel (0) target = $region45
    $region44: #{tpu_custom_call.1} parent=1 // pred_region
      %91 = dma.done [#allocation10], 8192
    $region45: #{tpu_custom_call.1} parent=1 // pred_fallthru
      _
    // Predicated region
    $region46: #{tpu_custom_call.1} parent=1 // pred_check
      _
    $region47: #{tpu_custom_call.1} parent=1 // pred_check_branch
      %93 = sbr.rel (0) target = $region49
    $region48: #{tpu_custom_call.1} parent=1 // pred_region
      %94 = dma.done [#allocation10], 2048
    $region49: #{tpu_custom_call.1} parent=1 // pred_fallthru
      _
    %v96 = vld [vmem:[%s4] sm:$0xf]
    %v98 = vlaneseq
    %v99 = vshrl.u32 %v98, 7
    %v100 = vsub.s32 0, %v99
    %v101 = vrot.slane %v96, %v100
    %v102 = vlaneseq
    %v103 = vshrl.u32 %v102, 7
    %v104 = vsub.s32 1, %v103
    %v105 = vrot.slane %v96, %v104
    %v106 = vlaneseq
    %v107 = vshrl.u32 %v106, 7
    %v108 = vsub.s32 2, %v107
    %v109 = vrot.slane %v96, %v108
    %v110 = vlaneseq
    %v111 = vshrl.u32 %v110, 7
    %v112 = vsub.s32 3, %v111
    %v113 = vrot.slane %v96, %v112
    %v118 = vld [vmem:[#allocation3] sm:$0xf]
    %v119 = vld [vmem:[#allocation6] sm:$0xff]
    %v120 = vld [vmem:[#allocation6 + $0x8] sm:$0xff]
    %v121 = vld [vmem:[#allocation6 + $0x10] sm:$0xff]
    %v122 = vld [vmem:[#allocation6 + $0x18] sm:$0xff]
    %v127 = vunpack.c.l.b16 %v119
    %v128 = vunpack.c.h.b16 %v119
    %v129 = vunpack.c.l.b16 %v120
    %v130 = vunpack.c.h.b16 %v120
    %v131 = vunpack.c.l.b16 %v121
    %v132 = vunpack.c.h.b16 %v121
    %v133 = vunpack.c.l.b16 %v122
    %v134 = vunpack.c.h.b16 %v122
    %v135 = vpack.c.b16 %v131, %v127
    %v136 = vpack.c.b16 %v132, %v128
    %v137 = vpack.c.b16 %v133, %v129
    %v138 = vpack.c.b16 %v134, %v130
    %vm143 = vcmask 130048
    %v145 = vsel %vm143, %v118, 0
    %147 = vmatprep.subr.bf16.mxu0 %v136
    %148 = vmatpush1.bf16.msra.mxu0 %v135
    %149 = vmatprep.subr.bf16.mxu0 0
    %150 = vmatpush1.bf16.msra.mxu0 0
    %151 = vmatprep.subr.bf16.mxu0 0
    %152 = vmatpush1.bf16.msra.mxu0 0
    %153 = vmatprep.subr.bf16.mxu0 0
    %154 = vmatpush1.bf16.msra.mxu0 0
    %155 = vmatprep.subr.bf16.mxu0 0
    %156 = vmatpush1.bf16.msra.mxu0 0
    %157 = vmatprep.subr.bf16.mxu0 0
    %158 = vmatpush1.bf16.msra.mxu0 0
    %159 = vmatprep.subr.bf16.mxu0 0
    %160 = vmatpush1.bf16.msra.mxu0 0
    %161 = vmatprep.subr.bf16.mxu0 0
    %162 = vmatpush1.bf16.msra.mxu0 0
    %163 = vmatprep.subr.bf16.mxu0 0
    %164 = vmatpush1.bf16.msra.mxu0 0
    %165 = vmatprep.subr.bf16.mxu0 0
    %166 = vmatpush1.bf16.msra.mxu0 0
    %167 = vmatprep.subr.bf16.mxu0 0
    %168 = vmatpush1.bf16.msra.mxu0 0
    %169 = vmatprep.subr.bf16.mxu0 0
    %170 = vmatpush1.bf16.msra.mxu0 0
    %171 = vmatprep.subr.bf16.mxu0 0
    %172 = vmatpush1.bf16.msra.mxu0 0
    %173 = vmatprep.subr.bf16.mxu0 0
    %174 = vmatpush1.bf16.msra.mxu0 0
    %175 = vmatprep.subr.bf16.mxu0 0
    %176 = vmatpush1.bf16.msra.mxu0 0
    %177 = vmatprep.subr.bf16.mxu0 0
    %178 = vmatpush1.bf16.msra.mxu0 0
    %179 = vmatprep.mubr.bf16.mxu0 0
    %180 = vmatmul.mubr.bf16.gmra.mrb[0].mxu0 %v145
    %v181 = vpop.f32.mrb[0].mxu0
    %v182 = vadd.f32 %v101, %v181
    %v183 = vpop.f32.mrb[0].mxu0
    %v184 = vadd.f32 %v105, %v183
    %v185 = vpop.f32.mrb[0].mxu0
    %v186 = vpop.f32.mrb[0].mxu0
    %187 = vdwg.mxu0
    %188 = vmatprep.subr.bf16.mxu0 %v138
    %189 = vmatpush1.bf16.msra.mxu0 %v137
    %190 = vmatprep.subr.bf16.mxu0 0
    %191 = vmatpush1.bf16.msra.mxu0 0
    %192 = vmatprep.subr.bf16.mxu0 0
    %193 = vmatpush1.bf16.msra.mxu0 0
    %194 = vmatprep.subr.bf16.mxu0 0
    %195 = vmatpush1.bf16.msra.mxu0 0
    %196 = vmatprep.subr.bf16.mxu0 0
    %197 = vmatpush1.bf16.msra.mxu0 0
    %198 = vmatprep.subr.bf16.mxu0 0
    %199 = vmatpush1.bf16.msra.mxu0 0
    %200 = vmatprep.subr.bf16.mxu0 0
    %201 = vmatpush1.bf16.msra.mxu0 0
    %202 = vmatprep.subr.bf16.mxu0 0
    %203 = vmatpush1.bf16.msra.mxu0 0
    %204 = vmatprep.subr.bf16.mxu0 0
    %205 = vmatpush1.bf16.msra.mxu0 0
    %206 = vmatprep.subr.bf16.mxu0 0
    %207 = vmatpush1.bf16.msra.mxu0 0
    %208 = vmatprep.subr.bf16.mxu0 0
    %209 = vmatpush1.bf16.msra.mxu0 0
    %210 = vmatprep.subr.bf16.mxu0 0
    %211 = vmatpush1.bf16.msra.mxu0 0
    %212 = vmatprep.subr.bf16.mxu0 0
    %213 = vmatpush1.bf16.msra.mxu0 0
    %214 = vmatprep.subr.bf16.mxu0 0
    %215 = vmatpush1.bf16.msra.mxu0 0
    %216 = vmatprep.subr.bf16.mxu0 0
    %217 = vmatpush1.bf16.msra.mxu0 0
    %218 = vmatprep.subr.bf16.mxu0 0
    %219 = vmatpush1.bf16.msra.mxu0 0
    %220 = vmatprep.mubr.bf16.mxu0 0
    %221 = vmatmul.mubr.bf16.gmra.mrb[0].mxu0 %v145
    %v222 = vpop.f32.mrb[0].mxu0
    %v223 = vadd.f32 %v109, %v222
    %v224 = vpop.f32.mrb[0].mxu0
    %v225 = vadd.f32 %v113, %v224
    %v226 = vpop.f32.mrb[0].mxu0
    %v227 = vpop.f32.mrb[0].mxu0
    %228 = vdwg.mxu0
    %229 = vst [vmem:[#allocation2] sm:$0xff] %v182
    %230 = vst [vmem:[#allocation2 + $0x8] sm:$0xff] %v184
    %231 = vst [vmem:[#allocation2 + $0x10] sm:$0xff] %v223
    %232 = vst [vmem:[#allocation2 + $0x18] sm:$0xff] %v225
    %s233 = scalar_lea.vmem [#allocation3], 4
    %v234 = vld [vmem:[%s233] sm:$0xf]
    %v235 = vld [vmem:[#allocation6] sm:$0xff]
    %v236 = vld [vmem:[#allocation6 + $0x8] sm:$0xff]
    %v237 = vld [vmem:[#allocation6 + $0x10] sm:$0xff]
    %v238 = vld [vmem:[#allocation6 + $0x18] sm:$0xff]
    %v243 = vunpack.c.l.b16 %v235
    %v244 = vunpack.c.h.b16 %v235
    %v245 = vunpack.c.l.b16 %v236
    %v246 = vunpack.c.h.b16 %v236
    %v247 = vunpack.c.l.b16 %v237
    %v248 = vunpack.c.h.b16 %v237
    %v249 = vunpack.c.l.b16 %v238
    %v250 = vunpack.c.h.b16 %v238
    %v251 = vpack.c.b16 %v247, %v243
    %v252 = vpack.c.b16 %v248, %v244
    %v253 = vpack.c.b16 %v249, %v245
    %v254 = vpack.c.b16 %v250, %v246
    %v260 = vsel %vm143, %v234, 0
    %262 = vmatprep.subr.bf16.mxu0 %v252
    %263 = vmatpush1.bf16.msra.mxu0 %v251
    %264 = vmatprep.subr.bf16.mxu0 0
    %265 = vmatpush1.bf16.msra.mxu0 0
    %266 = vmatprep.subr.bf16.mxu0 0
    %267 = vmatpush1.bf16.msra.mxu0 0
    %268 = vmatprep.subr.bf16.mxu0 0
    %269 = vmatpush1.bf16.msra.mxu0 0
    %270 = vmatprep.subr.bf16.mxu0 0
    %271 = vmatpush1.bf16.msra.mxu0 0
    %272 = vmatprep.subr.bf16.mxu0 0
    %273 = vmatpush1.bf16.msra.mxu0 0
    %274 = vmatprep.subr.bf16.mxu0 0
    %275 = vmatpush1.bf16.msra.mxu0 0
    %276 = vmatprep.subr.bf16.mxu0 0
    %277 = vmatpush1.bf16.msra.mxu0 0
    %278 = vmatprep.subr.bf16.mxu0 0
    %279 = vmatpush1.bf16.msra.mxu0 0
    %280 = vmatprep.subr.bf16.mxu0 0
    %281 = vmatpush1.bf16.msra.mxu0 0
    %282 = vmatprep.subr.bf16.mxu0 0
    %283 = vmatpush1.bf16.msra.mxu0 0
    %284 = vmatprep.subr.bf16.mxu0 0
    %285 = vmatpush1.bf16.msra.mxu0 0
    %286 = vmatprep.subr.bf16.mxu0 0
    %287 = vmatpush1.bf16.msra.mxu0 0
    %288 = vmatprep.subr.bf16.mxu0 0
    %289 = vmatpush1.bf16.msra.mxu0 0
    %290 = vmatprep.subr.bf16.mxu0 0
    %291 = vmatpush1.bf16.msra.mxu0 0
    %292 = vmatprep.subr.bf16.mxu0 0
    %293 = vmatpush1.bf16.msra.mxu0 0
    %294 = vmatprep.mubr.bf16.mxu0 0
    %295 = vmatmul.mubr.bf16.gmra.mrb[0].mxu0 %v260
    %v296 = vpop.f32.mrb[0].mxu0
    %v297 = vadd.f32 %v101, %v296
    %v298 = vpop.f32.mrb[0].mxu0
    %v299 = vadd.f32 %v105, %v298
    %v300 = vpop.f32.mrb[0].mxu0
    %v301 = vpop.f32.mrb[0].mxu0
    %302 = vdwg.mxu0
    %303 = vmatprep.subr.bf16.mxu0 %v254
    %304 = vmatpush1.bf16.msra.mxu0 %v253
    %305 = vmatprep.subr.bf16.mxu0 0
    %306 = vmatpush1.bf16.msra.mxu0 0
    %307 = vmatprep.subr.bf16.mxu0 0
    %308 = vmatpush1.bf16.msra.mxu0 0
    %309 = vmatprep.subr.bf16.mxu0 0
    %310 = vmatpush1.bf16.msra.mxu0 0
    %311 = vmatprep.subr.bf16.mxu0 0
    %312 = vmatpush1.bf16.msra.mxu0 0
    %313 = vmatprep.subr.bf16.mxu0 0
    %314 = vmatpush1.bf16.msra.mxu0 0
    %315 = vmatprep.subr.bf16.mxu0 0
    %316 = vmatpush1.bf16.msra.mxu0 0
    %317 = vmatprep.subr.bf16.mxu0 0
    %318 = vmatpush1.bf16.msra.mxu0 0
    %319 = vmatprep.subr.bf16.mxu0 0
    %320 = vmatpush1.bf16.msra.mxu0 0
    %321 = vmatprep.subr.bf16.mxu0 0
    %322 = vmatpush1.bf16.msra.mxu0 0
    %323 = vmatprep.subr.bf16.mxu0 0
    %324 = vmatpush1.bf16.msra.mxu0 0
    %325 = vmatprep.subr.bf16.mxu0 0
    %326 = vmatpush1.bf16.msra.mxu0 0
    %327 = vmatprep.subr.bf16.mxu0 0
    %328 = vmatpush1.bf16.msra.mxu0 0
    %329 = vmatprep.subr.bf16.mxu0 0
    %330 = vmatpush1.bf16.msra.mxu0 0
    %331 = vmatprep.subr.bf16.mxu0 0
    %332 = vmatpush1.bf16.msra.mxu0 0
    %333 = vmatprep.subr.bf16.mxu0 0
    %334 = vmatpush1.bf16.msra.mxu0 0
    %335 = vmatprep.mubr.bf16.mxu0 0
    %336 = vmatmul.mubr.bf16.gmra.mrb[0].mxu0 %v260
    %v337 = vpop.f32.mrb[0].mxu0
    %v338 = vadd.f32 %v109, %v337
    %v339 = vpop.f32.mrb[0].mxu0
    %v340 = vadd.f32 %v113, %v339
    %v341 = vpop.f32.mrb[0].mxu0
    %v342 = vpop.f32.mrb[0].mxu0
    %343 = vdwg.mxu0
    %s344 = scalar_lea.vmem [#allocation2], 32
    %345 = vst [vmem:[%s344] sm:$0xff] %v297
    %346 = vst [vmem:[%s344 + $0x8] sm:$0xff] %v299
    %347 = vst [vmem:[%s344 + $0x10] sm:$0xff] %v338
    %348 = vst [vmem:[%s344 + $0x18] sm:$0xff] %v340
    %s349 = scalar_lea.vmem [#allocation3], 8
    %v350 = vld [vmem:[%s349] sm:$0xf]
    %v351 = vld [vmem:[#allocation6] sm:$0xff]
    %v352 = vld [vmem:[#allocation6 + $0x8] sm:$0xff]
    %v353 = vld [vmem:[#allocation6 + $0x10] sm:$0xff]
    %v354 = vld [vmem:[#allocation6 + $0x18] sm:$0xff]
    %v359 = vunpack.c.l.b16 %v351
    %v360 = vunpack.c.h.b16 %v351
    %v361 = vunpack.c.l.b16 %v352
    %v362 = vunpack.c.h.b16 %v352
    %v363 = vunpack.c.l.b16 %v353
    %v364 = vunpack.c.h.b16 %v353
    %v365 = vunpack.c.l.b16 %v354
    %v366 = vunpack.c.h.b16 %v354
    %v367 = vpack.c.b16 %v363, %v359
    %v368 = vpack.c.b16 %v364, %v360
    %v369 = vpack.c.b16 %v365, %v361
    %v370 = vpack.c.b16 %v366, %v362
    %v376 = vsel %vm143, %v350, 0
    %378 = vmatprep.subr.bf16.mxu0 %v368
    %379 = vmatpush1.bf16.msra.mxu0 %v367
    %380 = vmatprep.subr.bf16.mxu0 0
    %381 = vmatpush1.bf16.msra.mxu0 0
    %382 = vmatprep.subr.bf16.mxu0 0
    %383 = vmatpush1.bf16.msra.mxu0 0
    %384 = vmatprep.subr.bf16.mxu0 0
    %385 = vmatpush1.bf16.msra.mxu0 0
    %386 = vmatprep.subr.bf16.mxu0 0
    %387 = vmatpush1.bf16.msra.mxu0 0
    %388 = vmatprep.subr.bf16.mxu0 0
    %389 = vmatpush1.bf16.msra.mxu0 0
    %390 = vmatprep.subr.bf16.mxu0 0
    %391 = vmatpush1.bf16.msra.mxu0 0
    %392 = vmatprep.subr.bf16.mxu0 0
    %393 = vmatpush1.bf16.msra.mxu0 0
    %394 = vmatprep.subr.bf16.mxu0 0
    %395 = vmatpush1.bf16.msra.mxu0 0
    %396 = vmatprep.subr.bf16.mxu0 0
    %397 = vmatpush1.bf16.msra.mxu0 0
    %398 = vmatprep.subr.bf16.mxu0 0
    %399 = vmatpush1.bf16.msra.mxu0 0
    %400 = vmatprep.subr.bf16.mxu0 0
    %401 = vmatpush1.bf16.msra.mxu0 0
    %402 = vmatprep.subr.bf16.mxu0 0
    %403 = vmatpush1.bf16.msra.mxu0 0
    %404 = vmatprep.subr.bf16.mxu0 0
    %405 = vmatpush1.bf16.msra.mxu0 0
    %406 = vmatprep.subr.bf16.mxu0 0
    %407 = vmatpush1.bf16.msra.mxu0 0
    %408 = vmatprep.subr.bf16.mxu0 0
    %409 = vmatpush1.bf16.msra.mxu0 0
    %410 = vmatprep.mubr.bf16.mxu0 0
    %411 = vmatmul.mubr.bf16.gmra.mrb[0].mxu0 %v376
    %v412 = vpop.f32.mrb[0].mxu0
    %v413 = vadd.f32 %v101, %v412
    %v414 = vpop.f32.mrb[0].mxu0
    %v415 = vadd.f32 %v105, %v414
    %v416 = vpop.f32.mrb[0].mxu0
    %v417 = vpop.f32.mrb[0].mxu0
    %418 = vdwg.mxu0
    %419 = vmatprep.subr.bf16.mxu0 %v370
    %420 = vmatpush1.bf16.msra.mxu0 %v369
    %421 = vmatprep.subr.bf16.mxu0 0
    %422 = vmatpush1.bf16.msra.mxu0 0
    %423 = vmatprep.subr.bf16.mxu0 0
    %424 = vmatpush1.bf16.msra.mxu0 0
    %425 = vmatprep.subr.bf16.mxu0 0
    %426 = vmatpush1.bf16.msra.mxu0 0
    %427 = vmatprep.subr.bf16.mxu0 0
    %428 = vmatpush1.bf16.msra.mxu0 0
    %429 = vmatprep.subr.bf16.mxu0 0
    %430 = vmatpush1.bf16.msra.mxu0 0
    %431 = vmatprep.subr.bf16.mxu0 0
    %432 = vmatpush1.bf16.msra.mxu0 0
    %433 = vmatprep.subr.bf16.mxu0 0
    %434 = vmatpush1.bf16.msra.mxu0 0
    %435 = vmatprep.subr.bf16.mxu0 0
    %436 = vmatpush1.bf16.msra.mxu0 0
    %437 = vmatprep.subr.bf16.mxu0 0
    %438 = vmatpush1.bf16.msra.mxu0 0
    %439 = vmatprep.subr.bf16.mxu0 0
    %440 = vmatpush1.bf16.msra.mxu0 0
    %441 = vmatprep.subr.bf16.mxu0 0
    %442 = vmatpush1.bf16.msra.mxu0 0
    %443 = vmatprep.subr.bf16.mxu0 0
    %444 = vmatpush1.bf16.msra.mxu0 0
    %445 = vmatprep.subr.bf16.mxu0 0
    %446 = vmatpush1.bf16.msra.mxu0 0
    %447 = vmatprep.subr.bf16.mxu0 0
    %448 = vmatpush1.bf16.msra.mxu0 0
    %449 = vmatprep.subr.bf16.mxu0 0
    %450 = vmatpush1.bf16.msra.mxu0 0
    %451 = vmatprep.mubr.bf16.mxu0 0
    %452 = vmatmul.mubr.bf16.gmra.mrb[0].mxu0 %v376
    %v453 = vpop.f32.mrb[0].mxu0
    %v454 = vadd.f32 %v109, %v453
    %v455 = vpop.f32.mrb[0].mxu0
    %v456 = vadd.f32 %v113, %v455
    %v457 = vpop.f32.mrb[0].mxu0
    %v458 = vpop.f32.mrb[0].mxu0
    %459 = vdwg.mxu0
    %s460 = scalar_lea.vmem [#allocation2], 64
    %461 = vst [vmem:[%s460] sm:$0xff] %v413
    %462 = vst [vmem:[%s460 + $0x8] sm:$0xff] %v415
    %463 = vst [vmem:[%s460 + $0x10] sm:$0xff] %v454
    %464 = vst [vmem:[%s460 + $0x18] sm:$0xff] %v456
    %s465 = scalar_lea.vmem [#allocation3], 12
    %v466 = vld [vmem:[%s465] sm:$0xf]
    %v467 = vld [vmem:[#allocation6] sm:$0xff]
    %v468 = vld [vmem:[#allocation6 + $0x8] sm:$0xff]
    %v469 = vld [vmem:[#allocation6 + $0x10] sm:$0xff]
    %v470 = vld [vmem:[#allocation6 + $0x18] sm:$0xff]
    %v475 = vunpack.c.l.b16 %v467
    %v476 = vunpack.c.h.b16 %v467
    %v477 = vunpack.c.l.b16 %v468
    %v478 = vunpack.c.h.b16 %v468
    %v479 = vunpack.c.l.b16 %v469
    %v480 = vunpack.c.h.b16 %v469
    %v481 = vunpack.c.l.b16 %v470
    %v482 = vunpack.c.h.b16 %v470
    %v483 = vpack.c.b16 %v479, %v475
    %v484 = vpack.c.b16 %v480, %v476
    %v485 = vpack.c.b16 %v481, %v477
    %v486 = vpack.c.b16 %v482, %v478
    %v492 = vsel %vm143, %v466, 0
    %494 = vmatprep.subr.bf16.mxu0 %v484
    %495 = vmatpush1.bf16.msra.mxu0 %v483
    %496 = vmatprep.subr.bf16.mxu0 0
    %497 = vmatpush1.bf16.msra.mxu0 0
    %498 = vmatprep.subr.bf16.mxu0 0
    %499 = vmatpush1.bf16.msra.mxu0 0
    %500 = vmatprep.subr.bf16.mxu0 0
    %501 = vmatpush1.bf16.msra.mxu0 0
    %502 = vmatprep.subr.bf16.mxu0 0
    %503 = vmatpush1.bf16.msra.mxu0 0
    %504 = vmatprep.subr.bf16.mxu0 0
    %505 = vmatpush1.bf16.msra.mxu0 0
    %506 = vmatprep.subr.bf16.mxu0 0
    %507 = vmatpush1.bf16.msra.mxu0 0
    %508 = vmatprep.subr.bf16.mxu0 0
    %509 = vmatpush1.bf16.msra.mxu0 0
    %510 = vmatprep.subr.bf16.mxu0 0
    %511 = vmatpush1.bf16.msra.mxu0 0
    %512 = vmatprep.subr.bf16.mxu0 0
    %513 = vmatpush1.bf16.msra.mxu0 0
    %514 = vmatprep.subr.bf16.mxu0 0
    %515 = vmatpush1.bf16.msra.mxu0 0
    %516 = vmatprep.subr.bf16.mxu0 0
    %517 = vmatpush1.bf16.msra.mxu0 0
    %518 = vmatprep.subr.bf16.mxu0 0
    %519 = vmatpush1.bf16.msra.mxu0 0
    %520 = vmatprep.subr.bf16.mxu0 0
    %521 = vmatpush1.bf16.msra.mxu0 0
    %522 = vmatprep.subr.bf16.mxu0 0
    %523 = vmatpush1.bf16.msra.mxu0 0
    %524 = vmatprep.subr.bf16.mxu0 0
    %525 = vmatpush1.bf16.msra.mxu0 0
    %526 = vmatprep.mubr.bf16.mxu0 0
    %527 = vmatmul.mubr.bf16.gmra.mrb[0].mxu0 %v492
    %v528 = vpop.f32.mrb[0].mxu0
    %v529 = vadd.f32 %v101, %v528
    %v530 = vpop.f32.mrb[0].mxu0
    %v531 = vadd.f32 %v105, %v530
    %v532 = vpop.f32.mrb[0].mxu0
    %v533 = vpop.f32.mrb[0].mxu0
    %534 = vdwg.mxu0
    %535 = vmatprep.subr.bf16.mxu0 %v486
    %536 = vmatpush1.bf16.msra.mxu0 %v485
    %537 = vmatprep.subr.bf16.mxu0 0
    %538 = vmatpush1.bf16.msra.mxu0 0
    %539 = vmatprep.subr.bf16.mxu0 0
    %540 = vmatpush1.bf16.msra.mxu0 0
    %541 = vmatprep.subr.bf16.mxu0 0
    %542 = vmatpush1.bf16.msra.mxu0 0
    %543 = vmatprep.subr.bf16.mxu0 0
    %544 = vmatpush1.bf16.msra.mxu0 0
    %545 = vmatprep.subr.bf16.mxu0 0
    %546 = vmatpush1.bf16.msra.mxu0 0
    %547 = vmatprep.subr.bf16.mxu0 0
    %548 = vmatpush1.bf16.msra.mxu0 0
    %549 = vmatprep.subr.bf16.mxu0 0
    %550 = vmatpush1.bf16.msra.mxu0 0
    %551 = vmatprep.subr.bf16.mxu0 0
    %552 = vmatpush1.bf16.msra.mxu0 0
    %553 = vmatprep.subr.bf16.mxu0 0
    %554 = vmatpush1.bf16.msra.mxu0 0
    %555 = vmatprep.subr.bf16.mxu0 0
    %556 = vmatpush1.bf16.msra.mxu0 0
    %557 = vmatprep.subr.bf16.mxu0 0
    %558 = vmatpush1.bf16.msra.mxu0 0
    %559 = vmatprep.subr.bf16.mxu0 0
    %560 = vmatpush1.bf16.msra.mxu0 0
    %561 = vmatprep.subr.bf16.mxu0 0
    %562 = vmatpush1.bf16.msra.mxu0 0
    %563 = vmatprep.subr.bf16.mxu0 0
    %564 = vmatpush1.bf16.msra.mxu0 0
    %565 = vmatprep.subr.bf16.mxu0 0
    %566 = vmatpush1.bf16.msra.mxu0 0
    %567 = vmatprep.mubr.bf16.mxu0 0
    %568 = vmatmul.mubr.bf16.gmra.mrb[0].mxu0 %v492
    %v569 = vpop.f32.mrb[0].mxu0
    %v570 = vadd.f32 %v109, %v569
    %v571 = vpop.f32.mrb[0].mxu0
    %v572 = vadd.f32 %v113, %v571
    %v573 = vpop.f32.mrb[0].mxu0
    %v574 = vpop.f32.mrb[0].mxu0
    %575 = vdwg.mxu0
    %s576 = scalar_lea.vmem [#allocation2], 96
    %577 = vst [vmem:[%s576] sm:$0xff] %v529
    %578 = vst [vmem:[%s576 + $0x8] sm:$0xff] %v531
    %579 = vst [vmem:[%s576 + $0x10] sm:$0xff] %v570
    %580 = vst [vmem:[%s576 + $0x18] sm:$0xff] %v572
    %s581 = scalar_lea.vmem [#allocation3], 16
    %v582 = vld [vmem:[%s581] sm:$0xf]
    %v583 = vld [vmem:[#allocation6] sm:$0xff]
    %v584 = vld [vmem:[#allocation6 + $0x8] sm:$0xff]
    %v585 = vld [vmem:[#allocation6 + $0x10] sm:$0xff]
    %v586 = vld [vmem:[#allocation6 + $0x18] sm:$0xff]
    %v591 = vunpack.c.l.b16 %v583
    %v592 = vunpack.c.h.b16 %v583
    %v593 = vunpack.c.l.b16 %v584
    %v594 = vunpack.c.h.b16 %v584
    %v595 = vunpack.c.l.b16 %v585
    %v596 = vunpack.c.h.b16 %v585
    %v597 = vunpack.c.l.b16 %v586
    %v598 = vunpack.c.h.b16 %v586
    %v599 = vpack.c.b16 %v595, %v591
    %v600 = vpack.c.b16 %v596, %v592
    %v601 = vpack.c.b16 %v597, %v593
    %v602 = vpack.c.b16 %v598, %v594
    %v608 = vsel %vm143, %v582, 0
    %610 = vmatprep.subr.bf16.mxu0 %v600
    %611 = vmatpush1.bf16.msra.mxu0 %v599
    %612 = vmatprep.subr.bf16.mxu0 0
    %613 = vmatpush1.bf16.msra.mxu0 0
    %614 = vmatprep.subr.bf16.mxu0 0
    %615 = vmatpush1.bf16.msra.mxu0 0
    %616 = vmatprep.subr.bf16.mxu0 0
    %617 = vmatpush1.bf16.msra.mxu0 0
    %618 = vmatprep.subr.bf16.mxu0 0
    %619 = vmatpush1.bf16.msra.mxu0 0
    %620 = vmatprep.subr.bf16.mxu0 0
    %621 = vmatpush1.bf16.msra.mxu0 0
    %622 = vmatprep.subr.bf16.mxu0 0
    %623 = vmatpush1.bf16.msra.mxu0 0
    %624 = vmatprep.subr.bf16.mxu0 0
    %625 = vmatpush1.bf16.msra.mxu0 0
    %626 = vmatprep.subr.bf16.mxu0 0
    %627 = vmatpush1.bf16.msra.mxu0 0
    %628 = vmatprep.subr.bf16.mxu0 0
    %629 = vmatpush1.bf16.msra.mxu0 0
    %630 = vmatprep.subr.bf16.mxu0 0
    %631 = vmatpush1.bf16.msra.mxu0 0
    %632 = vmatprep.subr.bf16.mxu0 0
    %633 = vmatpush1.bf16.msra.mxu0 0
    %634 = vmatprep.subr.bf16.mxu0 0
    %635 = vmatpush1.bf16.msra.mxu0 0
    %636 = vmatprep.subr.bf16.mxu0 0
    %637 = vmatpush1.bf16.msra.mxu0 0
    %638 = vmatprep.subr.bf16.mxu0 0
    %639 = vmatpush1.bf16.msra.mxu0 0
    %640 = vmatprep.subr.bf16.mxu0 0
    %641 = vmatpush1.bf16.msra.mxu0 0
    %642 = vmatprep.mubr.bf16.mxu0 0
    %643 = vmatmul.mubr.bf16.gmra.mrb[0].mxu0 %v608
    %v644 = vpop.f32.mrb[0].mxu0
    %v645 = vadd.f32 %v101, %v644
    %v646 = vpop.f32.mrb[0].mxu0
    %v647 = vadd.f32 %v105, %v646
    %v648 = vpop.f32.mrb[0].mxu0
    %v649 = vpop.f32.mrb[0].mxu0
    %650 = vdwg.mxu0
    %651 = vmatprep.subr.bf16.mxu0 %v602
    %652 = vmatpush1.bf16.msra.mxu0 %v601
    %653 = vmatprep.subr.bf16.mxu0 0
    %654 = vmatpush1.bf16.msra.mxu0 0
    %655 = vmatprep.subr.bf16.mxu0 0
    %656 = vmatpush1.bf16.msra.mxu0 0
    %657 = vmatprep.subr.bf16.mxu0 0
    %658 = vmatpush1.bf16.msra.mxu0 0
    %659 = vmatprep.subr.bf16.mxu0 0
    %660 = vmatpush1.bf16.msra.mxu0 0
    %661 = vmatprep.subr.bf16.mxu0 0
    %662 = vmatpush1.bf16.msra.mxu0 0
    %663 = vmatprep.subr.bf16.mxu0 0
    %664 = vmatpush1.bf16.msra.mxu0 0
    %665 = vmatprep.subr.bf16.mxu0 0
    %666 = vmatpush1.bf16.msra.mxu0 0
    %667 = vmatprep.subr.bf16.mxu0 0
    %668 = vmatpush1.bf16.msra.mxu0 0
    %669 = vmatprep.subr.bf16.mxu0 0
    %670 = vmatpush1.bf16.msra.mxu0 0
    %671 = vmatprep.subr.bf16.mxu0 0
    %672 = vmatpush1.bf16.msra.mxu0 0
    %673 = vmatprep.subr.bf16.mxu0 0
    %674 = vmatpush1.bf16.msra.mxu0 0
    %675 = vmatprep.subr.bf16.mxu0 0
    %676 = vmatpush1.bf16.msra.mxu0 0
    %677 = vmatprep.subr.bf16.mxu0 0
    %678 = vmatpush1.bf16.msra.mxu0 0
    %679 = vmatprep.subr.bf16.mxu0 0
    %680 = vmatpush1.bf16.msra.mxu0 0
    %681 = vmatprep.subr.bf16.mxu0 0
    %682 = vmatpush1.bf16.msra.mxu0 0
    %683 = vmatprep.mubr.bf16.mxu0 0
    %684 = vmatmul.mubr.bf16.gmra.mrb[0].mxu0 %v608
    %v685 = vpop.f32.mrb[0].mxu0
    %v686 = vadd.f32 %v109, %v685
    %v687 = vpop.f32.mrb[0].mxu0
    %v688 = vadd.f32 %v113, %v687
    %v689 = vpop.f32.mrb[0].mxu0
    %v690 = vpop.f32.mrb[0].mxu0
    %691 = vdwg.mxu0
    %s692 = scalar_lea.vmem [#allocation2], 128
    %693 = vst [vmem:[%s692] sm:$0xff] %v645
    %694 = vst [vmem:[%s692 + $0x8] sm:$0xff] %v647
    %695 = vst [vmem:[%s692 + $0x10] sm:$0xff] %v686
    %696 = vst [vmem:[%s692 + $0x18] sm:$0xff] %v688
    %s697 = scalar_lea.vmem [#allocation3], 20
    %v698 = vld [vmem:[%s697] sm:$0xf]
    %v699 = vld [vmem:[#allocation6] sm:$0xff]
    %v700 = vld [vmem:[#allocation6 + $0x8] sm:$0xff]
    %v701 = vld [vmem:[#allocation6 + $0x10] sm:$0xff]
    %v702 = vld [vmem:[#allocation6 + $0x18] sm:$0xff]
    %v707 = vunpack.c.l.b16 %v699
    %v708 = vunpack.c.h.b16 %v699
    %v709 = vunpack.c.l.b16 %v700
    %v710 = vunpack.c.h.b16 %v700
    %v711 = vunpack.c.l.b16 %v701
    %v712 = vunpack.c.h.b16 %v701
    %v713 = vunpack.c.l.b16 %v702
    %v714 = vunpack.c.h.b16 %v702
    %v715 = vpack.c.b16 %v711, %v707
    %v716 = vpack.c.b16 %v712, %v708
    %v717 = vpack.c.b16 %v713, %v709
    %v718 = vpack.c.b16 %v714, %v710
    %v724 = vsel %vm143, %v698, 0
    %726 = vmatprep.subr.bf16.mxu0 %v716
    %727 = vmatpush1.bf16.msra.mxu0 %v715
    %728 = vmatprep.subr.bf16.mxu0 0
    %729 = vmatpush1.bf16.msra.mxu0 0
    %730 = vmatprep.subr.bf16.mxu0 0
    %731 = vmatpush1.bf16.msra.mxu0 0
    %732 = vmatprep.subr.bf16.mxu0 0
    %733 = vmatpush1.bf16.msra.mxu0 0
    %734 = vmatprep.subr.bf16.mxu0 0
    %735 = vmatpush1.bf16.msra.mxu0 0
    %736 = vmatprep.subr.bf16.mxu0 0
    %737 = vmatpush1.bf16.msra.mxu0 0
    %738 = vmatprep.subr.bf16.mxu0 0
    %739 = vmatpush1.bf16.msra.mxu0 0
    %740 = vmatprep.subr.bf16.mxu0 0
    %741 = vmatpush1.bf16.msra.mxu0 0
    %742 = vmatprep.subr.bf16.mxu0 0
    %743 = vmatpush1.bf16.msra.mxu0 0
    %744 = vmatprep.subr.bf16.mxu0 0
    %745 = vmatpush1.bf16.msra.mxu0 0
    %746 = vmatprep.subr.bf16.mxu0 0
    %747 = vmatpush1.bf16.msra.mxu0 0
    %748 = vmatprep.subr.bf16.mxu0 0
    %749 = vmatpush1.bf16.msra.mxu0 0
    %750 = vmatprep.subr.bf16.mxu0 0
    %751 = vmatpush1.bf16.msra.mxu0 0
    %752 = vmatprep.subr.bf16.mxu0 0
    %753 = vmatpush1.bf16.msra.mxu0 0
    %754 = vmatprep.subr.bf16.mxu0 0
    %755 = vmatpush1.bf16.msra.mxu0 0
    %756 = vmatprep.subr.bf16.mxu0 0
    %757 = vmatpush1.bf16.msra.mxu0 0
    %758 = vmatprep.mubr.bf16.mxu0 0
    %759 = vmatmul.mubr.bf16.gmra.mrb[0].mxu0 %v724
    %v760 = vpop.f32.mrb[0].mxu0
    %v761 = vadd.f32 %v101, %v760
    %v762 = vpop.f32.mrb[0].mxu0
    %v763 = vadd.f32 %v105, %v762
    %v764 = vpop.f32.mrb[0].mxu0
    %v765 = vpop.f32.mrb[0].mxu0
    %766 = vdwg.mxu0
    %767 = vmatprep.subr.bf16.mxu0 %v718
    %768 = vmatpush1.bf16.msra.mxu0 %v717
    %769 = vmatprep.subr.bf16.mxu0 0
    %770 = vmatpush1.bf16.msra.mxu0 0
    %771 = vmatprep.subr.bf16.mxu0 0
    %772 = vmatpush1.bf16.msra.mxu0 0
    %773 = vmatprep.subr.bf16.mxu0 0
    %774 = vmatpush1.bf16.msra.mxu0 0
    %775 = vmatprep.subr.bf16.mxu0 0
    %776 = vmatpush1.bf16.msra.mxu0 0
    %777 = vmatprep.subr.bf16.mxu0 0
    %778 = vmatpush1.bf16.msra.mxu0 0
    %779 = vmatprep.subr.bf16.mxu0 0
    %780 = vmatpush1.bf16.msra.mxu0 0
    %781 = vmatprep.subr.bf16.mxu0 0
    %782 = vmatpush1.bf16.msra.mxu0 0
    %783 = vmatprep.subr.bf16.mxu0 0
    %784 = vmatpush1.bf16.msra.mxu0 0
    %785 = vmatprep.subr.bf16.mxu0 0
    %786 = vmatpush1.bf16.msra.mxu0 0
    %787 = vmatprep.subr.bf16.mxu0 0
    %788 = vmatpush1.bf16.msra.mxu0 0
    %789 = vmatprep.subr.bf16.mxu0 0
    %790 = vmatpush1.bf16.msra.mxu0 0
    %791 = vmatprep.subr.bf16.mxu0 0
    %792 = vmatpush1.bf16.msra.mxu0 0
    %793 = vmatprep.subr.bf16.mxu0 0
    %794 = vmatpush1.bf16.msra.mxu0 0
    %795 = vmatprep.subr.bf16.mxu0 0
    %796 = vmatpush1.bf16.msra.mxu0 0
    %797 = vmatprep.subr.bf16.mxu0 0
    %798 = vmatpush1.bf16.msra.mxu0 0
    %799 = vmatprep.mubr.bf16.mxu0 0
    %800 = vmatmul.mubr.bf16.gmra.mrb[0].mxu0 %v724
    %v801 = vpop.f32.mrb[0].mxu0
    %v802 = vadd.f32 %v109, %v801
    %v803 = vpop.f32.mrb[0].mxu0
    %v804 = vadd.f32 %v113, %v803
    %v805 = vpop.f32.mrb[0].mxu0
    %v806 = vpop.f32.mrb[0].mxu0
    %807 = vdwg.mxu0
    %s808 = scalar_lea.vmem [#allocation2], 160
    %809 = vst [vmem:[%s808] sm:$0xff] %v761
    %810 = vst [vmem:[%s808 + $0x8] sm:$0xff] %v763
    %811 = vst [vmem:[%s808 + $0x10] sm:$0xff] %v802
    %812 = vst [vmem:[%s808 + $0x18] sm:$0xff] %v804
    %s813 = scalar_lea.vmem [#allocation3], 24
    %v814 = vld [vmem:[%s813] sm:$0xf]
    %v815 = vld [vmem:[#allocation6] sm:$0xff]
    %v816 = vld [vmem:[#allocation6 + $0x8] sm:$0xff]
    %v817 = vld [vmem:[#allocation6 + $0x10] sm:$0xff]
    %v818 = vld [vmem:[#allocation6 + $0x18] sm:$0xff]
    %v823 = vunpack.c.l.b16 %v815
    %v824 = vunpack.c.h.b16 %v815
    %v825 = vunpack.c.l.b16 %v816
    %v826 = vunpack.c.h.b16 %v816
    %v827 = vunpack.c.l.b16 %v817
    %v828 = vunpack.c.h.b16 %v817
    %v829 = vunpack.c.l.b16 %v818
    %v830 = vunpack.c.h.b16 %v818
    %v831 = vpack.c.b16 %v827, %v823
    %v832 = vpack.c.b16 %v828, %v824
    %v833 = vpack.c.b16 %v829, %v825
    %v834 = vpack.c.b16 %v830, %v826
    %v840 = vsel %vm143, %v814, 0
    %842 = vmatprep.subr.bf16.mxu0 %v832
    %843 = vmatpush1.bf16.msra.mxu0 %v831
    %844 = vmatprep.subr.bf16.mxu0 0
    %845 = vmatpush1.bf16.msra.mxu0 0
    %846 = vmatprep.subr.bf16.mxu0 0
    %847 = vmatpush1.bf16.msra.mxu0 0
    %848 = vmatprep.subr.bf16.mxu0 0
    %849 = vmatpush1.bf16.msra.mxu0 0
    %850 = vmatprep.subr.bf16.mxu0 0
    %851 = vmatpush1.bf16.msra.mxu0 0
    %852 = vmatprep.subr.bf16.mxu0 0
    %853 = vmatpush1.bf16.msra.mxu0 0
    %854 = vmatprep.subr.bf16.mxu0 0
    %855 = vmatpush1.bf16.msra.mxu0 0
    %856 = vmatprep.subr.bf16.mxu0 0
    %857 = vmatpush1.bf16.msra.mxu0 0
    %858 = vmatprep.subr.bf16.mxu0 0
    %859 = vmatpush1.bf16.msra.mxu0 0
    %860 = vmatprep.subr.bf16.mxu0 0
    %861 = vmatpush1.bf16.msra.mxu0 0
    %862 = vmatprep.subr.bf16.mxu0 0
    %863 = vmatpush1.bf16.msra.mxu0 0
    %864 = vmatprep.subr.bf16.mxu0 0
    %865 = vmatpush1.bf16.msra.mxu0 0
    %866 = vmatprep.subr.bf16.mxu0 0
    %867 = vmatpush1.bf16.msra.mxu0 0
    %868 = vmatprep.subr.bf16.mxu0 0
    %869 = vmatpush1.bf16.msra.mxu0 0
    %870 = vmatprep.subr.bf16.mxu0 0
    %871 = vmatpush1.bf16.msra.mxu0 0
    %872 = vmatprep.subr.bf16.mxu0 0
    %873 = vmatpush1.bf16.msra.mxu0 0
    %874 = vmatprep.mubr.bf16.mxu0 0
    %875 = vmatmul.mubr.bf16.gmra.mrb[0].mxu0 %v840
    %v876 = vpop.f32.mrb[0].mxu0
    %v877 = vadd.f32 %v101, %v876
    %v878 = vpop.f32.mrb[0].mxu0
    %v879 = vadd.f32 %v105, %v878
    %v880 = vpop.f32.mrb[0].mxu0
    %v881 = vpop.f32.mrb[0].mxu0
    %882 = vdwg.mxu0
    %883 = vmatprep.subr.bf16.mxu0 %v834
    %884 = vmatpush1.bf16.msra.mxu0 %v833
    %885 = vmatprep.subr.bf16.mxu0 0
    %886 = vmatpush1.bf16.msra.mxu0 0
    %887 = vmatprep.subr.bf16.mxu0 0
    %888 = vmatpush1.bf16.msra.mxu0 0
    %889 = vmatprep.subr.bf16.mxu0 0
    %890 = vmatpush1.bf16.msra.mxu0 0
    %891 = vmatprep.subr.bf16.mxu0 0
    %892 = vmatpush1.bf16.msra.mxu0 0
    %893 = vmatprep.subr.bf16.mxu0 0
    %894 = vmatpush1.bf16.msra.mxu0 0
    %895 = vmatprep.subr.bf16.mxu0 0
    %896 = vmatpush1.bf16.msra.mxu0 0
    %897 = vmatprep.subr.bf16.mxu0 0
    %898 = vmatpush1.bf16.msra.mxu0 0
    %899 = vmatprep.subr.bf16.mxu0 0
    %900 = vmatpush1.bf16.msra.mxu0 0
    %901 = vmatprep.subr.bf16.mxu0 0
    %902 = vmatpush1.bf16.msra.mxu0 0
    %903 = vmatprep.subr.bf16.mxu0 0
    %904 = vmatpush1.bf16.msra.mxu0 0
    %905 = vmatprep.subr.bf16.mxu0 0
    %906 = vmatpush1.bf16.msra.mxu0 0
    %907 = vmatprep.subr.bf16.mxu0 0
    %908 = vmatpush1.bf16.msra.mxu0 0
    %909 = vmatprep.subr.bf16.mxu0 0
    %910 = vmatpush1.bf16.msra.mxu0 0
    %911 = vmatprep.subr.bf16.mxu0 0
    %912 = vmatpush1.bf16.msra.mxu0 0
    %913 = vmatprep.subr.bf16.mxu0 0
    %914 = vmatpush1.bf16.msra.mxu0 0
    %915 = vmatprep.mubr.bf16.mxu0 0
    %916 = vmatmul.mubr.bf16.gmra.mrb[0].mxu0 %v840
    %v917 = vpop.f32.mrb[0].mxu0
    %v918 = vadd.f32 %v109, %v917
    %v919 = vpop.f32.mrb[0].mxu0
    %v920 = vadd.f32 %v113, %v919
    %v921 = vpop.f32.mrb[0].mxu0
    %v922 = vpop.f32.mrb[0].mxu0
    %923 = vdwg.mxu0
    %s924 = scalar_lea.vmem [#allocation2], 192
    %925 = vst [vmem:[%s924] sm:$0xff] %v877
    %926 = vst [vmem:[%s924 + $0x8] sm:$0xff] %v879
    %927 = vst [vmem:[%s924 + $0x10] sm:$0xff] %v918
    %928 = vst [vmem:[%s924 + $0x18] sm:$0xff] %v920
    %s929 = scalar_lea.vmem [#allocation3], 28
    %v930 = vld [vmem:[%s929] sm:$0xf]
    %v931 = vld [vmem:[#allocation6] sm:$0xff]
    %v932 = vld [vmem:[#allocation6 + $0x8] sm:$0xff]
    %v933 = vld [vmem:[#allocation6 + $0x10] sm:$0xff]
    %v934 = vld [vmem:[#allocation6 + $0x18] sm:$0xff]
    %v939 = vunpack.c.l.b16 %v931
    %v940 = vunpack.c.h.b16 %v931
    %v941 = vunpack.c.l.b16 %v932
    %v942 = vunpack.c.h.b16 %v932
    %v943 = vunpack.c.l.b16 %v933
    %v944 = vunpack.c.h.b16 %v933
    %v945 = vunpack.c.l.b16 %v934
    %v946 = vunpack.c.h.b16 %v934
    %v947 = vpack.c.b16 %v943, %v939
    %v948 = vpack.c.b16 %v944, %v940
    %v949 = vpack.c.b16 %v945, %v941
    %v950 = vpack.c.b16 %v946, %v942
    %v956 = vsel %vm143, %v930, 0
    %958 = vmatprep.subr.bf16.mxu0 %v948
    %959 = vmatpush1.bf16.msra.mxu0 %v947
    %960 = vmatprep.subr.bf16.mxu0 0
    %961 = vmatpush1.bf16.msra.mxu0 0
    %962 = vmatprep.subr.bf16.mxu0 0
    %963 = vmatpush1.bf16.msra.mxu0 0
    %964 = vmatprep.subr.bf16.mxu0 0
    %965 = vmatpush1.bf16.msra.mxu0 0
    %966 = vmatprep.subr.bf16.mxu0 0
    %967 = vmatpush1.bf16.msra.mxu0 0
    %968 = vmatprep.subr.bf16.mxu0 0
    %969 = vmatpush1.bf16.msra.mxu0 0
    %970 = vmatprep.subr.bf16.mxu0 0
    %971 = vmatpush1.bf16.msra.mxu0 0
    %972 = vmatprep.subr.bf16.mxu0 0
    %973 = vmatpush1.bf16.msra.mxu0 0
    %974 = vmatprep.subr.bf16.mxu0 0
    %975 = vmatpush1.bf16.msra.mxu0 0
    %976 = vmatprep.subr.bf16.mxu0 0
    %977 = vmatpush1.bf16.msra.mxu0 0
    %978 = vmatprep.subr.bf16.mxu0 0
    %979 = vmatpush1.bf16.msra.mxu0 0
    %980 = vmatprep.subr.bf16.mxu0 0
    %981 = vmatpush1.bf16.msra.mxu0 0
    %982 = vmatprep.subr.bf16.mxu0 0
    %983 = vmatpush1.bf16.msra.mxu0 0
    %984 = vmatprep.subr.bf16.mxu0 0
    %985 = vmatpush1.bf16.msra.mxu0 0
    %986 = vmatprep.subr.bf16.mxu0 0
    %987 = vmatpush1.bf16.msra.mxu0 0
    %988 = vmatprep.subr.bf16.mxu0 0
    %989 = vmatpush1.bf16.msra.mxu0 0
    %990 = vmatprep.mubr.bf16.mxu0 0
    %991 = vmatmul.mubr.bf16.gmra.mrb[0].mxu0 %v956
    %v992 = vpop.f32.mrb[0].mxu0
    %v993 = vadd.f32 %v101, %v992
    %v994 = vpop.f32.mrb[0].mxu0
    %v995 = vadd.f32 %v105, %v994
    %v996 = vpop.f32.mrb[0].mxu0
    %v997 = vpop.f32.mrb[0].mxu0
    %998 = vdwg.mxu0
    %999 = vmatprep.subr.bf16.mxu0 %v950
    %1000 = vmatpush1.bf16.msra.mxu0 %v949
    %1001 = vmatprep.subr.bf16.mxu0 0
    %1002 = vmatpush1.bf16.msra.mxu0 0
    %1003 = vmatprep.subr.bf16.mxu0 0
    %1004 = vmatpush1.bf16.msra.mxu0 0
    %1005 = vmatprep.subr.bf16.mxu0 0
    %1006 = vmatpush1.bf16.msra.mxu0 0
    %1007 = vmatprep.subr.bf16.mxu0 0
    %1008 = vmatpush1.bf16.msra.mxu0 0
    %1009 = vmatprep.subr.bf16.mxu0 0
    %1010 = vmatpush1.bf16.msra.mxu0 0
    %1011 = vmatprep.subr.bf16.mxu0 0
    %1012 = vmatpush1.bf16.msra.mxu0 0
    %1013 = vmatprep.subr.bf16.mxu0 0
    %1014 = vmatpush1.bf16.msra.mxu0 0
    %1015 = vmatprep.subr.bf16.mxu0 0
    %1016 = vmatpush1.bf16.msra.mxu0 0
    %1017 = vmatprep.subr.bf16.mxu0 0
    %1018 = vmatpush1.bf16.msra.mxu0 0
    %1019 = vmatprep.subr.bf16.mxu0 0
    %1020 = vmatpush1.bf16.msra.mxu0 0
    %1021 = vmatprep.subr.bf16.mxu0 0
    %1022 = vmatpush1.bf16.msra.mxu0 0
    %1023 = vmatprep.subr.bf16.mxu0 0
    %1024 = vmatpush1.bf16.msra.mxu0 0
    %1025 = vmatprep.subr.bf16.mxu0 0
    %1026 = vmatpush1.bf16.msra.mxu0 0
    %1027 = vmatprep.subr.bf16.mxu0 0
    %1028 = vmatpush1.bf16.msra.mxu0 0
    %1029 = vmatprep.subr.bf16.mxu0 0
    %1030 = vmatpush1.bf16.msra.mxu0 0
    %1031 = vmatprep.mubr.bf16.mxu0 0
    %1032 = vmatmul.mubr.bf16.gmra.mrb[0].mxu0 %v956
    %v1033 = vpop.f32.mrb[0].mxu0
    %v1034 = vadd.f32 %v109, %v1033
    %v1035 = vpop.f32.mrb[0].mxu0
    %v1036 = vadd.f32 %v113, %v1035
    %v1037 = vpop.f32.mrb[0].mxu0
    %v1038 = vpop.f32.mrb[0].mxu0
    %1039 = vdwg.mxu0
    %s1040 = scalar_lea.vmem [#allocation2], 224
    %1041 = vst [vmem:[%s1040] sm:$0xff] %v993
    %1042 = vst [vmem:[%s1040 + $0x8] sm:$0xff] %v995
    %1043 = vst [vmem:[%s1040 + $0x10] sm:$0xff] %v1034
    %1044 = vst [vmem:[%s1040 + $0x18] sm:$0xff] %v1036
    %s1045 = scalar_lea.vmem %s4, 4
    %v1046 = vld [vmem:[%s1045] sm:$0xf]
    %v1048 = vlaneseq
    %v1049 = vshrl.u32 %v1048, 7
    %v1050 = vsub.s32 0, %v1049
    %v1051 = vrot.slane %v1046, %v1050
    %v1052 = vlaneseq
    %v1053 = vshrl.u32 %v1052, 7
    %v1054 = vsub.s32 1, %v1053
    %v1055 = vrot.slane %v1046, %v1054
    %v1056 = vlaneseq
    %v1057 = vshrl.u32 %v1056, 7
    %v1058 = vsub.s32 2, %v1057
    %v1059 = vrot.slane %v1046, %v1058
    %v1060 = vlaneseq
    %v1061 = vshrl.u32 %v1060, 7
    %v1062 = vsub.s32 3, %v1061
    %v1063 = vrot.slane %v1046, %v1062
    %v1068 = vld [vmem:[#allocation2] sm:$0xff]
    %v1069 = vld [vmem:[#allocation2 + $0x8] sm:$0xff]
    %v1070 = vld [vmem:[#allocation2 + $0x10] sm:$0xff]
    %v1071 = vld [vmem:[#allocation2 + $0x18] sm:$0xff]
    %v1072 = vld [vmem:[#allocation8] sm:$0xff]
    %v1073 = vld [vmem:[#allocation8 + $0x8] sm:$0xff]
    %v1074 = vld [vmem:[#allocation8 + $0x10] sm:$0xff]
    %v1075 = vld [vmem:[#allocation8 + $0x18] sm:$0xff]
    %v1076 = vld [vmem:[#allocation8 + $0x20] sm:$0xff]
    %v1077 = vld [vmem:[#allocation8 + $0x28] sm:$0xff]
    %v1078 = vld [vmem:[#allocation8 + $0x30] sm:$0xff]
    %v1079 = vld [vmem:[#allocation8 + $0x38] sm:$0xff]
    %v1080 = vld [vmem:[#allocation8 + $0x40] sm:$0xff]
    %v1081 = vld [vmem:[#allocation8 + $0x48] sm:$0xff]
    %v1082 = vld [vmem:[#allocation8 + $0x50] sm:$0xff]
    %v1083 = vld [vmem:[#allocation8 + $0x58] sm:$0xff]
    %v1084 = vld [vmem:[#allocation8 + $0x60] sm:$0xff]
    %v1085 = vld [vmem:[#allocation8 + $0x68] sm:$0xff]
    %v1086 = vld [vmem:[#allocation8 + $0x70] sm:$0xff]
    %v1087 = vld [vmem:[#allocation8 + $0x78] sm:$0xff]
    %v1088 = vld [vmem:[#allocation8 + $0x80] sm:$0xff]
    %v1089 = vld [vmem:[#allocation8 + $0x88] sm:$0xff]
    %v1090 = vld [vmem:[#allocation8 + $0x90] sm:$0xff]
    %v1091 = vld [vmem:[#allocation8 + $0x98] sm:$0xff]
    %v1092 = vld [vmem:[#allocation8 + $0xa0] sm:$0xff]
    %v1093 = vld [vmem:[#allocation8 + $0xa8] sm:$0xff]
    %v1094 = vld [vmem:[#allocation8 + $0xb0] sm:$0xff]
    %v1095 = vld [vmem:[#allocation8 + $0xb8] sm:$0xff]
    %v1096 = vld [vmem:[#allocation8 + $0xc0] sm:$0xff]
    %v1097 = vld [vmem:[#allocation8 + $0xc8] sm:$0xff]
    %v1098 = vld [vmem:[#allocation8 + $0xd0] sm:$0xff]
    %v1099 = vld [vmem:[#allocation8 + $0xd8] sm:$0xff]
    %v1100 = vld [vmem:[#allocation8 + $0xe0] sm:$0xff]
    %v1101 = vld [vmem:[#allocation8 + $0xe8] sm:$0xff]
    %v1102 = vld [vmem:[#allocation8 + $0xf0] sm:$0xff]
    %v1103 = vld [vmem:[#allocation8 + $0xf8] sm:$0xff]
    %v1136 = vunpack.c.l.b16 %v1072
    %v1137 = vunpack.c.h.b16 %v1072
    %v1138 = vunpack.c.l.b16 %v1073
    %v1139 = vunpack.c.h.b16 %v1073
    %v1140 = vunpack.c.l.b16 %v1074
    %v1141 = vunpack.c.h.b16 %v1074
    %v1142 = vunpack.c.l.b16 %v1075
    %v1143 = vunpack.c.h.b16 %v1075
    %v1144 = vunpack.c.l.b16 %v1076
    %v1145 = vunpack.c.h.b16 %v1076
    %v1146 = vunpack.c.l.b16 %v1077
    %v1147 = vunpack.c.h.b16 %v1077
    %v1148 = vunpack.c.l.b16 %v1078
    %v1149 = vunpack.c.h.b16 %v1078
    %v1150 = vunpack.c.l.b16 %v1079
    %v1151 = vunpack.c.h.b16 %v1079
    %v1152 = vunpack.c.l.b16 %v1080
    %v1153 = vunpack.c.h.b16 %v1080
    %v1154 = vunpack.c.l.b16 %v1081
    %v1155 = vunpack.c.h.b16 %v1081
    %v1156 = vunpack.c.l.b16 %v1082
    %v1157 = vunpack.c.h.b16 %v1082
    %v1158 = vunpack.c.l.b16 %v1083
    %v1159 = vunpack.c.h.b16 %v1083
    %v1160 = vunpack.c.l.b16 %v1084
    %v1161 = vunpack.c.h.b16 %v1084
    %v1162 = vunpack.c.l.b16 %v1085
    %v1163 = vunpack.c.h.b16 %v1085
    %v1164 = vunpack.c.l.b16 %v1086
    %v1165 = vunpack.c.h.b16 %v1086
    %v1166 = vunpack.c.l.b16 %v1087
    %v1167 = vunpack.c.h.b16 %v1087
    %v1168 = vunpack.c.l.b16 %v1088
    %v1169 = vunpack.c.h.b16 %v1088
    %v1170 = vunpack.c.l.b16 %v1089
    %v1171 = vunpack.c.h.b16 %v1089
    %v1172 = vunpack.c.l.b16 %v1090
    %v1173 = vunpack.c.h.b16 %v1090
    %v1174 = vunpack.c.l.b16 %v1091
    %v1175 = vunpack.c.h.b16 %v1091
    %v1176 = vunpack.c.l.b16 %v1092
    %v1177 = vunpack.c.h.b16 %v1092
    %v1178 = vunpack.c.l.b16 %v1093
    %v1179 = vunpack.c.h.b16 %v1093
    %v1180 = vunpack.c.l.b16 %v1094
    %v1181 = vunpack.c.h.b16 %v1094
    %v1182 = vunpack.c.l.b16 %v1095
    %v1183 = vunpack.c.h.b16 %v1095
    %v1184 = vunpack.c.l.b16 %v1096
    %v1185 = vunpack.c.h.b16 %v1096
    %v1186 = vunpack.c.l.b16 %v1097
    %v1187 = vunpack.c.h.b16 %v1097
    %v1188 = vunpack.c.l.b16 %v1098
    %v1189 = vunpack.c.h.b16 %v1098
    %v1190 = vunpack.c.l.b16 %v1099
    %v1191 = vunpack.c.h.b16 %v1099
    %v1192 = vunpack.c.l.b16 %v1100
    %v1193 = vunpack.c.h.b16 %v1100
    %v1194 = vunpack.c.l.b16 %v1101
    %v1195 = vunpack.c.h.b16 %v1101
    %v1196 = vunpack.c.l.b16 %v1102
    %v1197 = vunpack.c.h.b16 %v1102
    %v1198 = vunpack.c.l.b16 %v1103
    %v1199 = vunpack.c.h.b16 %v1103
    %v1200 = vpack.c.b16 %v1140, %v1136
    %v1201 = vpack.c.b16 %v1141, %v1137
    %v1202 = vpack.c.b16 %v1142, %v1138
    %v1203 = vpack.c.b16 %v1143, %v1139
    %v1204 = vpack.c.b16 %v1148, %v1144
    %v1205 = vpack.c.b16 %v1149, %v1145
    %v1206 = vpack.c.b16 %v1150, %v1146
    %v1207 = vpack.c.b16 %v1151, %v1147
    %v1208 = vpack.c.b16 %v1156, %v1152
    %v1209 = vpack.c.b16 %v1157, %v1153
    %v1210 = vpack.c.b16 %v1158, %v1154
    %v1211 = vpack.c.b16 %v1159, %v1155
    %v1212 = vpack.c.b16 %v1164, %v1160
    %v1213 = vpack.c.b16 %v1165, %v1161
    %v1214 = vpack.c.b16 %v1166, %v1162
    %v1215 = vpack.c.b16 %v1167, %v1163
    %v1216 = vpack.c.b16 %v1172, %v1168
    %v1217 = vpack.c.b16 %v1173, %v1169
    %v1218 = vpack.c.b16 %v1174, %v1170
    %v1219 = vpack.c.b16 %v1175, %v1171
    %v1220 = vpack.c.b16 %v1180, %v1176
    %v1221 = vpack.c.b16 %v1181, %v1177
    %v1222 = vpack.c.b16 %v1182, %v1178
    %v1223 = vpack.c.b16 %v1183, %v1179
    %v1224 = vpack.c.b16 %v1188, %v1184
    %v1225 = vpack.c.b16 %v1189, %v1185
    %v1226 = vpack.c.b16 %v1190, %v1186
    %v1227 = vpack.c.b16 %v1191, %v1187
    %v1228 = vpack.c.b16 %v1196, %v1192
    %v1229 = vpack.c.b16 %v1197, %v1193
    %v1230 = vpack.c.b16 %v1198, %v1194
    %v1231 = vpack.c.b16 %v1199, %v1195
    %1264 = vmatprep.subr.bf16.mxu0 %v1201
    %1265 = vmatpush1.bf16.msra.mxu0 %v1200
    %1266 = vmatprep.subr.bf16.mxu0 %v1205
    %1267 = vmatpush1.bf16.msra.mxu0 %v1204
    %1268 = vmatprep.subr.bf16.mxu0 %v1209
    %1269 = vmatpush1.bf16.msra.mxu0 %v1208
    %1270 = vmatprep.subr.bf16.mxu0 %v1213
    %1271 = vmatpush1.bf16.msra.mxu0 %v1212
    %1272 = vmatprep.subr.bf16.mxu0 %v1217
    %1273 = vmatpush1.bf16.msra.mxu0 %v1216
    %1274 = vmatprep.subr.bf16.mxu0 %v1221
    %1275 = vmatpush1.bf16.msra.mxu0 %v1220
    %1276 = vmatprep.subr.bf16.mxu0 %v1225
    %1277 = vmatpush1.bf16.msra.mxu0 %v1224
    %1278 = vmatprep.subr.bf16.mxu0 %v1229
    %1279 = vmatpush1.bf16.msra.mxu0 %v1228
    %1280 = vmatprep.subr.bf16.mxu0 0
    %1281 = vmatpush1.bf16.msra.mxu0 0
    %1282 = vmatprep.subr.bf16.mxu0 0
    %1283 = vmatpush1.bf16.msra.mxu0 0
    %1284 = vmatprep.subr.bf16.mxu0 0
    %1285 = vmatpush1.bf16.msra.mxu0 0
    %1286 = vmatprep.subr.bf16.mxu0 0
    %1287 = vmatpush1.bf16.msra.mxu0 0
    %1288 = vmatprep.subr.bf16.mxu0 0
    %1289 = vmatpush1.bf16.msra.mxu0 0
    %1290 = vmatprep.subr.bf16.mxu0 0
    %1291 = vmatpush1.bf16.msra.mxu0 0
    %1292 = vmatprep.subr.bf16.mxu0 0
    %1293 = vmatpush1.bf16.msra.mxu0 0
    %1294 = vmatprep.subr.bf16.mxu0 0
    %1295 = vmatpush1.bf16.msra.mxu0 0
    %1296 = vmatprep.mubr.bf16.mxu0 0
    %1297 = vmatmul.mubr.bf16.gmra.mrb[0].mxu0 0
    %v1298 = vpop.f32.mrb[0].mxu0
    %v1299 = vadd.f32 0.0, %v1298
    %v1300 = vpop.f32.mrb[0].mxu0
    %v1301 = vadd.f32 0.0, %v1300
    %v1302 = vpop.f32.mrb[0].mxu0
    %v1303 = vpop.f32.mrb[0].mxu0
    %1304 = vdwg.mxu0
    %1305 = vmatprep.subr.bf16.mxu0 %v1203
    %1306 = vmatpush1.bf16.msra.mxu0 %v1202
    %1307 = vmatprep.subr.bf16.mxu0 %v1207
    %1308 = vmatpush1.bf16.msra.mxu0 %v1206
    %1309 = vmatprep.subr.bf16.mxu0 %v1211
    %1310 = vmatpush1.bf16.msra.mxu0 %v1210
    %1311 = vmatprep.subr.bf16.mxu0 %v1215
    %1312 = vmatpush1.bf16.msra.mxu0 %v1214
    %1313 = vmatprep.subr.bf16.mxu0 %v1219
    %1314 = vmatpush1.bf16.msra.mxu0 %v1218
    %1315 = vmatprep.subr.bf16.mxu0 %v1223
    %1316 = vmatpush1.bf16.msra.mxu0 %v1222
    %1317 = vmatprep.subr.bf16.mxu0 %v1227
    %1318 = vmatpush1.bf16.msra.mxu0 %v1226
    %1319 = vmatprep.subr.bf16.mxu0 %v1231
    %1320 = vmatpush1.bf16.msra.mxu0 %v1230
    %1321 = vmatprep.subr.bf16.mxu0 0
    %1322 = vmatpush1.bf16.msra.mxu0 0
    %1323 = vmatprep.subr.bf16.mxu0 0
    %1324 = vmatpush1.bf16.msra.mxu0 0
    %1325 = vmatprep.subr.bf16.mxu0 0
    %1326 = vmatpush1.bf16.msra.mxu0 0
    %1327 = vmatprep.subr.bf16.mxu0 0
    %1328 = vmatpush1.bf16.msra.mxu0 0
    %1329 = vmatprep.subr.bf16.mxu0 0
    %1330 = vmatpush1.bf16.msra.mxu0 0
    %1331 = vmatprep.subr.bf16.mxu0 0
    %1332 = vmatpush1.bf16.msra.mxu0 0
    %1333 = vmatprep.subr.bf16.mxu0 0
    %1334 = vmatpush1.bf16.msra.mxu0 0
    %1335 = vmatprep.subr.bf16.mxu0 0
    %1336 = vmatpush1.bf16.msra.mxu0 0
    %1337 = vmatprep.mubr.bf16.mxu0 0
    %1338 = vmatmul.mubr.bf16.gmra.mrb[0].mxu0 0
    %v1339 = vpop.f32.mrb[0].mxu0
    %v1340 = vadd.f32 0.0, %v1339
    %v1341 = vpop.f32.mrb[0].mxu0
    %v1342 = vadd.f32 0.0, %v1341
    %v1343 = vpop.f32.mrb[0].mxu0
    %v1344 = vpop.f32.mrb[0].mxu0
    %1345 = vdwg.mxu0
    %v1346 = vadd.f32 %v1068, %v1299
    %v1347 = vadd.f32 %v1069, %v1301
    %v1348 = vadd.f32 %v1070, %v1340
    %v1349 = vadd.f32 %v1071, %v1342
    %v1350 = vmul.f32 %v1346, 0.5
    %v1351 = vmul.f32 %v1347, 0.5
    %v1352 = vmul.f32 %v1348, 0.5
    %v1353 = vtanh.pop %v1350
    %v1354 = vtanh.pop %v1351
    %v1355 = vtanh.pop %v1352
    %v1356 = vmul.f32 %v1353, 0.5
    %v1357 = vmul.f32 %v1354, 0.5
    %v1358 = vmul.f32 %v1355, 0.5
    %v1359 = vadd.f32 %v1356, 0.5
    %v1360 = vadd.f32 %v1357, 0.5
    %v1361 = vadd.f32 %v1358, 0.5
    %v1362 = vtanh.pop %v1349
    %v1363 = vmul.f32 %v1360, 0.0
    %v1364 = vmul.f32 %v1359, %v1362
    %v1365 = vadd.f32 %v1363, %v1364
    %v1366 = vtanh.pop %v1365
    %v1367 = vmul.f32 %v1361, %v1366
    %v1368 = vld [vmem:[%s344] sm:$0xff]
    %v1369 = vld [vmem:[%s344 + $0x8] sm:$0xff]
    %v1370 = vld [vmem:[%s344 + $0x10] sm:$0xff]
    %v1371 = vld [vmem:[%s344 + $0x18] sm:$0xff]
    %v1372 = vpack.c.bf16 %v1367, %v1367
    %1373 = vmatprep.subr.bf16.mxu0 %v1201
    %1374 = vmatpush1.bf16.msra.mxu0 %v1200
    %1375 = vmatprep.subr.bf16.mxu0 %v1205
    %1376 = vmatpush1.bf16.msra.mxu0 %v1204
    %1377 = vmatprep.subr.bf16.mxu0 %v1209
    %1378 = vmatpush1.bf16.msra.mxu0 %v1208
    %1379 = vmatprep.subr.bf16.mxu0 %v1213
    %1380 = vmatpush1.bf16.msra.mxu0 %v1212
    %1381 = vmatprep.subr.bf16.mxu0 %v1217
    %1382 = vmatpush1.bf16.msra.mxu0 %v1216
    %1383 = vmatprep.subr.bf16.mxu0 %v1221
    %1384 = vmatpush1.bf16.msra.mxu0 %v1220
    %1385 = vmatprep.subr.bf16.mxu0 %v1225
    %1386 = vmatpush1.bf16.msra.mxu0 %v1224
    %1387 = vmatprep.subr.bf16.mxu0 %v1229
    %1388 = vmatpush1.bf16.msra.mxu0 %v1228
    %1389 = vmatprep.subr.bf16.mxu0 0
    %1390 = vmatpush1.bf16.msra.mxu0 0
    %1391 = vmatprep.subr.bf16.mxu0 0
    %1392 = vmatpush1.bf16.msra.mxu0 0
    %1393 = vmatprep.subr.bf16.mxu0 0
    %1394 = vmatpush1.bf16.msra.mxu0 0
    %1395 = vmatprep.subr.bf16.mxu0 0
    %1396 = vmatpush1.bf16.msra.mxu0 0
    %1397 = vmatprep.subr.bf16.mxu0 0
    %1398 = vmatpush1.bf16.msra.mxu0 0
    %1399 = vmatprep.subr.bf16.mxu0 0
    %1400 = vmatpush1.bf16.msra.mxu0 0
    %1401 = vmatprep.subr.bf16.mxu0 0
    %1402 = vmatpush1.bf16.msra.mxu0 0
    %1403 = vmatprep.subr.bf16.mxu0 0
    %1404 = vmatpush1.bf16.msra.mxu0 0
    %1405 = vmatprep.mubr.bf16.mxu0 0
    %1406 = vmatmul.mubr.bf16.gmra.mrb[0].mxu0 %v1372
    %v1407 = vpop.f32.mrb[0].mxu0
    %v1408 = vadd.f32 0.0, %v1407
    %v1409 = vpop.f32.mrb[0].mxu0
    %v1410 = vadd.f32 0.0, %v1409
    %v1411 = vpop.f32.mrb[0].mxu0
    %v1412 = vpop.f32.mrb[0].mxu0
    %1413 = vdwg.mxu0
    %1414 = vmatprep.subr.bf16.mxu0 %v1203
    %1415 = vmatpush1.bf16.msra.mxu0 %v1202
    %1416 = vmatprep.subr.bf16.mxu0 %v1207
    %1417 = vmatpush1.bf16.msra.mxu0 %v1206
    %1418 = vmatprep.subr.bf16.mxu0 %v1211
    %1419 = vmatpush1.bf16.msra.mxu0 %v1210
    %1420 = vmatprep.subr.bf16.mxu0 %v1215
    %1421 = vmatpush1.bf16.msra.mxu0 %v1214
    %1422 = vmatprep.subr.bf16.mxu0 %v1219
    %1423 = vmatpush1.bf16.msra.mxu0 %v1218
    %1424 = vmatprep.subr.bf16.mxu0 %v1223
    %1425 = vmatpush1.bf16.msra.mxu0 %v1222
    %1426 = vmatprep.subr.bf16.mxu0 %v1227
    %1427 = vmatpush1.bf16.msra.mxu0 %v1226
    %1428 = vmatprep.subr.bf16.mxu0 %v1231
    %1429 = vmatpush1.bf16.msra.mxu0 %v1230
    %1430 = vmatprep.subr.bf16.mxu0 0
    %1431 = vmatpush1.bf16.msra.mxu0 0
    %1432 = vmatprep.subr.bf16.mxu0 0
    %1433 = vmatpush1.bf16.msra.mxu0 0
    %1434 = vmatprep.subr.bf16.mxu0 0
    %1435 = vmatpush1.bf16.msra.mxu0 0
    %1436 = vmatprep.subr.bf16.mxu0 0
    %1437 = vmatpush1.bf16.msra.mxu0 0
    %1438 = vmatprep.subr.bf16.mxu0 0
    %1439 = vmatpush1.bf16.msra.mxu0 0
    %1440 = vmatprep.subr.bf16.mxu0 0
    %1441 = vmatpush1.bf16.msra.mxu0 0
    %1442 = vmatprep.subr.bf16.mxu0 0
    %1443 = vmatpush1.bf16.msra.mxu0 0
    %1444 = vmatprep.subr.bf16.mxu0 0
    %1445 = vmatpush1.bf16.msra.mxu0 0
    %1446 = vmatprep.mubr.bf16.mxu0 0
    %1447 = vmatmul.mubr.bf16.gmra.mrb[0].mxu0 %v1372
    %v1448 = vpop.f32.mrb[0].mxu0
    %v1449 = vadd.f32 0.0, %v1448
    %v1450 = vpop.f32.mrb[0].mxu0
    %v1451 = vadd.f32 0.0, %v1450
    %v1452 = vpop.f32.mrb[0].mxu0
    %v1453 = vpop.f32.mrb[0].mxu0
    %1454 = vdwg.mxu0
    %v1455 = vadd.f32 %v1368, %v1408
    %v1456 = vadd.f32 %v1369, %v1410
    %v1457 = vadd.f32 %v1370, %v1449
    %v1458 = vadd.f32 %v1371, %v1451
    %v1459 = vmul.f32 %v1455, 0.5
    %v1460 = vmul.f32 %v1456, 0.5
    %v1461 = vmul.f32 %v1457, 0.5
    %v1462 = vtanh.pop %v1459
    %v1463 = vtanh.pop %v1460
    %v1464 = vtanh.pop %v1461
    %v1465 = vmul.f32 %v1462, 0.5
    %v1466 = vmul.f32 %v1463, 0.5
    %v1467 = vmul.f32 %v1464, 0.5
    %v1468 = vadd.f32 %v1465, 0.5
    %v1469 = vadd.f32 %v1466, 0.5
    %v1470 = vadd.f32 %v1467, 0.5
    %v1471 = vtanh.pop %v1458
    %v1472 = vmul.f32 %v1469, %v1365
    %v1473 = vmul.f32 %v1468, %v1471
    %v1474 = vadd.f32 %v1472, %v1473
    %v1475 = vtanh.pop %v1474
    %v1476 = vmul.f32 %v1470, %v1475
    %v1477 = vpack.c.bf16 0.0, 0.0
    %v1478 = vld [vmem:[#allocation9] sm:$0xff]
    %v1479 = vld [vmem:[#allocation9 + $0x8] sm:$0xff]
    %v1480 = vld [vmem:[#allocation9 + $0x10] sm:$0xff]
    %v1481 = vld [vmem:[#allocation9 + $0x18] sm:$0xff]
    %v1482 = vld [vmem:[#allocation9 + $0x20] sm:$0xff]
    %v1483 = vld [vmem:[#allocation9 + $0x28] sm:$0xff]
    %v1484 = vld [vmem:[#allocation9 + $0x30] sm:$0xff]
    %v1485 = vld [vmem:[#allocation9 + $0x38] sm:$0xff]
    %v1486 = vld [vmem:[#allocation9 + $0x40] sm:$0xff]
    %v1487 = vld [vmem:[#allocation9 + $0x48] sm:$0xff]
    %v1488 = vld [vmem:[#allocation9 + $0x50] sm:$0xff]
    %v1489 = vld [vmem:[#allocation9 + $0x58] sm:$0xff]
    %v1490 = vld [vmem:[#allocation9 + $0x60] sm:$0xff]
    %v1491 = vld [vmem:[#allocation9 + $0x68] sm:$0xff]
    %v1492 = vld [vmem:[#allocation9 + $0x70] sm:$0xff]
    %v1493 = vld [vmem:[#allocation9 + $0x78] sm:$0xff]
    %v1494 = vld [vmem:[#allocation9 + $0x80] sm:$0xff]
    %v1495 = vld [vmem:[#allocation9 + $0x88] sm:$0xff]
    %v1496 = vld [vmem:[#allocation9 + $0x90] sm:$0xff]
    %v1497 = vld [vmem:[#allocation9 + $0x98] sm:$0xff]
    %v1498 = vld [vmem:[#allocation9 + $0xa0] sm:$0xff]
    %v1499 = vld [vmem:[#allocation9 + $0xa8] sm:$0xff]
    %v1500 = vld [vmem:[#allocation9 + $0xb0] sm:$0xff]
    %v1501 = vld [vmem:[#allocation9 + $0xb8] sm:$0xff]
    %v1502 = vld [vmem:[#allocation9 + $0xc0] sm:$0xff]
    %v1503 = vld [vmem:[#allocation9 + $0xc8] sm:$0xff]
    %v1504 = vld [vmem:[#allocation9 + $0xd0] sm:$0xff]
    %v1505 = vld [vmem:[#allocation9 + $0xd8] sm:$0xff]
    %v1506 = vld [vmem:[#allocation9 + $0xe0] sm:$0xff]
    %v1507 = vld [vmem:[#allocation9 + $0xe8] sm:$0xff]
    %v1508 = vld [vmem:[#allocation9 + $0xf0] sm:$0xff]
    %v1509 = vld [vmem:[#allocation9 + $0xf8] sm:$0xff]
    %v1510 = vld [vmem:[#allocation9 + $0x100] sm:$0xff]
    %v1511 = vld [vmem:[#allocation9 + $0x108] sm:$0xff]
    %v1512 = vld [vmem:[#allocation9 + $0x110] sm:$0xff]
    %v1513 = vld [vmem:[#allocation9 + $0x118] sm:$0xff]
    %v1514 = vld [vmem:[#allocation9 + $0x120] sm:$0xff]
    %v1515 = vld [vmem:[#allocation9 + $0x128] sm:$0xff]
    %v1516 = vld [vmem:[#allocation9 + $0x130] sm:$0xff]
    %v1517 = vld [vmem:[#allocation9 + $0x138] sm:$0xff]
    %v1518 = vld [vmem:[#allocation9 + $0x140] sm:$0xff]
    %v1519 = vld [vmem:[#allocation9 + $0x148] sm:$0xff]
    %v1520 = vld [vmem:[#allocation9 + $0x150] sm:$0xff]
    %v1521 = vld [vmem:[#allocation9 + $0x158] sm:$0xff]
    %v1522 = vld [vmem:[#allocation9 + $0x160] sm:$0xff]
    %v1523 = vld [vmem:[#allocation9 + $0x168] sm:$0xff]
    %v1524 = vld [vmem:[#allocation9 + $0x170] sm:$0xff]
    %v1525 = vld [vmem:[#allocation9 + $0x178] sm:$0xff]
    %v1526 = vld [vmem:[#allocation9 + $0x180] sm:$0xff]
    %v1527 = vld [vmem:[#allocation9 + $0x188] sm:$0xff]
    %v1528 = vld [vmem:[#allocation9 + $0x190] sm:$0xff]
    %v1529 = vld [vmem:[#allocation9 + $0x198] sm:$0xff]
    %v1530 = vld [vmem:[#allocation9 + $0x1a0] sm:$0xff]
    %v1531 = vld [vmem:[#allocation9 + $0x1a8] sm:$0xff]
    %v1532 = vld [vmem:[#allocation9 + $0x1b0] sm:$0xff]
    %v1533 = vld [vmem:[#allocation9 + $0x1b8] sm:$0xff]
    %v1534 = vld [vmem:[#allocation9 + $0x1c0] sm:$0xff]
    %v1535 = vld [vmem:[#allocation9 + $0x1c8] sm:$0xff]
    %v1536 = vld [vmem:[#allocation9 + $0x1d0] sm:$0xff]
    %v1537 = vld [vmem:[#allocation9 + $0x1d8] sm:$0xff]
    %v1538 = vld [vmem:[#allocation9 + $0x1e0] sm:$0xff]
    %v1539 = vld [vmem:[#allocation9 + $0x1e8] sm:$0xff]
    %v1540 = vld [vmem:[#allocation9 + $0x1f0] sm:$0xff]
    %v1541 = vld [vmem:[#allocation9 + $0x1f8] sm:$0xff]
    %v1606 = vunpack.c.l.b16 %v1478
    %v1607 = vunpack.c.h.b16 %v1478
    %v1608 = vunpack.c.l.b16 %v1479
    %v1609 = vunpack.c.h.b16 %v1479
    %v1610 = vunpack.c.l.b16 %v1480
    %v1611 = vunpack.c.h.b16 %v1480
    %v1612 = vunpack.c.l.b16 %v1481
    %v1613 = vunpack.c.h.b16 %v1481
    %v1614 = vunpack.c.l.b16 %v1482
    %v1615 = vunpack.c.h.b16 %v1482
    %v1616 = vunpack.c.l.b16 %v1483
    %v1617 = vunpack.c.h.b16 %v1483
    %v1618 = vunpack.c.l.b16 %v1484
    %v1619 = vunpack.c.h.b16 %v1484
    %v1620 = vunpack.c.l.b16 %v1485
    %v1621 = vunpack.c.h.b16 %v1485
    %v1622 = vunpack.c.l.b16 %v1486
    %v1623 = vunpack.c.h.b16 %v1486
    %v1624 = vunpack.c.l.b16 %v1487
    %v1625 = vunpack.c.h.b16 %v1487
    %v1626 = vunpack.c.l.b16 %v1488
    %v1627 = vunpack.c.h.b16 %v1488
    %v1628 = vunpack.c.l.b16 %v1489
    %v1629 = vunpack.c.h.b16 %v1489
    %v1630 = vunpack.c.l.b16 %v1490
    %v1631 = vunpack.c.h.b16 %v1490
    %v1632 = vunpack.c.l.b16 %v1491
    %v1633 = vunpack.c.h.b16 %v1491
    %v1634 = vunpack.c.l.b16 %v1492
    %v1635 = vunpack.c.h.b16 %v1492
    %v1636 = vunpack.c.l.b16 %v1493
    %v1637 = vunpack.c.h.b16 %v1493
    %v1638 = vunpack.c.l.b16 %v1494
    %v1639 = vunpack.c.h.b16 %v1494
    %v1640 = vunpack.c.l.b16 %v1495
    %v1641 = vunpack.c.h.b16 %v1495
    %v1642 = vunpack.c.l.b16 %v1496
    %v1643 = vunpack.c.h.b16 %v1496
    %v1644 = vunpack.c.l.b16 %v1497
    %v1645 = vunpack.c.h.b16 %v1497
    %v1646 = vunpack.c.l.b16 %v1498
    %v1647 = vunpack.c.h.b16 %v1498
    %v1648 = vunpack.c.l.b16 %v1499
    %v1649 = vunpack.c.h.b16 %v1499
    %v1650 = vunpack.c.l.b16 %v1500
    %v1651 = vunpack.c.h.b16 %v1500
    %v1652 = vunpack.c.l.b16 %v1501
    %v1653 = vunpack.c.h.b16 %v1501
    %v1654 = vunpack.c.l.b16 %v1502
    %v1655 = vunpack.c.h.b16 %v1502
    %v1656 = vunpack.c.l.b16 %v1503
    %v1657 = vunpack.c.h.b16 %v1503
    %v1658 = vunpack.c.l.b16 %v1504
    %v1659 = vunpack.c.h.b16 %v1504
    %v1660 = vunpack.c.l.b16 %v1505
    %v1661 = vunpack.c.h.b16 %v1505
    %v1662 = vunpack.c.l.b16 %v1506
    %v1663 = vunpack.c.h.b16 %v1506
    %v1664 = vunpack.c.l.b16 %v1507
    %v1665 = vunpack.c.h.b16 %v1507
    %v1666 = vunpack.c.l.b16 %v1508
    %v1667 = vunpack.c.h.b16 %v1508
    %v1668 = vunpack.c.l.b16 %v1509
    %v1669 = vunpack.c.h.b16 %v1509
    %v1670 = vunpack.c.l.b16 %v1510
    %v1671 = vunpack.c.h.b16 %v1510
    %v1672 = vunpack.c.l.b16 %v1511
    %v1673 = vunpack.c.h.b16 %v1511
    %v1674 = vunpack.c.l.b16 %v1512
    %v1675 = vunpack.c.h.b16 %v1512
    %v1676 = vunpack.c.l.b16 %v1513
    %v1677 = vunpack.c.h.b16 %v1513
    %v1678 = vunpack.c.l.b16 %v1514
    %v1679 = vunpack.c.h.b16 %v1514
    %v1680 = vunpack.c.l.b16 %v1515
    %v1681 = vunpack.c.h.b16 %v1515
    %v1682 = vunpack.c.l.b16 %v1516
    %v1683 = vunpack.c.h.b16 %v1516
    %v1684 = vunpack.c.l.b16 %v1517
    %v1685 = vunpack.c.h.b16 %v1517
    %v1686 = vunpack.c.l.b16 %v1518
    %v1687 = vunpack.c.h.b16 %v1518
    %v1688 = vunpack.c.l.b16 %v1519
    %v1689 = vunpack.c.h.b16 %v1519
    %v1690 = vunpack.c.l.b16 %v1520
    %v1691 = vunpack.c.h.b16 %v1520
    %v1692 = vunpack.c.l.b16 %v1521
    %v1693 = vunpack.c.h.b16 %v1521
    %v1694 = vunpack.c.l.b16 %v1522
    %v1695 = vunpack.c.h.b16 %v1522
    %v1696 = vunpack.c.l.b16 %v1523
    %v1697 = vunpack.c.h.b16 %v1523
    %v1698 = vunpack.c.l.b16 %v1524
    %v1699 = vunpack.c.h.b16 %v1524
    %v1700 = vunpack.c.l.b16 %v1525
    %v1701 = vunpack.c.h.b16 %v1525
    %v1702 = vunpack.c.l.b16 %v1526
    %v1703 = vunpack.c.h.b16 %v1526
    %v1704 = vunpack.c.l.b16 %v1527
    %v1705 = vunpack.c.h.b16 %v1527
    %v1706 = vunpack.c.l.b16 %v1528
    %v1707 = vunpack.c.h.b16 %v1528
    %v1708 = vunpack.c.l.b16 %v1529
    %v1709 = vunpack.c.h.b16 %v1529
    %v1710 = vunpack.c.l.b16 %v1530
    %v1711 = vunpack.c.h.b16 %v1530
    %v1712 = vunpack.c.l.b16 %v1531
    %v1713 = vunpack.c.h.b16 %v1531
    %v1714 = vunpack.c.l.b16 %v1532
    %v1715 = vunpack.c.h.b16 %v1532
    %v1716 = vunpack.c.l.b16 %v1533
    %v1717 = vunpack.c.h.b16 %v1533
    %v1718 = vunpack.c.l.b16 %v1534
    %v1719 = vunpack.c.h.b16 %v1534
    %v1720 = vunpack.c.l.b16 %v1535
    %v1721 = vunpack.c.h.b16 %v1535
    %v1722 = vunpack.c.l.b16 %v1536
    %v1723 = vunpack.c.h.b16 %v1536
    %v1724 = vunpack.c.l.b16 %v1537
    %v1725 = vunpack.c.h.b16 %v1537
    %v1726 = vunpack.c.l.b16 %v1538
    %v1727 = vunpack.c.h.b16 %v1538
    %v1728 = vunpack.c.l.b16 %v1539
    %v1729 = vunpack.c.h.b16 %v1539
    %v1730 = vunpack.c.l.b16 %v1540
    %v1731 = vunpack.c.h.b16 %v1540
    %v1732 = vunpack.c.l.b16 %v1541
    %v1733 = vunpack.c.h.b16 %v1541
    %v1734 = vpack.c.b16 %v1610, %v1606
    %v1735 = vpack.c.b16 %v1611, %v1607
    %v1736 = vpack.c.b16 %v1612, %v1608
    %v1737 = vpack.c.b16 %v1613, %v1609
    %v1738 = vpack.c.b16 %v1618, %v1614
    %v1739 = vpack.c.b16 %v1619, %v1615
    %v1740 = vpack.c.b16 %v1620, %v1616
    %v1741 = vpack.c.b16 %v1621, %v1617
    %v1742 = vpack.c.b16 %v1626, %v1622
    %v1743 = vpack.c.b16 %v1627, %v1623
    %v1744 = vpack.c.b16 %v1628, %v1624
    %v1745 = vpack.c.b16 %v1629, %v1625
    %v1746 = vpack.c.b16 %v1634, %v1630
    %v1747 = vpack.c.b16 %v1635, %v1631
    %v1748 = vpack.c.b16 %v1636, %v1632
    %v1749 = vpack.c.b16 %v1637, %v1633
    %v1750 = vpack.c.b16 %v1642, %v1638
    %v1751 = vpack.c.b16 %v1643, %v1639
    %v1752 = vpack.c.b16 %v1644, %v1640
    %v1753 = vpack.c.b16 %v1645, %v1641
    %v1754 = vpack.c.b16 %v1650, %v1646
    %v1755 = vpack.c.b16 %v1651, %v1647
    %v1756 = vpack.c.b16 %v1652, %v1648
    %v1757 = vpack.c.b16 %v1653, %v1649
    %v1758 = vpack.c.b16 %v1658, %v1654
    %v1759 = vpack.c.b16 %v1659, %v1655
    %v1760 = vpack.c.b16 %v1660, %v1656
    %v1761 = vpack.c.b16 %v1661, %v1657
    %v1762 = vpack.c.b16 %v1666, %v1662
    %v1763 = vpack.c.b16 %v1667, %v1663
    %v1764 = vpack.c.b16 %v1668, %v1664
    %v1765 = vpack.c.b16 %v1669, %v1665
    %v1766 = vpack.c.b16 %v1674, %v1670
    %v1767 = vpack.c.b16 %v1675, %v1671
    %v1768 = vpack.c.b16 %v1676, %v1672
    %v1769 = vpack.c.b16 %v1677, %v1673
    %v1770 = vpack.c.b16 %v1682, %v1678
    %v1771 = vpack.c.b16 %v1683, %v1679
    %v1772 = vpack.c.b16 %v1684, %v1680
    %v1773 = vpack.c.b16 %v1685, %v1681
    %v1774 = vpack.c.b16 %v1690, %v1686
    %v1775 = vpack.c.b16 %v1691, %v1687
    %v1776 = vpack.c.b16 %v1692, %v1688
    %v1777 = vpack.c.b16 %v1693, %v1689
    %v1778 = vpack.c.b16 %v1698, %v1694
    %v1779 = vpack.c.b16 %v1699, %v1695
    %v1780 = vpack.c.b16 %v1700, %v1696
    %v1781 = vpack.c.b16 %v1701, %v1697
    %v1782 = vpack.c.b16 %v1706, %v1702
    %v1783 = vpack.c.b16 %v1707, %v1703
    %v1784 = vpack.c.b16 %v1708, %v1704
    %v1785 = vpack.c.b16 %v1709, %v1705
    %v1786 = vpack.c.b16 %v1714, %v1710
    %v1787 = vpack.c.b16 %v1715, %v1711
    %v1788 = vpack.c.b16 %v1716, %v1712
    %v1789 = vpack.c.b16 %v1717, %v1713
    %v1790 = vpack.c.b16 %v1722, %v1718
    %v1791 = vpack.c.b16 %v1723, %v1719
    %v1792 = vpack.c.b16 %v1724, %v1720
    %v1793 = vpack.c.b16 %v1725, %v1721
    %v1794 = vpack.c.b16 %v1730, %v1726
    %v1795 = vpack.c.b16 %v1731, %v1727
    %v1796 = vpack.c.b16 %v1732, %v1728
    %v1797 = vpack.c.b16 %v1733, %v1729
    %1862 = vmatprep.subr.bf16.mxu0 %v1735
    %1863 = vmatpush1.bf16.msra.mxu0 %v1734
    %1864 = vmatprep.subr.bf16.mxu0 %v1739
    %1865 = vmatpush1.bf16.msra.mxu0 %v1738
    %1866 = vmatprep.subr.bf16.mxu0 %v1743
    %1867 = vmatpush1.bf16.msra.mxu0 %v1742
    %1868 = vmatprep.subr.bf16.mxu0 %v1747
    %1869 = vmatpush1.bf16.msra.mxu0 %v1746
    %1870 = vmatprep.subr.bf16.mxu0 %v1751
    %1871 = vmatpush1.bf16.msra.mxu0 %v1750
    %1872 = vmatprep.subr.bf16.mxu0 %v1755
    %1873 = vmatpush1.bf16.msra.mxu0 %v1754
    %1874 = vmatprep.subr.bf16.mxu0 %v1759
    %1875 = vmatpush1.bf16.msra.mxu0 %v1758
    %1876 = vmatprep.subr.bf16.mxu0 %v1763
    %1877 = vmatpush1.bf16.msra.mxu0 %v1762
    %1878 = vmatprep.subr.bf16.mxu0 %v1767
    %1879 = vmatpush1.bf16.msra.mxu0 %v1766
    %1880 = vmatprep.subr.bf16.mxu0 %v1771
    %1881 = vmatpush1.bf16.msra.mxu0 %v1770
    %1882 = vmatprep.subr.bf16.mxu0 %v1775
    %1883 = vmatpush1.bf16.msra.mxu0 %v1774
    %1884 = vmatprep.subr.bf16.mxu0 %v1779
    %1885 = vmatpush1.bf16.msra.mxu0 %v1778
    %1886 = vmatprep.subr.bf16.mxu0 %v1783
    %1887 = vmatpush1.bf16.msra.mxu0 %v1782
    %1888 = vmatprep.subr.bf16.mxu0 %v1787
    %1889 = vmatpush1.bf16.msra.mxu0 %v1786
    %1890 = vmatprep.subr.bf16.mxu0 %v1791
    %1891 = vmatpush1.bf16.msra.mxu0 %v1790
    %1892 = vmatprep.subr.bf16.mxu0 %v1795
    %1893 = vmatpush1.bf16.msra.mxu0 %v1794
    %1894 = vmatprep.mubr.bf16.mxu0 %v1477
    %1895 = vmatmul.mubr.bf16.gmra.mrb[0].mxu0 %v1372
    %v1896 = vpop.f32.mrb[0].mxu0
    %v1897 = vadd.f32 0.0, %v1896
    %v1898 = vpop.f32.mrb[0].mxu0
    %v1899 = vadd.f32 0.0, %v1898
    %v1900 = vpop.f32.mrb[0].mxu0
    %v1901 = vpop.f32.mrb[0].mxu0
    %1902 = vdwg.mxu0
    %1903 = vmatprep.subr.bf16.mxu0 %v1737
    %1904 = vmatpush1.bf16.msra.mxu0 %v1736
    %1905 = vmatprep.subr.bf16.mxu0 %v1741
    %1906 = vmatpush1.bf16.msra.mxu0 %v1740
    %1907 = vmatprep.subr.bf16.mxu0 %v1745
    %1908 = vmatpush1.bf16.msra.mxu0 %v1744
    %1909 = vmatprep.subr.bf16.mxu0 %v1749
    %1910 = vmatpush1.bf16.msra.mxu0 %v1748
    %1911 = vmatprep.subr.bf16.mxu0 %v1753
    %1912 = vmatpush1.bf16.msra.mxu0 %v1752
    %1913 = vmatprep.subr.bf16.mxu0 %v1757
    %1914 = vmatpush1.bf16.msra.mxu0 %v1756
    %1915 = vmatprep.subr.bf16.mxu0 %v1761
    %1916 = vmatpush1.bf16.msra.mxu0 %v1760
    %1917 = vmatprep.subr.bf16.mxu0 %v1765
    %1918 = vmatpush1.bf16.msra.mxu0 %v1764
    %1919 = vmatprep.subr.bf16.mxu0 %v1769
    %1920 = vmatpush1.bf16.msra.mxu0 %v1768
    %1921 = vmatprep.subr.bf16.mxu0 %v1773
    %1922 = vmatpush1.bf16.msra.mxu0 %v1772
    %1923 = vmatprep.subr.bf16.mxu0 %v1777
    %1924 = vmatpush1.bf16.msra.mxu0 %v1776
    %1925 = vmatprep.subr.bf16.mxu0 %v1781
    %1926 = vmatpush1.bf16.msra.mxu0 %v1780
    %1927 = vmatprep.subr.bf16.mxu0 %v1785
    %1928 = vmatpush1.bf16.msra.mxu0 %v1784
    %1929 = vmatprep.subr.bf16.mxu0 %v1789
    %1930 = vmatpush1.bf16.msra.mxu0 %v1788
    %1931 = vmatprep.subr.bf16.mxu0 %v1793
    %1932 = vmatpush1.bf16.msra.mxu0 %v1792
    %1933 = vmatprep.subr.bf16.mxu0 %v1797
    %1934 = vmatpush1.bf16.msra.mxu0 %v1796
    %1935 = vmatprep.mubr.bf16.mxu0 %v1477
    %1936 = vmatmul.mubr.bf16.gmra.mrb[0].mxu0 %v1372
    %v1937 = vpop.f32.mrb[0].mxu0
    %v1938 = vadd.f32 0.0, %v1937
    %v1939 = vpop.f32.mrb[0].mxu0
    %v1940 = vadd.f32 0.0, %v1939
    %v1941 = vpop.f32.mrb[0].mxu0
    %v1942 = vpop.f32.mrb[0].mxu0
    %1943 = vdwg.mxu0
    %v1944 = vadd.f32 %v1051, %v1897
    %v1945 = vadd.f32 %v1055, %v1899
    %v1946 = vadd.f32 %v1059, %v1938
    %v1947 = vadd.f32 %v1063, %v1940
    %v1948 = vmul.f32 %v1944, 0.5
    %v1949 = vmul.f32 %v1945, 0.5
    %v1950 = vmul.f32 %v1946, 0.5
    %v1951 = vtanh.pop %v1948
    %v1952 = vtanh.pop %v1949
    %v1953 = vtanh.pop %v1950
    %v1954 = vmul.f32 %v1951, 0.5
    %v1955 = vmul.f32 %v1952, 0.5
    %v1956 = vmul.f32 %v1953, 0.5
    %v1957 = vadd.f32 %v1954, 0.5
    %v1958 = vadd.f32 %v1955, 0.5
    %v1959 = vadd.f32 %v1956, 0.5
    %v1960 = vtanh.pop %v1947
    %v1961 = vmul.f32 %v1958, 0.0
    %v1962 = vmul.f32 %v1957, %v1960
    %v1963 = vadd.f32 %v1961, %v1962
    %v1964 = vtanh.pop %v1963
    %v1965 = vmul.f32 %v1959, %v1964
    %v1966 = vld [vmem:[%s460] sm:$0xff]
    %v1967 = vld [vmem:[%s460 + $0x8] sm:$0xff]
    %v1968 = vld [vmem:[%s460 + $0x10] sm:$0xff]
    %v1969 = vld [vmem:[%s460 + $0x18] sm:$0xff]
    %v1970 = vpack.c.bf16 %v1476, %v1476
    %1971 = vmatprep.subr.bf16.mxu0 %v1201
    %1972 = vmatpush1.bf16.msra.mxu0 %v1200
    %1973 = vmatprep.subr.bf16.mxu0 %v1205
    %1974 = vmatpush1.bf16.msra.mxu0 %v1204
    %1975 = vmatprep.subr.bf16.mxu0 %v1209
    %1976 = vmatpush1.bf16.msra.mxu0 %v1208
    %1977 = vmatprep.subr.bf16.mxu0 %v1213
    %1978 = vmatpush1.bf16.msra.mxu0 %v1212
    %1979 = vmatprep.subr.bf16.mxu0 %v1217
    %1980 = vmatpush1.bf16.msra.mxu0 %v1216
    %1981 = vmatprep.subr.bf16.mxu0 %v1221
    %1982 = vmatpush1.bf16.msra.mxu0 %v1220
    %1983 = vmatprep.subr.bf16.mxu0 %v1225
    %1984 = vmatpush1.bf16.msra.mxu0 %v1224
    %1985 = vmatprep.subr.bf16.mxu0 %v1229
    %1986 = vmatpush1.bf16.msra.mxu0 %v1228
    %1987 = vmatprep.subr.bf16.mxu0 0
    %1988 = vmatpush1.bf16.msra.mxu0 0
    %1989 = vmatprep.subr.bf16.mxu0 0
    %1990 = vmatpush1.bf16.msra.mxu0 0
    %1991 = vmatprep.subr.bf16.mxu0 0
    %1992 = vmatpush1.bf16.msra.mxu0 0
    %1993 = vmatprep.subr.bf16.mxu0 0
    %1994 = vmatpush1.bf16.msra.mxu0 0
    %1995 = vmatprep.subr.bf16.mxu0 0
    %1996 = vmatpush1.bf16.msra.mxu0 0
    %1997 = vmatprep.subr.bf16.mxu0 0
    %1998 = vmatpush1.bf16.msra.mxu0 0
    %1999 = vmatprep.subr.bf16.mxu0 0
    %2000 = vmatpush1.bf16.msra.mxu0 0
    %2001 = vmatprep.subr.bf16.mxu0 0
    %2002 = vmatpush1.bf16.msra.mxu0 0
    %2003 = vmatprep.mubr.bf16.mxu0 0
    %2004 = vmatmul.mubr.bf16.gmra.mrb[0].mxu0 %v1970
    %v2005 = vpop.f32.mrb[0].mxu0
    %v2006 = vadd.f32 0.0, %v2005
    %v2007 = vpop.f32.mrb[0].mxu0
    %v2008 = vadd.f32 0.0, %v2007
    %v2009 = vpop.f32.mrb[0].mxu0
    %v2010 = vpop.f32.mrb[0].mxu0
    %2011 = vdwg.mxu0
    %2012 = vmatprep.subr.bf16.mxu0 %v1203
    %2013 = vmatpush1.bf16.msra.mxu0 %v1202
    %2014 = vmatprep.subr.bf16.mxu0 %v1207
    %2015 = vmatpush1.bf16.msra.mxu0 %v1206
    %2016 = vmatprep.subr.bf16.mxu0 %v1211
    %2017 = vmatpush1.bf16.msra.mxu0 %v1210
    %2018 = vmatprep.subr.bf16.mxu0 %v1215
    %2019 = vmatpush1.bf16.msra.mxu0 %v1214
    %2020 = vmatprep.subr.bf16.mxu0 %v1219
    %2021 = vmatpush1.bf16.msra.mxu0 %v1218
    %2022 = vmatprep.subr.bf16.mxu0 %v1223
    %2023 = vmatpush1.bf16.msra.mxu0 %v1222
    %2024 = vmatprep.subr.bf16.mxu0 %v1227
    %2025 = vmatpush1.bf16.msra.mxu0 %v1226
    %2026 = vmatprep.subr.bf16.mxu0 %v1231
    %2027 = vmatpush1.bf16.msra.mxu0 %v1230
    %2028 = vmatprep.subr.bf16.mxu0 0
    %2029 = vmatpush1.bf16.msra.mxu0 0
    %2030 = vmatprep.subr.bf16.mxu0 0
    %2031 = vmatpush1.bf16.msra.mxu0 0
    %2032 = vmatprep.subr.bf16.mxu0 0
    %2033 = vmatpush1.bf16.msra.mxu0 0
    %2034 = vmatprep.subr.bf16.mxu0 0
    %2035 = vmatpush1.bf16.msra.mxu0 0
    %2036 = vmatprep.subr.bf16.mxu0 0
    %2037 = vmatpush1.bf16.msra.mxu0 0
    %2038 = vmatprep.subr.bf16.mxu0 0
    %2039 = vmatpush1.bf16.msra.mxu0 0
    %2040 = vmatprep.subr.bf16.mxu0 0
    %2041 = vmatpush1.bf16.msra.mxu0 0
    %2042 = vmatprep.subr.bf16.mxu0 0
    %2043 = vmatpush1.bf16.msra.mxu0 0
    %2044 = vmatprep.mubr.bf16.mxu0 0
    %2045 = vmatmul.mubr.bf16.gmra.mrb[0].mxu0 %v1970
    %v2046 = vpop.f32.mrb[0].mxu0
    %v2047 = vadd.f32 0.0, %v2046
    %v2048 = vpop.f32.mrb[0].mxu0
    %v2049 = vadd.f32 0.0, %v2048
    %v2050 = vpop.f32.mrb[0].mxu0
    %v2051 = vpop.f32.mrb[0].mxu0
    %2052 = vdwg.mxu0
    %v2053 = vadd.f32 %v1966, %v2006
    %v2054 = vadd.f32 %v1967, %v2008
    %v2055 = vadd.f32 %v1968, %v2047
    %v2056 = vadd.f32 %v1969, %v2049
    %v2057 = vmul.f32 %v2053, 0.5
    %v2058 = vmul.f32 %v2054, 0.5
    %v2059 = vmul.f32 %v2055, 0.5
    %v2060 = vtanh.pop %v2057
    %v2061 = vtanh.pop %v2058
    %v2062 = vtanh.pop %v2059
    %v2063 = vmul.f32 %v2060, 0.5
    %v2064 = vmul.f32 %v2061, 0.5
    %v2065 = vmul.f32 %v2062, 0.5
    %v2066 = vadd.f32 %v2063, 0.5
    %v2067 = vadd.f32 %v2064, 0.5
    %v2068 = vadd.f32 %v2065, 0.5
    %v2069 = vtanh.pop %v2056
    %v2070 = vmul.f32 %v2067, %v1474
    %v2071 = vmul.f32 %v2066, %v2069
    %v2072 = vadd.f32 %v2070, %v2071
    %v2073 = vtanh.pop %v2072
    %v2074 = vmul.f32 %v2068, %v2073
    %v2075 = vpack.c.bf16 %v1965, %v1965
    %2076 = vmatprep.subr.bf16.mxu0 %v1735
    %2077 = vmatpush1.bf16.msra.mxu0 %v1734
    %2078 = vmatprep.subr.bf16.mxu0 %v1739
    %2079 = vmatpush1.bf16.msra.mxu0 %v1738
    %2080 = vmatprep.subr.bf16.mxu0 %v1743
    %2081 = vmatpush1.bf16.msra.mxu0 %v1742
    %2082 = vmatprep.subr.bf16.mxu0 %v1747
    %2083 = vmatpush1.bf16.msra.mxu0 %v1746
    %2084 = vmatprep.subr.bf16.mxu0 %v1751
    %2085 = vmatpush1.bf16.msra.mxu0 %v1750
    %2086 = vmatprep.subr.bf16.mxu0 %v1755
    %2087 = vmatpush1.bf16.msra.mxu0 %v1754
    %2088 = vmatprep.subr.bf16.mxu0 %v1759
    %2089 = vmatpush1.bf16.msra.mxu0 %v1758
    %2090 = vmatprep.subr.bf16.mxu0 %v1763
    %2091 = vmatpush1.bf16.msra.mxu0 %v1762
    %2092 = vmatprep.subr.bf16.mxu0 %v1767
    %2093 = vmatpush1.bf16.msra.mxu0 %v1766
    %2094 = vmatprep.subr.bf16.mxu0 %v1771
    %2095 = vmatpush1.bf16.msra.mxu0 %v1770
    %2096 = vmatprep.subr.bf16.mxu0 %v1775
    %2097 = vmatpush1.bf16.msra.mxu0 %v1774
    %2098 = vmatprep.subr.bf16.mxu0 %v1779
    %2099 = vmatpush1.bf16.msra.mxu0 %v1778
    %2100 = vmatprep.subr.bf16.mxu0 %v1783
    %2101 = vmatpush1.bf16.msra.mxu0 %v1782
    %2102 = vmatprep.subr.bf16.mxu0 %v1787
    %2103 = vmatpush1.bf16.msra.mxu0 %v1786
    %2104 = vmatprep.subr.bf16.mxu0 %v1791
    %2105 = vmatpush1.bf16.msra.mxu0 %v1790
    %2106 = vmatprep.subr.bf16.mxu0 %v1795
    %2107 = vmatpush1.bf16.msra.mxu0 %v1794
    %2108 = vmatprep.mubr.bf16.mxu0 %v2075
    %2109 = vmatmul.mubr.bf16.gmra.mrb[0].mxu0 %v1970
    %v2110 = vpop.f32.mrb[0].mxu0
    %v2111 = vadd.f32 0.0, %v2110
    %v2112 = vpop.f32.mrb[0].mxu0
    %v2113 = vadd.f32 0.0, %v2112
    %v2114 = vpop.f32.mrb[0].mxu0
    %v2115 = vpop.f32.mrb[0].mxu0
    %2116 = vdwg.mxu0
    %2117 = vmatprep.subr.bf16.mxu0 %v1737
    %2118 = vmatpush1.bf16.msra.mxu0 %v1736
    %2119 = vmatprep.subr.bf16.mxu0 %v1741
    %2120 = vmatpush1.bf16.msra.mxu0 %v1740
    %2121 = vmatprep.subr.bf16.mxu0 %v1745
    %2122 = vmatpush1.bf16.msra.mxu0 %v1744
    %2123 = vmatprep.subr.bf16.mxu0 %v1749
    %2124 = vmatpush1.bf16.msra.mxu0 %v1748
    %2125 = vmatprep.subr.bf16.mxu0 %v1753
    %2126 = vmatpush1.bf16.msra.mxu0 %v1752
    %2127 = vmatprep.subr.bf16.mxu0 %v1757
    %2128 = vmatpush1.bf16.msra.mxu0 %v1756
    %2129 = vmatprep.subr.bf16.mxu0 %v1761
    %2130 = vmatpush1.bf16.msra.mxu0 %v1760
    %2131 = vmatprep.subr.bf16.mxu0 %v1765
    %2132 = vmatpush1.bf16.msra.mxu0 %v1764
    %2133 = vmatprep.subr.bf16.mxu0 %v1769
    %2134 = vmatpush1.bf16.msra.mxu0 %v1768
    %2135 = vmatprep.subr.bf16.mxu0 %v1773
    %2136 = vmatpush1.bf16.msra.mxu0 %v1772
    %2137 = vmatprep.subr.bf16.mxu0 %v1777
    %2138 = vmatpush1.bf16.msra.mxu0 %v1776
    %2139 = vmatprep.subr.bf16.mxu0 %v1781
    %2140 = vmatpush1.bf16.msra.mxu0 %v1780
    %2141 = vmatprep.subr.bf16.mxu0 %v1785
    %2142 = vmatpush1.bf16.msra.mxu0 %v1784
    %2143 = vmatprep.subr.bf16.mxu0 %v1789
    %2144 = vmatpush1.bf16.msra.mxu0 %v1788
    %2145 = vmatprep.subr.bf16.mxu0 %v1793
    %2146 = vmatpush1.bf16.msra.mxu0 %v1792
    %2147 = vmatprep.subr.bf16.mxu0 %v1797
    %2148 = vmatpush1.bf16.msra.mxu0 %v1796
    %2149 = vmatprep.mubr.bf16.mxu0 %v2075
    %2150 = vmatmul.mubr.bf16.gmra.mrb[0].mxu0 %v1970
    %v2151 = vpop.f32.mrb[0].mxu0
    %v2152 = vadd.f32 0.0, %v2151
    %v2153 = vpop.f32.mrb[0].mxu0
    %v2154 = vadd.f32 0.0, %v2153
    %v2155 = vpop.f32.mrb[0].mxu0
    %v2156 = vpop.f32.mrb[0].mxu0
    %2157 = vdwg.mxu0
    %v2158 = vadd.f32 %v1051, %v2111
    %v2159 = vadd.f32 %v1055, %v2113
    %v2160 = vadd.f32 %v1059, %v2152
    %v2161 = vadd.f32 %v1063, %v2154
    %v2162 = vmul.f32 %v2158, 0.5
    %v2163 = vmul.f32 %v2159, 0.5
    %v2164 = vmul.f32 %v2160, 0.5
    %v2165 = vtanh.pop %v2162
    %v2166 = vtanh.pop %v2163
    %v2167 = vtanh.pop %v2164
    %v2168 = vmul.f32 %v2165, 0.5
    %v2169 = vmul.f32 %v2166, 0.5
    %v2170 = vmul.f32 %v2167, 0.5
    %v2171 = vadd.f32 %v2168, 0.5
    %v2172 = vadd.f32 %v2169, 0.5
    %v2173 = vadd.f32 %v2170, 0.5
    %v2174 = vtanh.pop %v2161
    %v2175 = vmul.f32 %v2172, %v1963
    %v2176 = vmul.f32 %v2171, %v2174
    %v2177 = vadd.f32 %v2175, %v2176
    %v2178 = vtanh.pop %v2177
    %v2179 = vmul.f32 %v2173, %v2178
    %v2180 = vld [vmem:[%s576] sm:$0xff]
    %v2181 = vld [vmem:[%s576 + $0x8] sm:$0xff]
    %v2182 = vld [vmem:[%s576 + $0x10] sm:$0xff]
    %v2183 = vld [vmem:[%s576 + $0x18] sm:$0xff]
    %v2184 = vpack.c.bf16 %v2074, %v2074
    %2185 = vmatprep.subr.bf16.mxu0 %v1201
    %2186 = vmatpush1.bf16.msra.mxu0 %v1200
    %2187 = vmatprep.subr.bf16.mxu0 %v1205
    %2188 = vmatpush1.bf16.msra.mxu0 %v1204
    %2189 = vmatprep.subr.bf16.mxu0 %v1209
    %2190 = vmatpush1.bf16.msra.mxu0 %v1208
    %2191 = vmatprep.subr.bf16.mxu0 %v1213
    %2192 = vmatpush1.bf16.msra.mxu0 %v1212
    %2193 = vmatprep.subr.bf16.mxu0 %v1217
    %2194 = vmatpush1.bf16.msra.mxu0 %v1216
    %2195 = vmatprep.subr.bf16.mxu0 %v1221
    %2196 = vmatpush1.bf16.msra.mxu0 %v1220
    %2197 = vmatprep.subr.bf16.mxu0 %v1225
    %2198 = vmatpush1.bf16.msra.mxu0 %v1224
    %2199 = vmatprep.subr.bf16.mxu0 %v1229
    %2200 = vmatpush1.bf16.msra.mxu0 %v1228
    %2201 = vmatprep.subr.bf16.mxu0 0
    %2202 = vmatpush1.bf16.msra.mxu0 0
    %2203 = vmatprep.subr.bf16.mxu0 0
    %2204 = vmatpush1.bf16.msra.mxu0 0
    %2205 = vmatprep.subr.bf16.mxu0 0
    %2206 = vmatpush1.bf16.msra.mxu0 0
    %2207 = vmatprep.subr.bf16.mxu0 0
    %2208 = vmatpush1.bf16.msra.mxu0 0
    %2209 = vmatprep.subr.bf16.mxu0 0
    %2210 = vmatpush1.bf16.msra.mxu0 0
    %2211 = vmatprep.subr.bf16.mxu0 0
    %2212 = vmatpush1.bf16.msra.mxu0 0
    %2213 = vmatprep.subr.bf16.mxu0 0
    %2214 = vmatpush1.bf16.msra.mxu0 0
    %2215 = vmatprep.subr.bf16.mxu0 0
    %2216 = vmatpush1.bf16.msra.mxu0 0
    %2217 = vmatprep.mubr.bf16.mxu0 0
    %2218 = vmatmul.mubr.bf16.gmra.mrb[0].mxu0 %v2184
    %v2219 = vpop.f32.mrb[0].mxu0
    %v2220 = vadd.f32 0.0, %v2219
    %v2221 = vpop.f32.mrb[0].mxu0
    %v2222 = vadd.f32 0.0, %v2221
    %v2223 = vpop.f32.mrb[0].mxu0
    %v2224 = vpop.f32.mrb[0].mxu0
    %2225 = vdwg.mxu0
    %2226 = vmatprep.subr.bf16.mxu0 %v1203
    %2227 = vmatpush1.bf16.msra.mxu0 %v1202
    %2228 = vmatprep.subr.bf16.mxu0 %v1207
    %2229 = vmatpush1.bf16.msra.mxu0 %v1206
    %2230 = vmatprep.subr.bf16.mxu0 %v1211
    %2231 = vmatpush1.bf16.msra.mxu0 %v1210
    %2232 = vmatprep.subr.bf16.mxu0 %v1215
    %2233 = vmatpush1.bf16.msra.mxu0 %v1214
    %2234 = vmatprep.subr.bf16.mxu0 %v1219
    %2235 = vmatpush1.bf16.msra.mxu0 %v1218
    %2236 = vmatprep.subr.bf16.mxu0 %v1223
    %2237 = vmatpush1.bf16.msra.mxu0 %v1222
    %2238 = vmatprep.subr.bf16.mxu0 %v1227
    %2239 = vmatpush1.bf16.msra.mxu0 %v1226
    %2240 = vmatprep.subr.bf16.mxu0 %v1231
    %2241 = vmatpush1.bf16.msra.mxu0 %v1230
    %2242 = vmatprep.subr.bf16.mxu0 0
    %2243 = vmatpush1.bf16.msra.mxu0 0
    %2244 = vmatprep.subr.bf16.mxu0 0
    %2245 = vmatpush1.bf16.msra.mxu0 0
    %2246 = vmatprep.subr.bf16.mxu0 0
    %2247 = vmatpush1.bf16.msra.mxu0 0
    %2248 = vmatprep.subr.bf16.mxu0 0
    %2249 = vmatpush1.bf16.msra.mxu0 0
    %2250 = vmatprep.subr.bf16.mxu0 0
    %2251 = vmatpush1.bf16.msra.mxu0 0
    %2252 = vmatprep.subr.bf16.mxu0 0
    %2253 = vmatpush1.bf16.msra.mxu0 0
    %2254 = vmatprep.subr.bf16.mxu0 0
    %2255 = vmatpush1.bf16.msra.mxu0 0
    %2256 = vmatprep.subr.bf16.mxu0 0
    %2257 = vmatpush1.bf16.msra.mxu0 0
    %2258 = vmatprep.mubr.bf16.mxu0 0
    %2259 = vmatmul.mubr.bf16.gmra.mrb[0].mxu0 %v2184
    %v2260 = vpop.f32.mrb[0].mxu0
    %v2261 = vadd.f32 0.0, %v2260
    %v2262 = vpop.f32.mrb[0].mxu0
    %v2263 = vadd.f32 0.0, %v2262
    %v2264 = vpop.f32.mrb[0].mxu0
    %v2265 = vpop.f32.mrb[0].mxu0
    %2266 = vdwg.mxu0
    %v2267 = vadd.f32 %v2180, %v2220
    %v2268 = vadd.f32 %v2181, %v2222
    %v2269 = vadd.f32 %v2182, %v2261
    %v2270 = vadd.f32 %v2183, %v2263
    %v2271 = vmul.f32 %v2267, 0.5
    %v2272 = vmul.f32 %v2268, 0.5
    %v2273 = vmul.f32 %v2269, 0.5
    %v2274 = vtanh.pop %v2271
    %v2275 = vtanh.pop %v2272
    %v2276 = vtanh.pop %v2273
    %v2277 = vmul.f32 %v2274, 0.5
    %v2278 = vmul.f32 %v2275, 0.5
    %v2279 = vmul.f32 %v2276, 0.5
    %v2280 = vadd.f32 %v2277, 0.5
    %v2281 = vadd.f32 %v2278, 0.5
    %v2282 = vadd.f32 %v2279, 0.5
    %v2283 = vtanh.pop %v2270
    %v2284 = vmul.f32 %v2281, %v2072
    %v2285 = vmul.f32 %v2280, %v2283
    %v2286 = vadd.f32 %v2284, %v2285
    %v2287 = vtanh.pop %v2286
    %v2288 = vmul.f32 %v2282, %v2287
    %v2289 = vpack.c.bf16 %v2179, %v2179
    %2290 = vmatprep.subr.bf16.mxu0 %v1735
    %2291 = vmatpush1.bf16.msra.mxu0 %v1734
    %2292 = vmatprep.subr.bf16.mxu0 %v1739
    %2293 = vmatpush1.bf16.msra.mxu0 %v1738
    %2294 = vmatprep.subr.bf16.mxu0 %v1743
    %2295 = vmatpush1.bf16.msra.mxu0 %v1742
    %2296 = vmatprep.subr.bf16.mxu0 %v1747
    %2297 = vmatpush1.bf16.msra.mxu0 %v1746
    %2298 = vmatprep.subr.bf16.mxu0 %v1751
    %2299 = vmatpush1.bf16.msra.mxu0 %v1750
    %2300 = vmatprep.subr.bf16.mxu0 %v1755
    %2301 = vmatpush1.bf16.msra.mxu0 %v1754
    %2302 = vmatprep.subr.bf16.mxu0 %v1759
    %2303 = vmatpush1.bf16.msra.mxu0 %v1758
    %2304 = vmatprep.subr.bf16.mxu0 %v1763
    %2305 = vmatpush1.bf16.msra.mxu0 %v1762
    %2306 = vmatprep.subr.bf16.mxu0 %v1767
    %2307 = vmatpush1.bf16.msra.mxu0 %v1766
    %2308 = vmatprep.subr.bf16.mxu0 %v1771
    %2309 = vmatpush1.bf16.msra.mxu0 %v1770
    %2310 = vmatprep.subr.bf16.mxu0 %v1775
    %2311 = vmatpush1.bf16.msra.mxu0 %v1774
    %2312 = vmatprep.subr.bf16.mxu0 %v1779
    %2313 = vmatpush1.bf16.msra.mxu0 %v1778
    %2314 = vmatprep.subr.bf16.mxu0 %v1783
    %2315 = vmatpush1.bf16.msra.mxu0 %v1782
    %2316 = vmatprep.subr.bf16.mxu0 %v1787
    %2317 = vmatpush1.bf16.msra.mxu0 %v1786
    %2318 = vmatprep.subr.bf16.mxu0 %v1791
    %2319 = vmatpush1.bf16.msra.mxu0 %v1790
    %2320 = vmatprep.subr.bf16.mxu0 %v1795
    %2321 = vmatpush1.bf16.msra.mxu0 %v1794
    %2322 = vmatprep.mubr.bf16.mxu0 %v2289
    %2323 = vmatmul.mubr.bf16.gmra.mrb[0].mxu0 %v2184
    %v2324 = vpop.f32.mrb[0].mxu0
    %v2325 = vadd.f32 0.0, %v2324
    %v2326 = vpop.f32.mrb[0].mxu0
    %v2327 = vadd.f32 0.0, %v2326
    %v2328 = vpop.f32.mrb[0].mxu0
    %v2329 = vpop.f32.mrb[0].mxu0
    %2330 = vdwg.mxu0
    %2331 = vmatprep.subr.bf16.mxu0 %v1737
    %2332 = vmatpush1.bf16.msra.mxu0 %v1736
    %2333 = vmatprep.subr.bf16.mxu0 %v1741
    %2334 = vmatpush1.bf16.msra.mxu0 %v1740
    %2335 = vmatprep.subr.bf16.mxu0 %v1745
    %2336 = vmatpush1.bf16.msra.mxu0 %v1744
    %2337 = vmatprep.subr.bf16.mxu0 %v1749
    %2338 = vmatpush1.bf16.msra.mxu0 %v1748
    %2339 = vmatprep.subr.bf16.mxu0 %v1753
    %2340 = vmatpush1.bf16.msra.mxu0 %v1752
    %2341 = vmatprep.subr.bf16.mxu0 %v1757
    %2342 = vmatpush1.bf16.msra.mxu0 %v1756
    %2343 = vmatprep.subr.bf16.mxu0 %v1761
    %2344 = vmatpush1.bf16.msra.mxu0 %v1760
    %2345 = vmatprep.subr.bf16.mxu0 %v1765
    %2346 = vmatpush1.bf16.msra.mxu0 %v1764
    %2347 = vmatprep.subr.bf16.mxu0 %v1769
    %2348 = vmatpush1.bf16.msra.mxu0 %v1768
    %2349 = vmatprep.subr.bf16.mxu0 %v1773
    %2350 = vmatpush1.bf16.msra.mxu0 %v1772
    %2351 = vmatprep.subr.bf16.mxu0 %v1777
    %2352 = vmatpush1.bf16.msra.mxu0 %v1776
    %2353 = vmatprep.subr.bf16.mxu0 %v1781
    %2354 = vmatpush1.bf16.msra.mxu0 %v1780
    %2355 = vmatprep.subr.bf16.mxu0 %v1785
    %2356 = vmatpush1.bf16.msra.mxu0 %v1784
    %2357 = vmatprep.subr.bf16.mxu0 %v1789
    %2358 = vmatpush1.bf16.msra.mxu0 %v1788
    %2359 = vmatprep.subr.bf16.mxu0 %v1793
    %2360 = vmatpush1.bf16.msra.mxu0 %v1792
    %2361 = vmatprep.subr.bf16.mxu0 %v1797
    %2362 = vmatpush1.bf16.msra.mxu0 %v1796
    %2363 = vmatprep.mubr.bf16.mxu0 %v2289
    %2364 = vmatmul.mubr.bf16.gmra.mrb[0].mxu0 %v2184
    %v2365 = vpop.f32.mrb[0].mxu0
    %v2366 = vadd.f32 0.0, %v2365
    %v2367 = vpop.f32.mrb[0].mxu0
    %v2368 = vadd.f32 0.0, %v2367
    %v2369 = vpop.f32.mrb[0].mxu0
    %v2370 = vpop.f32.mrb[0].mxu0
    %2371 = vdwg.mxu0
    %v2372 = vadd.f32 %v1051, %v2325
    %v2373 = vadd.f32 %v1055, %v2327
    %v2374 = vadd.f32 %v1059, %v2366
    %v2375 = vadd.f32 %v1063, %v2368
    %v2376 = vmul.f32 %v2372, 0.5
    %v2377 = vmul.f32 %v2373, 0.5
    %v2378 = vmul.f32 %v2374, 0.5
    %v2379 = vtanh.pop %v2376
    %v2380 = vtanh.pop %v2377
    %v2381 = vtanh.pop %v2378
    %v2382 = vmul.f32 %v2379, 0.5
    %v2383 = vmul.f32 %v2380, 0.5
    %v2384 = vmul.f32 %v2381, 0.5
    %v2385 = vadd.f32 %v2382, 0.5
    %v2386 = vadd.f32 %v2383, 0.5
    %v2387 = vadd.f32 %v2384, 0.5
    %v2388 = vtanh.pop %v2375
    %v2389 = vmul.f32 %v2386, %v2177
    %v2390 = vmul.f32 %v2385, %v2388
    %v2391 = vadd.f32 %v2389, %v2390
    %v2392 = vtanh.pop %v2391
    %v2393 = vmul.f32 %v2387, %v2392
    %v2394 = vld [vmem:[%s692] sm:$0xff]
    %v2395 = vld [vmem:[%s692 + $0x8] sm:$0xff]
    %v2396 = vld [vmem:[%s692 + $0x10] sm:$0xff]
    %v2397 = vld [vmem:[%s692 + $0x18] sm:$0xff]
    %v2398 = vpack.c.bf16 %v2288, %v2288
    %2399 = vmatprep.subr.bf16.mxu0 %v1201
    %2400 = vmatpush1.bf16.msra.mxu0 %v1200
    %2401 = vmatprep.subr.bf16.mxu0 %v1205
    %2402 = vmatpush1.bf16.msra.mxu0 %v1204
    %2403 = vmatprep.subr.bf16.mxu0 %v1209
    %2404 = vmatpush1.bf16.msra.mxu0 %v1208
    %2405 = vmatprep.subr.bf16.mxu0 %v1213
    %2406 = vmatpush1.bf16.msra.mxu0 %v1212
    %2407 = vmatprep.subr.bf16.mxu0 %v1217
    %2408 = vmatpush1.bf16.msra.mxu0 %v1216
    %2409 = vmatprep.subr.bf16.mxu0 %v1221
    %2410 = vmatpush1.bf16.msra.mxu0 %v1220
    %2411 = vmatprep.subr.bf16.mxu0 %v1225
    %2412 = vmatpush1.bf16.msra.mxu0 %v1224
    %2413 = vmatprep.subr.bf16.mxu0 %v1229
    %2414 = vmatpush1.bf16.msra.mxu0 %v1228
    %2415 = vmatprep.subr.bf16.mxu0 0
    %2416 = vmatpush1.bf16.msra.mxu0 0
    %2417 = vmatprep.subr.bf16.mxu0 0
    %2418 = vmatpush1.bf16.msra.mxu0 0
    %2419 = vmatprep.subr.bf16.mxu0 0
    %2420 = vmatpush1.bf16.msra.mxu0 0
    %2421 = vmatprep.subr.bf16.mxu0 0
    %2422 = vmatpush1.bf16.msra.mxu0 0
    %2423 = vmatprep.subr.bf16.mxu0 0
    %2424 = vmatpush1.bf16.msra.mxu0 0
    %2425 = vmatprep.subr.bf16.mxu0 0
    %2426 = vmatpush1.bf16.msra.mxu0 0
    %2427 = vmatprep.subr.bf16.mxu0 0
    %2428 = vmatpush1.bf16.msra.mxu0 0
    %2429 = vmatprep.subr.bf16.mxu0 0
    %2430 = vmatpush1.bf16.msra.mxu0 0
    %2431 = vmatprep.mubr.bf16.mxu0 0
    %2432 = vmatmul.mubr.bf16.gmra.mrb[0].mxu0 %v2398
    %v2433 = vpop.f32.mrb[0].mxu0
    %v2434 = vadd.f32 0.0, %v2433
    %v2435 = vpop.f32.mrb[0].mxu0
    %v2436 = vadd.f32 0.0, %v2435
    %v2437 = vpop.f32.mrb[0].mxu0
    %v2438 = vpop.f32.mrb[0].mxu0
    %2439 = vdwg.mxu0
    %2440 = vmatprep.subr.bf16.mxu0 %v1203
    %2441 = vmatpush1.bf16.msra.mxu0 %v1202
    %2442 = vmatprep.subr.bf16.mxu0 %v1207
    %2443 = vmatpush1.bf16.msra.mxu0 %v1206
    %2444 = vmatprep.subr.bf16.mxu0 %v1211
    %2445 = vmatpush1.bf16.msra.mxu0 %v1210
    %2446 = vmatprep.subr.bf16.mxu0 %v1215
    %2447 = vmatpush1.bf16.msra.mxu0 %v1214
    %2448 = vmatprep.subr.bf16.mxu0 %v1219
    %2449 = vmatpush1.bf16.msra.mxu0 %v1218
    %2450 = vmatprep.subr.bf16.mxu0 %v1223
    %2451 = vmatpush1.bf16.msra.mxu0 %v1222
    %2452 = vmatprep.subr.bf16.mxu0 %v1227
    %2453 = vmatpush1.bf16.msra.mxu0 %v1226
    %2454 = vmatprep.subr.bf16.mxu0 %v1231
    %2455 = vmatpush1.bf16.msra.mxu0 %v1230
    %2456 = vmatprep.subr.bf16.mxu0 0
    %2457 = vmatpush1.bf16.msra.mxu0 0
    %2458 = vmatprep.subr.bf16.mxu0 0
    %2459 = vmatpush1.bf16.msra.mxu0 0
    %2460 = vmatprep.subr.bf16.mxu0 0
    %2461 = vmatpush1.bf16.msra.mxu0 0
    %2462 = vmatprep.subr.bf16.mxu0 0
    %2463 = vmatpush1.bf16.msra.mxu0 0
    %2464 = vmatprep.subr.bf16.mxu0 0
    %2465 = vmatpush1.bf16.msra.mxu0 0
    %2466 = vmatprep.subr.bf16.mxu0 0
    %2467 = vmatpush1.bf16.msra.mxu0 0
    %2468 = vmatprep.subr.bf16.mxu0 0
    %2469 = vmatpush1.bf16.msra.mxu0 0
    %2470 = vmatprep.subr.bf16.mxu0 0
    %2471 = vmatpush1.bf16.msra.mxu0 0
    %2472 = vmatprep.mubr.bf16.mxu0 0
    %2473 = vmatmul.mubr.bf16.gmra.mrb[0].mxu0 %v2398
    %v2474 = vpop.f32.mrb[0].mxu0
    %v2475 = vadd.f32 0.0, %v2474
    %v2476 = vpop.f32.mrb[0].mxu0
    %v2477 = vadd.f32 0.0, %v2476
    %v2478 = vpop.f32.mrb[0].mxu0
    %v2479 = vpop.f32.mrb[0].mxu0
    %2480 = vdwg.mxu0
    %v2481 = vadd.f32 %v2394, %v2434
    %v2482 = vadd.f32 %v2395, %v2436
    %v2483 = vadd.f32 %v2396, %v2475
    %v2484 = vadd.f32 %v2397, %v2477
    %v2485 = vmul.f32 %v2481, 0.5
    %v2486 = vmul.f32 %v2482, 0.5
    %v2487 = vmul.f32 %v2483, 0.5
    %v2488 = vtanh.pop %v2485
    %v2489 = vtanh.pop %v2486
    %v2490 = vtanh.pop %v2487
    %v2491 = vmul.f32 %v2488, 0.5
    %v2492 = vmul.f32 %v2489, 0.5
    %v2493 = vmul.f32 %v2490, 0.5
    %v2494 = vadd.f32 %v2491, 0.5
    %v2495 = vadd.f32 %v2492, 0.5
    %v2496 = vadd.f32 %v2493, 0.5
    %v2497 = vtanh.pop %v2484
    %v2498 = vmul.f32 %v2495, %v2286
    %v2499 = vmul.f32 %v2494, %v2497
    %v2500 = vadd.f32 %v2498, %v2499
    %v2501 = vtanh.pop %v2500
    %v2502 = vmul.f32 %v2496, %v2501
    %v2503 = vpack.c.bf16 %v2393, %v2393
    %2504 = vmatprep.subr.bf16.mxu0 %v1735
    %2505 = vmatpush1.bf16.msra.mxu0 %v1734
    %2506 = vmatprep.subr.bf16.mxu0 %v1739
    %2507 = vmatpush1.bf16.msra.mxu0 %v1738
    %2508 = vmatprep.subr.bf16.mxu0 %v1743
    %2509 = vmatpush1.bf16.msra.mxu0 %v1742
    %2510 = vmatprep.subr.bf16.mxu0 %v1747
    %2511 = vmatpush1.bf16.msra.mxu0 %v1746
    %2512 = vmatprep.subr.bf16.mxu0 %v1751
    %2513 = vmatpush1.bf16.msra.mxu0 %v1750
    %2514 = vmatprep.subr.bf16.mxu0 %v1755
    %2515 = vmatpush1.bf16.msra.mxu0 %v1754
    %2516 = vmatprep.subr.bf16.mxu0 %v1759
    %2517 = vmatpush1.bf16.msra.mxu0 %v1758
    %2518 = vmatprep.subr.bf16.mxu0 %v1763
    %2519 = vmatpush1.bf16.msra.mxu0 %v1762
    %2520 = vmatprep.subr.bf16.mxu0 %v1767
    %2521 = vmatpush1.bf16.msra.mxu0 %v1766
    %2522 = vmatprep.subr.bf16.mxu0 %v1771
    %2523 = vmatpush1.bf16.msra.mxu0 %v1770
    %2524 = vmatprep.subr.bf16.mxu0 %v1775
    %2525 = vmatpush1.bf16.msra.mxu0 %v1774
    %2526 = vmatprep.subr.bf16.mxu0 %v1779
    %2527 = vmatpush1.bf16.msra.mxu0 %v1778
    %2528 = vmatprep.subr.bf16.mxu0 %v1783
    %2529 = vmatpush1.bf16.msra.mxu0 %v1782
    %2530 = vmatprep.subr.bf16.mxu0 %v1787
    %2531 = vmatpush1.bf16.msra.mxu0 %v1786
    %2532 = vmatprep.subr.bf16.mxu0 %v1791
    %2533 = vmatpush1.bf16.msra.mxu0 %v1790
    %2534 = vmatprep.subr.bf16.mxu0 %v1795
    %2535 = vmatpush1.bf16.msra.mxu0 %v1794
    %2536 = vmatprep.mubr.bf16.mxu0 %v2503
    %2537 = vmatmul.mubr.bf16.gmra.mrb[0].mxu0 %v2398
    %v2538 = vpop.f32.mrb[0].mxu0
    %v2539 = vadd.f32 0.0, %v2538
    %v2540 = vpop.f32.mrb[0].mxu0
    %v2541 = vadd.f32 0.0, %v2540
    %v2542 = vpop.f32.mrb[0].mxu0
    %v2543 = vpop.f32.mrb[0].mxu0
    %2544 = vdwg.mxu0
    %2545 = vmatprep.subr.bf16.mxu0 %v1737
    %2546 = vmatpush1.bf16.msra.mxu0 %v1736
    %2547 = vmatprep.subr.bf16.mxu0 %v1741
    %2548 = vmatpush1.bf16.msra.mxu0 %v1740
    %2549 = vmatprep.subr.bf16.mxu0 %v1745
    %2550 = vmatpush1.bf16.msra.mxu0 %v1744
    %2551 = vmatprep.subr.bf16.mxu0 %v1749
    %2552 = vmatpush1.bf16.msra.mxu0 %v1748
    %2553 = vmatprep.subr.bf16.mxu0 %v1753
    %2554 = vmatpush1.bf16.msra.mxu0 %v1752
    %2555 = vmatprep.subr.bf16.mxu0 %v1757
    %2556 = vmatpush1.bf16.msra.mxu0 %v1756
    %2557 = vmatprep.subr.bf16.mxu0 %v1761
    %2558 = vmatpush1.bf16.msra.mxu0 %v1760
    %2559 = vmatprep.subr.bf16.mxu0 %v1765
    %2560 = vmatpush1.bf16.msra.mxu0 %v1764
    %2561 = vmatprep.subr.bf16.mxu0 %v1769
    %2562 = vmatpush1.bf16.msra.mxu0 %v1768
    %2563 = vmatprep.subr.bf16.mxu0 %v1773
    %2564 = vmatpush1.bf16.msra.mxu0 %v1772
    %2565 = vmatprep.subr.bf16.mxu0 %v1777
    %2566 = vmatpush1.bf16.msra.mxu0 %v1776
    %2567 = vmatprep.subr.bf16.mxu0 %v1781
    %2568 = vmatpush1.bf16.msra.mxu0 %v1780
    %2569 = vmatprep.subr.bf16.mxu0 %v1785
    %2570 = vmatpush1.bf16.msra.mxu0 %v1784
    %2571 = vmatprep.subr.bf16.mxu0 %v1789
    %2572 = vmatpush1.bf16.msra.mxu0 %v1788
    %2573 = vmatprep.subr.bf16.mxu0 %v1793
    %2574 = vmatpush1.bf16.msra.mxu0 %v1792
    %2575 = vmatprep.subr.bf16.mxu0 %v1797
    %2576 = vmatpush1.bf16.msra.mxu0 %v1796
    %2577 = vmatprep.mubr.bf16.mxu0 %v2503
    %2578 = vmatmul.mubr.bf16.gmra.mrb[0].mxu0 %v2398
    %v2579 = vpop.f32.mrb[0].mxu0
    %v2580 = vadd.f32 0.0, %v2579
    %v2581 = vpop.f32.mrb[0].mxu0
    %v2582 = vadd.f32 0.0, %v2581
    %v2583 = vpop.f32.mrb[0].mxu0
    %v2584 = vpop.f32.mrb[0].mxu0
    %2585 = vdwg.mxu0
    %v2586 = vadd.f32 %v1051, %v2539
    %v2587 = vadd.f32 %v1055, %v2541
    %v2588 = vadd.f32 %v1059, %v2580
    %v2589 = vadd.f32 %v1063, %v2582
    %v2590 = vmul.f32 %v2586, 0.5
    %v2591 = vmul.f32 %v2587, 0.5
    %v2592 = vmul.f32 %v2588, 0.5
    %v2593 = vtanh.pop %v2590
    %v2594 = vtanh.pop %v2591
    %v2595 = vtanh.pop %v2592
    %v2596 = vmul.f32 %v2593, 0.5
    %v2597 = vmul.f32 %v2594, 0.5
    %v2598 = vmul.f32 %v2595, 0.5
    %v2599 = vadd.f32 %v2596, 0.5
    %v2600 = vadd.f32 %v2597, 0.5
    %v2601 = vadd.f32 %v2598, 0.5
    %v2602 = vtanh.pop %v2589
    %v2603 = vmul.f32 %v2600, %v2391
    %v2604 = vmul.f32 %v2599, %v2602
    %v2605 = vadd.f32 %v2603, %v2604
    %v2606 = vtanh.pop %v2605
    %v2607 = vmul.f32 %v2601, %v2606
    %v2608 = vld [vmem:[%s808] sm:$0xff]
    %v2609 = vld [vmem:[%s808 + $0x8] sm:$0xff]
    %v2610 = vld [vmem:[%s808 + $0x10] sm:$0xff]
    %v2611 = vld [vmem:[%s808 + $0x18] sm:$0xff]
    %v2612 = vpack.c.bf16 %v2502, %v2502
    %2613 = vmatprep.subr.bf16.mxu0 %v1201
    %2614 = vmatpush1.bf16.msra.mxu0 %v1200
    %2615 = vmatprep.subr.bf16.mxu0 %v1205
    %2616 = vmatpush1.bf16.msra.mxu0 %v1204
    %2617 = vmatprep.subr.bf16.mxu0 %v1209
    %2618 = vmatpush1.bf16.msra.mxu0 %v1208
    %2619 = vmatprep.subr.bf16.mxu0 %v1213
    %2620 = vmatpush1.bf16.msra.mxu0 %v1212
    %2621 = vmatprep.subr.bf16.mxu0 %v1217
    %2622 = vmatpush1.bf16.msra.mxu0 %v1216
    %2623 = vmatprep.subr.bf16.mxu0 %v1221
    %2624 = vmatpush1.bf16.msra.mxu0 %v1220
    %2625 = vmatprep.subr.bf16.mxu0 %v1225
    %2626 = vmatpush1.bf16.msra.mxu0 %v1224
    %2627 = vmatprep.subr.bf16.mxu0 %v1229
    %2628 = vmatpush1.bf16.msra.mxu0 %v1228
    %2629 = vmatprep.subr.bf16.mxu0 0
    %2630 = vmatpush1.bf16.msra.mxu0 0
    %2631 = vmatprep.subr.bf16.mxu0 0
    %2632 = vmatpush1.bf16.msra.mxu0 0
    %2633 = vmatprep.subr.bf16.mxu0 0
    %2634 = vmatpush1.bf16.msra.mxu0 0
    %2635 = vmatprep.subr.bf16.mxu0 0
    %2636 = vmatpush1.bf16.msra.mxu0 0
    %2637 = vmatprep.subr.bf16.mxu0 0
    %2638 = vmatpush1.bf16.msra.mxu0 0
    %2639 = vmatprep.subr.bf16.mxu0 0
    %2640 = vmatpush1.bf16.msra.mxu0 0
    %2641 = vmatprep.subr.bf16.mxu0 0
    %2642 = vmatpush1.bf16.msra.mxu0 0
    %2643 = vmatprep.subr.bf16.mxu0 0
    %2644 = vmatpush1.bf16.msra.mxu0 0
    %2645 = vmatprep.mubr.bf16.mxu0 0
    %2646 = vmatmul.mubr.bf16.gmra.mrb[0].mxu0 %v2612
    %v2647 = vpop.f32.mrb[0].mxu0
    %v2648 = vadd.f32 0.0, %v2647
    %v2649 = vpop.f32.mrb[0].mxu0
    %v2650 = vadd.f32 0.0, %v2649
    %v2651 = vpop.f32.mrb[0].mxu0
    %v2652 = vpop.f32.mrb[0].mxu0
    %2653 = vdwg.mxu0
    %2654 = vmatprep.subr.bf16.mxu0 %v1203
    %2655 = vmatpush1.bf16.msra.mxu0 %v1202
    %2656 = vmatprep.subr.bf16.mxu0 %v1207
    %2657 = vmatpush1.bf16.msra.mxu0 %v1206
    %2658 = vmatprep.subr.bf16.mxu0 %v1211
    %2659 = vmatpush1.bf16.msra.mxu0 %v1210
    %2660 = vmatprep.subr.bf16.mxu0 %v1215
    %2661 = vmatpush1.bf16.msra.mxu0 %v1214
    %2662 = vmatprep.subr.bf16.mxu0 %v1219
    %2663 = vmatpush1.bf16.msra.mxu0 %v1218
    %2664 = vmatprep.subr.bf16.mxu0 %v1223
    %2665 = vmatpush1.bf16.msra.mxu0 %v1222
    %2666 = vmatprep.subr.bf16.mxu0 %v1227
    %2667 = vmatpush1.bf16.msra.mxu0 %v1226
    %2668 = vmatprep.subr.bf16.mxu0 %v1231
    %2669 = vmatpush1.bf16.msra.mxu0 %v1230
    %2670 = vmatprep.subr.bf16.mxu0 0
    %2671 = vmatpush1.bf16.msra.mxu0 0
    %2672 = vmatprep.subr.bf16.mxu0 0
    %2673 = vmatpush1.bf16.msra.mxu0 0
    %2674 = vmatprep.subr.bf16.mxu0 0
    %2675 = vmatpush1.bf16.msra.mxu0 0
    %2676 = vmatprep.subr.bf16.mxu0 0
    %2677 = vmatpush1.bf16.msra.mxu0 0
    %2678 = vmatprep.subr.bf16.mxu0 0
    %2679 = vmatpush1.bf16.msra.mxu0 0
    %2680 = vmatprep.subr.bf16.mxu0 0
    %2681 = vmatpush1.bf16.msra.mxu0 0
    %2682 = vmatprep.subr.bf16.mxu0 0
    %2683 = vmatpush1.bf16.msra.mxu0 0
    %2684 = vmatprep.subr.bf16.mxu0 0
    %2685 = vmatpush1.bf16.msra.mxu0 0
    %2686 = vmatprep.mubr.bf16.mxu0 0
    %2687 = vmatmul.mubr.bf16.gmra.mrb[0].mxu0 %v2612
    %v2688 = vpop.f32.mrb[0].mxu0
    %v2689 = vadd.f32 0.0, %v2688
    %v2690 = vpop.f32.mrb[0].mxu0
    %v2691 = vadd.f32 0.0, %v2690
    %v2692 = vpop.f32.mrb[0].mxu0
    %v2693 = vpop.f32.mrb[0].mxu0
    %2694 = vdwg.mxu0
    %v2695 = vadd.f32 %v2608, %v2648
    %v2696 = vadd.f32 %v2609, %v2650
    %v2697 = vadd.f32 %v2610, %v2689
    %v2698 = vadd.f32 %v2611, %v2691
    %v2699 = vmul.f32 %v2695, 0.5
    %v2700 = vmul.f32 %v2696, 0.5
    %v2701 = vmul.f32 %v2697, 0.5
    %v2702 = vtanh.pop %v2699
    %v2703 = vtanh.pop %v2700
    %v2704 = vtanh.pop %v2701
    %v2705 = vmul.f32 %v2702, 0.5
    %v2706 = vmul.f32 %v2703, 0.5
    %v2707 = vmul.f32 %v2704, 0.5
    %v2708 = vadd.f32 %v2705, 0.5
    %v2709 = vadd.f32 %v2706, 0.5
    %v2710 = vadd.f32 %v2707, 0.5
    %v2711 = vtanh.pop %v2698
    %v2712 = vmul.f32 %v2709, %v2500
    %v2713 = vmul.f32 %v2708, %v2711
    %v2714 = vadd.f32 %v2712, %v2713
    %v2715 = vtanh.pop %v2714
    %v2716 = vmul.f32 %v2710, %v2715
    %v2717 = vpack.c.bf16 %v2607, %v2607
    %2718 = vmatprep.subr.bf16.mxu0 %v1735
    %2719 = vmatpush1.bf16.msra.mxu0 %v1734
    %2720 = vmatprep.subr.bf16.mxu0 %v1739
    %2721 = vmatpush1.bf16.msra.mxu0 %v1738
    %2722 = vmatprep.subr.bf16.mxu0 %v1743
    %2723 = vmatpush1.bf16.msra.mxu0 %v1742
    %2724 = vmatprep.subr.bf16.mxu0 %v1747
    %2725 = vmatpush1.bf16.msra.mxu0 %v1746
    %2726 = vmatprep.subr.bf16.mxu0 %v1751
    %2727 = vmatpush1.bf16.msra.mxu0 %v1750
    %2728 = vmatprep.subr.bf16.mxu0 %v1755
    %2729 = vmatpush1.bf16.msra.mxu0 %v1754
    %2730 = vmatprep.subr.bf16.mxu0 %v1759
    %2731 = vmatpush1.bf16.msra.mxu0 %v1758
    %2732 = vmatprep.subr.bf16.mxu0 %v1763
    %2733 = vmatpush1.bf16.msra.mxu0 %v1762
    %2734 = vmatprep.subr.bf16.mxu0 %v1767
    %2735 = vmatpush1.bf16.msra.mxu0 %v1766
    %2736 = vmatprep.subr.bf16.mxu0 %v1771
    %2737 = vmatpush1.bf16.msra.mxu0 %v1770
    %2738 = vmatprep.subr.bf16.mxu0 %v1775
    %2739 = vmatpush1.bf16.msra.mxu0 %v1774
    %2740 = vmatprep.subr.bf16.mxu0 %v1779
    %2741 = vmatpush1.bf16.msra.mxu0 %v1778
    %2742 = vmatprep.subr.bf16.mxu0 %v1783
    %2743 = vmatpush1.bf16.msra.mxu0 %v1782
    %2744 = vmatprep.subr.bf16.mxu0 %v1787
    %2745 = vmatpush1.bf16.msra.mxu0 %v1786
    %2746 = vmatprep.subr.bf16.mxu0 %v1791
    %2747 = vmatpush1.bf16.msra.mxu0 %v1790
    %2748 = vmatprep.subr.bf16.mxu0 %v1795
    %2749 = vmatpush1.bf16.msra.mxu0 %v1794
    %2750 = vmatprep.mubr.bf16.mxu0 %v2717
    %2751 = vmatmul.mubr.bf16.gmra.mrb[0].mxu0 %v2612
    %v2752 = vpop.f32.mrb[0].mxu0
    %v2753 = vadd.f32 0.0, %v2752
    %v2754 = vpop.f32.mrb[0].mxu0
    %v2755 = vadd.f32 0.0, %v2754
    %v2756 = vpop.f32.mrb[0].mxu0
    %v2757 = vpop.f32.mrb[0].mxu0
    %2758 = vdwg.mxu0
    %2759 = vmatprep.subr.bf16.mxu0 %v1737
    %2760 = vmatpush1.bf16.msra.mxu0 %v1736
    %2761 = vmatprep.subr.bf16.mxu0 %v1741
    %2762 = vmatpush1.bf16.msra.mxu0 %v1740
    %2763 = vmatprep.subr.bf16.mxu0 %v1745
    %2764 = vmatpush1.bf16.msra.mxu0 %v1744
    %2765 = vmatprep.subr.bf16.mxu0 %v1749
    %2766 = vmatpush1.bf16.msra.mxu0 %v1748
    %2767 = vmatprep.subr.bf16.mxu0 %v1753
    %2768 = vmatpush1.bf16.msra.mxu0 %v1752
    %2769 = vmatprep.subr.bf16.mxu0 %v1757
    %2770 = vmatpush1.bf16.msra.mxu0 %v1756
    %2771 = vmatprep.subr.bf16.mxu0 %v1761
    %2772 = vmatpush1.bf16.msra.mxu0 %v1760
    %2773 = vmatprep.subr.bf16.mxu0 %v1765
    %2774 = vmatpush1.bf16.msra.mxu0 %v1764
    %2775 = vmatprep.subr.bf16.mxu0 %v1769
    %2776 = vmatpush1.bf16.msra.mxu0 %v1768
    %2777 = vmatprep.subr.bf16.mxu0 %v1773
    %2778 = vmatpush1.bf16.msra.mxu0 %v1772
    %2779 = vmatprep.subr.bf16.mxu0 %v1777
    %2780 = vmatpush1.bf16.msra.mxu0 %v1776
    %2781 = vmatprep.subr.bf16.mxu0 %v1781
    %2782 = vmatpush1.bf16.msra.mxu0 %v1780
    %2783 = vmatprep.subr.bf16.mxu0 %v1785
    %2784 = vmatpush1.bf16.msra.mxu0 %v1784
    %2785 = vmatprep.subr.bf16.mxu0 %v1789
    %2786 = vmatpush1.bf16.msra.mxu0 %v1788
    %2787 = vmatprep.subr.bf16.mxu0 %v1793
    %2788 = vmatpush1.bf16.msra.mxu0 %v1792
    %2789 = vmatprep.subr.bf16.mxu0 %v1797
    %2790 = vmatpush1.bf16.msra.mxu0 %v1796
    %2791 = vmatprep.mubr.bf16.mxu0 %v2717
    %2792 = vmatmul.mubr.bf16.gmra.mrb[0].mxu0 %v2612
    %v2793 = vpop.f32.mrb[0].mxu0
    %v2794 = vadd.f32 0.0, %v2793
    %v2795 = vpop.f32.mrb[0].mxu0
    %v2796 = vadd.f32 0.0, %v2795
    %v2797 = vpop.f32.mrb[0].mxu0
    %v2798 = vpop.f32.mrb[0].mxu0
    %2799 = vdwg.mxu0
    %v2800 = vadd.f32 %v1051, %v2753
    %v2801 = vadd.f32 %v1055, %v2755
    %v2802 = vadd.f32 %v1059, %v2794
    %v2803 = vadd.f32 %v1063, %v2796
    %v2804 = vmul.f32 %v2800, 0.5
    %v2805 = vmul.f32 %v2801, 0.5
    %v2806 = vmul.f32 %v2802, 0.5
    %v2807 = vtanh.pop %v2804
    %v2808 = vtanh.pop %v2805
    %v2809 = vtanh.pop %v2806
    %v2810 = vmul.f32 %v2807, 0.5
    %v2811 = vmul.f32 %v2808, 0.5
    %v2812 = vmul.f32 %v2809, 0.5
    %v2813 = vadd.f32 %v2810, 0.5
    %v2814 = vadd.f32 %v2811, 0.5
    %v2815 = vadd.f32 %v2812, 0.5
    %v2816 = vtanh.pop %v2803
    %v2817 = vmul.f32 %v2814, %v2605
    %v2818 = vmul.f32 %v2813, %v2816
    %v2819 = vadd.f32 %v2817, %v2818
    %v2820 = vtanh.pop %v2819
    %v2821 = vmul.f32 %v2815, %v2820
    %v2822 = vld [vmem:[%s924] sm:$0xff]
    %v2823 = vld [vmem:[%s924 + $0x8] sm:$0xff]
    %v2824 = vld [vmem:[%s924 + $0x10] sm:$0xff]
    %v2825 = vld [vmem:[%s924 + $0x18] sm:$0xff]
    %v2826 = vpack.c.bf16 %v2716, %v2716
    %2827 = vmatprep.subr.bf16.mxu0 %v1201
    %2828 = vmatpush1.bf16.msra.mxu0 %v1200
    %2829 = vmatprep.subr.bf16.mxu0 %v1205
    %2830 = vmatpush1.bf16.msra.mxu0 %v1204
    %2831 = vmatprep.subr.bf16.mxu0 %v1209
    %2832 = vmatpush1.bf16.msra.mxu0 %v1208
    %2833 = vmatprep.subr.bf16.mxu0 %v1213
    %2834 = vmatpush1.bf16.msra.mxu0 %v1212
    %2835 = vmatprep.subr.bf16.mxu0 %v1217
    %2836 = vmatpush1.bf16.msra.mxu0 %v1216
    %2837 = vmatprep.subr.bf16.mxu0 %v1221
    %2838 = vmatpush1.bf16.msra.mxu0 %v1220
    %2839 = vmatprep.subr.bf16.mxu0 %v1225
    %2840 = vmatpush1.bf16.msra.mxu0 %v1224
    %2841 = vmatprep.subr.bf16.mxu0 %v1229
    %2842 = vmatpush1.bf16.msra.mxu0 %v1228
    %2843 = vmatprep.subr.bf16.mxu0 0
    %2844 = vmatpush1.bf16.msra.mxu0 0
    %2845 = vmatprep.subr.bf16.mxu0 0
    %2846 = vmatpush1.bf16.msra.mxu0 0
    %2847 = vmatprep.subr.bf16.mxu0 0
    %2848 = vmatpush1.bf16.msra.mxu0 0
    %2849 = vmatprep.subr.bf16.mxu0 0
    %2850 = vmatpush1.bf16.msra.mxu0 0
    %2851 = vmatprep.subr.bf16.mxu0 0
    %2852 = vmatpush1.bf16.msra.mxu0 0
    %2853 = vmatprep.subr.bf16.mxu0 0
    %2854 = vmatpush1.bf16.msra.mxu0 0
    %2855 = vmatprep.subr.bf16.mxu0 0
    %2856 = vmatpush1.bf16.msra.mxu0 0
    %2857 = vmatprep.subr.bf16.mxu0 0
    %2858 = vmatpush1.bf16.msra.mxu0 0
    %2859 = vmatprep.mubr.bf16.mxu0 0
    %2860 = vmatmul.mubr.bf16.gmra.mrb[0].mxu0 %v2826
    %v2861 = vpop.f32.mrb[0].mxu0
    %v2862 = vadd.f32 0.0, %v2861
    %v2863 = vpop.f32.mrb[0].mxu0
    %v2864 = vadd.f32 0.0, %v2863
    %v2865 = vpop.f32.mrb[0].mxu0
    %v2866 = vpop.f32.mrb[0].mxu0
    %2867 = vdwg.mxu0
    %2868 = vmatprep.subr.bf16.mxu0 %v1203
    %2869 = vmatpush1.bf16.msra.mxu0 %v1202
    %2870 = vmatprep.subr.bf16.mxu0 %v1207
    %2871 = vmatpush1.bf16.msra.mxu0 %v1206
    %2872 = vmatprep.subr.bf16.mxu0 %v1211
    %2873 = vmatpush1.bf16.msra.mxu0 %v1210
    %2874 = vmatprep.subr.bf16.mxu0 %v1215
    %2875 = vmatpush1.bf16.msra.mxu0 %v1214
    %2876 = vmatprep.subr.bf16.mxu0 %v1219
    %2877 = vmatpush1.bf16.msra.mxu0 %v1218
    %2878 = vmatprep.subr.bf16.mxu0 %v1223
    %2879 = vmatpush1.bf16.msra.mxu0 %v1222
    %2880 = vmatprep.subr.bf16.mxu0 %v1227
    %2881 = vmatpush1.bf16.msra.mxu0 %v1226
    %2882 = vmatprep.subr.bf16.mxu0 %v1231
    %2883 = vmatpush1.bf16.msra.mxu0 %v1230
    %2884 = vmatprep.subr.bf16.mxu0 0
    %2885 = vmatpush1.bf16.msra.mxu0 0
    %2886 = vmatprep.subr.bf16.mxu0 0
    %2887 = vmatpush1.bf16.msra.mxu0 0
    %2888 = vmatprep.subr.bf16.mxu0 0
    %2889 = vmatpush1.bf16.msra.mxu0 0
    %2890 = vmatprep.subr.bf16.mxu0 0
    %2891 = vmatpush1.bf16.msra.mxu0 0
    %2892 = vmatprep.subr.bf16.mxu0 0
    %2893 = vmatpush1.bf16.msra.mxu0 0
    %2894 = vmatprep.subr.bf16.mxu0 0
    %2895 = vmatpush1.bf16.msra.mxu0 0
    %2896 = vmatprep.subr.bf16.mxu0 0
    %2897 = vmatpush1.bf16.msra.mxu0 0
    %2898 = vmatprep.subr.bf16.mxu0 0
    %2899 = vmatpush1.bf16.msra.mxu0 0
    %2900 = vmatprep.mubr.bf16.mxu0 0
    %2901 = vmatmul.mubr.bf16.gmra.mrb[0].mxu0 %v2826
    %v2902 = vpop.f32.mrb[0].mxu0
    %v2903 = vadd.f32 0.0, %v2902
    %v2904 = vpop.f32.mrb[0].mxu0
    %v2905 = vadd.f32 0.0, %v2904
    %v2906 = vpop.f32.mrb[0].mxu0
    %v2907 = vpop.f32.mrb[0].mxu0
    %2908 = vdwg.mxu0
    %v2909 = vadd.f32 %v2822, %v2862
    %v2910 = vadd.f32 %v2823, %v2864
    %v2911 = vadd.f32 %v2824, %v2903
    %v2912 = vadd.f32 %v2825, %v2905
    %v2913 = vmul.f32 %v2909, 0.5
    %v2914 = vmul.f32 %v2910, 0.5
    %v2915 = vmul.f32 %v2911, 0.5
    %v2916 = vtanh.pop %v2913
    %v2917 = vtanh.pop %v2914
    %v2918 = vtanh.pop %v2915
    %v2919 = vmul.f32 %v2916, 0.5
    %v2920 = vmul.f32 %v2917, 0.5
    %v2921 = vmul.f32 %v2918, 0.5
    %v2922 = vadd.f32 %v2919, 0.5
    %v2923 = vadd.f32 %v2920, 0.5
    %v2924 = vadd.f32 %v2921, 0.5
    %v2925 = vtanh.pop %v2912
    %v2926 = vmul.f32 %v2923, %v2714
    %v2927 = vmul.f32 %v2922, %v2925
    %v2928 = vadd.f32 %v2926, %v2927
    %v2929 = vtanh.pop %v2928
    %v2930 = vmul.f32 %v2924, %v2929
    %v2931 = vpack.c.bf16 %v2821, %v2821
    %2932 = vmatprep.subr.bf16.mxu0 %v1735
    %2933 = vmatpush1.bf16.msra.mxu0 %v1734
    %2934 = vmatprep.subr.bf16.mxu0 %v1739
    %2935 = vmatpush1.bf16.msra.mxu0 %v1738
    %2936 = vmatprep.subr.bf16.mxu0 %v1743
    %2937 = vmatpush1.bf16.msra.mxu0 %v1742
    %2938 = vmatprep.subr.bf16.mxu0 %v1747
    %2939 = vmatpush1.bf16.msra.mxu0 %v1746
    %2940 = vmatprep.subr.bf16.mxu0 %v1751
    %2941 = vmatpush1.bf16.msra.mxu0 %v1750
    %2942 = vmatprep.subr.bf16.mxu0 %v1755
    %2943 = vmatpush1.bf16.msra.mxu0 %v1754
    %2944 = vmatprep.subr.bf16.mxu0 %v1759
    %2945 = vmatpush1.bf16.msra.mxu0 %v1758
    %2946 = vmatprep.subr.bf16.mxu0 %v1763
    %2947 = vmatpush1.bf16.msra.mxu0 %v1762
    %2948 = vmatprep.subr.bf16.mxu0 %v1767
    %2949 = vmatpush1.bf16.msra.mxu0 %v1766
    %2950 = vmatprep.subr.bf16.mxu0 %v1771
    %2951 = vmatpush1.bf16.msra.mxu0 %v1770
    %2952 = vmatprep.subr.bf16.mxu0 %v1775
    %2953 = vmatpush1.bf16.msra.mxu0 %v1774
    %2954 = vmatprep.subr.bf16.mxu0 %v1779
    %2955 = vmatpush1.bf16.msra.mxu0 %v1778
    %2956 = vmatprep.subr.bf16.mxu0 %v1783
    %2957 = vmatpush1.bf16.msra.mxu0 %v1782
    %2958 = vmatprep.subr.bf16.mxu0 %v1787
    %2959 = vmatpush1.bf16.msra.mxu0 %v1786
    %2960 = vmatprep.subr.bf16.mxu0 %v1791
    %2961 = vmatpush1.bf16.msra.mxu0 %v1790
    %2962 = vmatprep.subr.bf16.mxu0 %v1795
    %2963 = vmatpush1.bf16.msra.mxu0 %v1794
    %2964 = vmatprep.mubr.bf16.mxu0 %v2931
    %2965 = vmatmul.mubr.bf16.gmra.mrb[0].mxu0 %v2826
    %v2966 = vpop.f32.mrb[0].mxu0
    %v2967 = vadd.f32 0.0, %v2966
    %v2968 = vpop.f32.mrb[0].mxu0
    %v2969 = vadd.f32 0.0, %v2968
    %v2970 = vpop.f32.mrb[0].mxu0
    %v2971 = vpop.f32.mrb[0].mxu0
    %2972 = vdwg.mxu0
    %2973 = vmatprep.subr.bf16.mxu0 %v1737
    %2974 = vmatpush1.bf16.msra.mxu0 %v1736
    %2975 = vmatprep.subr.bf16.mxu0 %v1741
    %2976 = vmatpush1.bf16.msra.mxu0 %v1740
    %2977 = vmatprep.subr.bf16.mxu0 %v1745
    %2978 = vmatpush1.bf16.msra.mxu0 %v1744
    %2979 = vmatprep.subr.bf16.mxu0 %v1749
    %2980 = vmatpush1.bf16.msra.mxu0 %v1748
    %2981 = vmatprep.subr.bf16.mxu0 %v1753
    %2982 = vmatpush1.bf16.msra.mxu0 %v1752
    %2983 = vmatprep.subr.bf16.mxu0 %v1757
    %2984 = vmatpush1.bf16.msra.mxu0 %v1756
    %2985 = vmatprep.subr.bf16.mxu0 %v1761
    %2986 = vmatpush1.bf16.msra.mxu0 %v1760
    %2987 = vmatprep.subr.bf16.mxu0 %v1765
    %2988 = vmatpush1.bf16.msra.mxu0 %v1764
    %2989 = vmatprep.subr.bf16.mxu0 %v1769
    %2990 = vmatpush1.bf16.msra.mxu0 %v1768
    %2991 = vmatprep.subr.bf16.mxu0 %v1773
    %2992 = vmatpush1.bf16.msra.mxu0 %v1772
    %2993 = vmatprep.subr.bf16.mxu0 %v1777
    %2994 = vmatpush1.bf16.msra.mxu0 %v1776
    %2995 = vmatprep.subr.bf16.mxu0 %v1781
    %2996 = vmatpush1.bf16.msra.mxu0 %v1780
    %2997 = vmatprep.subr.bf16.mxu0 %v1785
    %2998 = vmatpush1.bf16.msra.mxu0 %v1784
    %2999 = vmatprep.subr.bf16.mxu0 %v1789
    %3000 = vmatpush1.bf16.msra.mxu0 %v1788
    %3001 = vmatprep.subr.bf16.mxu0 %v1793
    %3002 = vmatpush1.bf16.msra.mxu0 %v1792
    %3003 = vmatprep.subr.bf16.mxu0 %v1797
    %3004 = vmatpush1.bf16.msra.mxu0 %v1796
    %3005 = vmatprep.mubr.bf16.mxu0 %v2931
    %3006 = vmatmul.mubr.bf16.gmra.mrb[0].mxu0 %v2826
    %v3007 = vpop.f32.mrb[0].mxu0
    %v3008 = vadd.f32 0.0, %v3007
    %v3009 = vpop.f32.mrb[0].mxu0
    %v3010 = vadd.f32 0.0, %v3009
    %v3011 = vpop.f32.mrb[0].mxu0
    %v3012 = vpop.f32.mrb[0].mxu0
    %3013 = vdwg.mxu0
    %v3014 = vadd.f32 %v1051, %v2967
    %v3015 = vadd.f32 %v1055, %v2969
    %v3016 = vadd.f32 %v1059, %v3008
    %v3017 = vadd.f32 %v1063, %v3010
    %v3018 = vmul.f32 %v3014, 0.5
    %v3019 = vmul.f32 %v3015, 0.5
    %v3020 = vmul.f32 %v3016, 0.5
    %v3021 = vtanh.pop %v3018
    %v3022 = vtanh.pop %v3019
    %v3023 = vtanh.pop %v3020
    %v3024 = vmul.f32 %v3021, 0.5
    %v3025 = vmul.f32 %v3022, 0.5
    %v3026 = vmul.f32 %v3023, 0.5
    %v3027 = vadd.f32 %v3024, 0.5
    %v3028 = vadd.f32 %v3025, 0.5
    %v3029 = vadd.f32 %v3026, 0.5
    %v3030 = vtanh.pop %v3017
    %v3031 = vmul.f32 %v3028, %v2819
    %v3032 = vmul.f32 %v3027, %v3030
    %v3033 = vadd.f32 %v3031, %v3032
    %v3034 = vtanh.pop %v3033
    %v3035 = vmul.f32 %v3029, %v3034
    %v3036 = vld [vmem:[%s1040] sm:$0xff]
    %v3037 = vld [vmem:[%s1040 + $0x8] sm:$0xff]
    %v3038 = vld [vmem:[%s1040 + $0x10] sm:$0xff]
    %v3039 = vld [vmem:[%s1040 + $0x18] sm:$0xff]
    %v3040 = vpack.c.bf16 %v2930, %v2930
    %3041 = vmatprep.subr.bf16.mxu0 %v1201
    %3042 = vmatpush1.bf16.msra.mxu0 %v1200
    %3043 = vmatprep.subr.bf16.mxu0 %v1205
    %3044 = vmatpush1.bf16.msra.mxu0 %v1204
    %3045 = vmatprep.subr.bf16.mxu0 %v1209
    %3046 = vmatpush1.bf16.msra.mxu0 %v1208
    %3047 = vmatprep.subr.bf16.mxu0 %v1213
    %3048 = vmatpush1.bf16.msra.mxu0 %v1212
    %3049 = vmatprep.subr.bf16.mxu0 %v1217
    %3050 = vmatpush1.bf16.msra.mxu0 %v1216
    %3051 = vmatprep.subr.bf16.mxu0 %v1221
    %3052 = vmatpush1.bf16.msra.mxu0 %v1220
    %3053 = vmatprep.subr.bf16.mxu0 %v1225
    %3054 = vmatpush1.bf16.msra.mxu0 %v1224
    %3055 = vmatprep.subr.bf16.mxu0 %v1229
    %3056 = vmatpush1.bf16.msra.mxu0 %v1228
    %3057 = vmatprep.subr.bf16.mxu0 0
    %3058 = vmatpush1.bf16.msra.mxu0 0
    %3059 = vmatprep.subr.bf16.mxu0 0
    %3060 = vmatpush1.bf16.msra.mxu0 0
    %3061 = vmatprep.subr.bf16.mxu0 0
    %3062 = vmatpush1.bf16.msra.mxu0 0
    %3063 = vmatprep.subr.bf16.mxu0 0
    %3064 = vmatpush1.bf16.msra.mxu0 0
    %3065 = vmatprep.subr.bf16.mxu0 0
    %3066 = vmatpush1.bf16.msra.mxu0 0
    %3067 = vmatprep.subr.bf16.mxu0 0
    %3068 = vmatpush1.bf16.msra.mxu0 0
    %3069 = vmatprep.subr.bf16.mxu0 0
    %3070 = vmatpush1.bf16.msra.mxu0 0
    %3071 = vmatprep.subr.bf16.mxu0 0
    %3072 = vmatpush1.bf16.msra.mxu0 0
    %3073 = vmatprep.mubr.bf16.mxu0 0
    %3074 = vmatmul.mubr.bf16.gmra.mrb[0].mxu0 %v3040
    %v3075 = vpop.f32.mrb[0].mxu0
    %v3076 = vadd.f32 0.0, %v3075
    %v3077 = vpop.f32.mrb[0].mxu0
    %v3078 = vadd.f32 0.0, %v3077
    %v3079 = vpop.f32.mrb[0].mxu0
    %v3080 = vpop.f32.mrb[0].mxu0
    %3081 = vdwg.mxu0
    %3082 = vmatprep.subr.bf16.mxu0 %v1203
    %3083 = vmatpush1.bf16.msra.mxu0 %v1202
    %3084 = vmatprep.subr.bf16.mxu0 %v1207
    %3085 = vmatpush1.bf16.msra.mxu0 %v1206
    %3086 = vmatprep.subr.bf16.mxu0 %v1211
    %3087 = vmatpush1.bf16.msra.mxu0 %v1210
    %3088 = vmatprep.subr.bf16.mxu0 %v1215
    %3089 = vmatpush1.bf16.msra.mxu0 %v1214
    %3090 = vmatprep.subr.bf16.mxu0 %v1219
    %3091 = vmatpush1.bf16.msra.mxu0 %v1218
    %3092 = vmatprep.subr.bf16.mxu0 %v1223
    %3093 = vmatpush1.bf16.msra.mxu0 %v1222
    %3094 = vmatprep.subr.bf16.mxu0 %v1227
    %3095 = vmatpush1.bf16.msra.mxu0 %v1226
    %3096 = vmatprep.subr.bf16.mxu0 %v1231
    %3097 = vmatpush1.bf16.msra.mxu0 %v1230
    %3098 = vmatprep.subr.bf16.mxu0 0
    %3099 = vmatpush1.bf16.msra.mxu0 0
    %3100 = vmatprep.subr.bf16.mxu0 0
    %3101 = vmatpush1.bf16.msra.mxu0 0
    %3102 = vmatprep.subr.bf16.mxu0 0
    %3103 = vmatpush1.bf16.msra.mxu0 0
    %3104 = vmatprep.subr.bf16.mxu0 0
    %3105 = vmatpush1.bf16.msra.mxu0 0
    %3106 = vmatprep.subr.bf16.mxu0 0
    %3107 = vmatpush1.bf16.msra.mxu0 0
    %3108 = vmatprep.subr.bf16.mxu0 0
    %3109 = vmatpush1.bf16.msra.mxu0 0
    %3110 = vmatprep.subr.bf16.mxu0 0
    %3111 = vmatpush1.bf16.msra.mxu0 0
    %3112 = vmatprep.subr.bf16.mxu0 0
    %3113 = vmatpush1.bf16.msra.mxu0 0
    %3114 = vmatprep.mubr.bf16.mxu0 0
    %3115 = vmatmul.mubr.bf16.gmra.mrb[0].mxu0 %v3040
    %v3116 = vpop.f32.mrb[0].mxu0
    %v3117 = vadd.f32 0.0, %v3116
    %v3118 = vpop.f32.mrb[0].mxu0
    %v3119 = vadd.f32 0.0, %v3118
    %v3120 = vpop.f32.mrb[0].mxu0
    %v3121 = vpop.f32.mrb[0].mxu0
    %3122 = vdwg.mxu0
    %v3123 = vadd.f32 %v3036, %v3076
    %v3124 = vadd.f32 %v3037, %v3078
    %v3125 = vadd.f32 %v3038, %v3117
    %v3126 = vadd.f32 %v3039, %v3119
    %v3127 = vmul.f32 %v3123, 0.5
    %v3128 = vmul.f32 %v3124, 0.5
    %v3129 = vmul.f32 %v3125, 0.5
    %v3130 = vtanh.pop %v3127
    %v3131 = vtanh.pop %v3128
    %v3132 = vtanh.pop %v3129
    %v3133 = vmul.f32 %v3130, 0.5
    %v3134 = vmul.f32 %v3131, 0.5
    %v3135 = vmul.f32 %v3132, 0.5
    %v3136 = vadd.f32 %v3133, 0.5
    %v3137 = vadd.f32 %v3134, 0.5
    %v3138 = vadd.f32 %v3135, 0.5
    %v3139 = vtanh.pop %v3126
    %v3140 = vmul.f32 %v3137, %v2928
    %v3141 = vmul.f32 %v3136, %v3139
    %v3142 = vadd.f32 %v3140, %v3141
    %v3143 = vtanh.pop %v3142
    %v3144 = vmul.f32 %v3138, %v3143
    %v3145 = vpack.c.bf16 %v3035, %v3035
    %3146 = vmatprep.subr.bf16.mxu0 %v1735
    %3147 = vmatpush1.bf16.msra.mxu0 %v1734
    %3148 = vmatprep.subr.bf16.mxu0 %v1739
    %3149 = vmatpush1.bf16.msra.mxu0 %v1738
    %3150 = vmatprep.subr.bf16.mxu0 %v1743
    %3151 = vmatpush1.bf16.msra.mxu0 %v1742
    %3152 = vmatprep.subr.bf16.mxu0 %v1747
    %3153 = vmatpush1.bf16.msra.mxu0 %v1746
    %3154 = vmatprep.subr.bf16.mxu0 %v1751
    %3155 = vmatpush1.bf16.msra.mxu0 %v1750
    %3156 = vmatprep.subr.bf16.mxu0 %v1755
    %3157 = vmatpush1.bf16.msra.mxu0 %v1754
    %3158 = vmatprep.subr.bf16.mxu0 %v1759
    %3159 = vmatpush1.bf16.msra.mxu0 %v1758
    %3160 = vmatprep.subr.bf16.mxu0 %v1763
    %3161 = vmatpush1.bf16.msra.mxu0 %v1762
    %3162 = vmatprep.subr.bf16.mxu0 %v1767
    %3163 = vmatpush1.bf16.msra.mxu0 %v1766
    %3164 = vmatprep.subr.bf16.mxu0 %v1771
    %3165 = vmatpush1.bf16.msra.mxu0 %v1770
    %3166 = vmatprep.subr.bf16.mxu0 %v1775
    %3167 = vmatpush1.bf16.msra.mxu0 %v1774
    %3168 = vmatprep.subr.bf16.mxu0 %v1779
    %3169 = vmatpush1.bf16.msra.mxu0 %v1778
    %3170 = vmatprep.subr.bf16.mxu0 %v1783
    %3171 = vmatpush1.bf16.msra.mxu0 %v1782
    %3172 = vmatprep.subr.bf16.mxu0 %v1787
    %3173 = vmatpush1.bf16.msra.mxu0 %v1786
    %3174 = vmatprep.subr.bf16.mxu0 %v1791
    %3175 = vmatpush1.bf16.msra.mxu0 %v1790
    %3176 = vmatprep.subr.bf16.mxu0 %v1795
    %3177 = vmatpush1.bf16.msra.mxu0 %v1794
    %3178 = vmatprep.mubr.bf16.mxu0 %v3145
    %3179 = vmatmul.mubr.bf16.gmra.mrb[0].mxu0 %v3040
    %v3180 = vpop.f32.mrb[0].mxu0
    %v3181 = vadd.f32 0.0, %v3180
    %v3182 = vpop.f32.mrb[0].mxu0
    %v3183 = vadd.f32 0.0, %v3182
    %v3184 = vpop.f32.mrb[0].mxu0
    %v3185 = vpop.f32.mrb[0].mxu0
    %3186 = vdwg.mxu0
    %3187 = vmatprep.subr.bf16.mxu0 %v1737
    %3188 = vmatpush1.bf16.msra.mxu0 %v1736
    %3189 = vmatprep.subr.bf16.mxu0 %v1741
    %3190 = vmatpush1.bf16.msra.mxu0 %v1740
    %3191 = vmatprep.subr.bf16.mxu0 %v1745
    %3192 = vmatpush1.bf16.msra.mxu0 %v1744
    %3193 = vmatprep.subr.bf16.mxu0 %v1749
    %3194 = vmatpush1.bf16.msra.mxu0 %v1748
    %3195 = vmatprep.subr.bf16.mxu0 %v1753
    %3196 = vmatpush1.bf16.msra.mxu0 %v1752
    %3197 = vmatprep.subr.bf16.mxu0 %v1757
    %3198 = vmatpush1.bf16.msra.mxu0 %v1756
    %3199 = vmatprep.subr.bf16.mxu0 %v1761
    %3200 = vmatpush1.bf16.msra.mxu0 %v1760
    %3201 = vmatprep.subr.bf16.mxu0 %v1765
    %3202 = vmatpush1.bf16.msra.mxu0 %v1764
    %3203 = vmatprep.subr.bf16.mxu0 %v1769
    %3204 = vmatpush1.bf16.msra.mxu0 %v1768
    %3205 = vmatprep.subr.bf16.mxu0 %v1773
    %3206 = vmatpush1.bf16.msra.mxu0 %v1772
    %3207 = vmatprep.subr.bf16.mxu0 %v1777
    %3208 = vmatpush1.bf16.msra.mxu0 %v1776
    %3209 = vmatprep.subr.bf16.mxu0 %v1781
    %3210 = vmatpush1.bf16.msra.mxu0 %v1780
    %3211 = vmatprep.subr.bf16.mxu0 %v1785
    %3212 = vmatpush1.bf16.msra.mxu0 %v1784
    %3213 = vmatprep.subr.bf16.mxu0 %v1789
    %3214 = vmatpush1.bf16.msra.mxu0 %v1788
    %3215 = vmatprep.subr.bf16.mxu0 %v1793
    %3216 = vmatpush1.bf16.msra.mxu0 %v1792
    %3217 = vmatprep.subr.bf16.mxu0 %v1797
    %3218 = vmatpush1.bf16.msra.mxu0 %v1796
    %3219 = vmatprep.mubr.bf16.mxu0 %v3145
    %3220 = vmatmul.mubr.bf16.gmra.mrb[0].mxu0 %v3040
    %v3221 = vpop.f32.mrb[0].mxu0
    %v3222 = vadd.f32 0.0, %v3221
    %v3223 = vpop.f32.mrb[0].mxu0
    %v3224 = vadd.f32 0.0, %v3223
    %v3225 = vpop.f32.mrb[0].mxu0
    %v3226 = vpop.f32.mrb[0].mxu0
    %3227 = vdwg.mxu0
    %v3228 = vadd.f32 %v1051, %v3181
    %v3229 = vadd.f32 %v1055, %v3183
    %v3230 = vadd.f32 %v1059, %v3222
    %v3231 = vadd.f32 %v1063, %v3224
    %v3232 = vmul.f32 %v3228, 0.5
    %v3233 = vmul.f32 %v3229, 0.5
    %v3234 = vmul.f32 %v3230, 0.5
    %v3235 = vtanh.pop %v3232
    %v3236 = vtanh.pop %v3233
    %v3237 = vtanh.pop %v3234
    %v3238 = vmul.f32 %v3235, 0.5
    %v3239 = vmul.f32 %v3236, 0.5
    %v3240 = vmul.f32 %v3237, 0.5
    %v3241 = vadd.f32 %v3238, 0.5
    %v3242 = vadd.f32 %v3239, 0.5
    %v3243 = vadd.f32 %v3240, 0.5
    %v3244 = vtanh.pop %v3231
    %v3245 = vmul.f32 %v3242, %v3033
    %v3246 = vmul.f32 %v3241, %v3244
    %v3247 = vadd.f32 %v3245, %v3246
    %v3248 = vtanh.pop %v3247
    %v3249 = vmul.f32 %v3243, %v3248
    %v3250 = vpack.c.bf16 %v3144, %v3144
    %v3251 = vpack.c.bf16 %v3249, %v3249
    %3252 = vmatprep.subr.bf16.mxu0 %v1735
    %3253 = vmatpush1.bf16.msra.mxu0 %v1734
    %3254 = vmatprep.subr.bf16.mxu0 %v1739
    %3255 = vmatpush1.bf16.msra.mxu0 %v1738
    %3256 = vmatprep.subr.bf16.mxu0 %v1743
    %3257 = vmatpush1.bf16.msra.mxu0 %v1742
    %3258 = vmatprep.subr.bf16.mxu0 %v1747
    %3259 = vmatpush1.bf16.msra.mxu0 %v1746
    %3260 = vmatprep.subr.bf16.mxu0 %v1751
    %3261 = vmatpush1.bf16.msra.mxu0 %v1750
    %3262 = vmatprep.subr.bf16.mxu0 %v1755
    %3263 = vmatpush1.bf16.msra.mxu0 %v1754
    %3264 = vmatprep.subr.bf16.mxu0 %v1759
    %3265 = vmatpush1.bf16.msra.mxu0 %v1758
    %3266 = vmatprep.subr.bf16.mxu0 %v1763
    %3267 = vmatpush1.bf16.msra.mxu0 %v1762
    %3268 = vmatprep.subr.bf16.mxu0 %v1767
    %3269 = vmatpush1.bf16.msra.mxu0 %v1766
    %3270 = vmatprep.subr.bf16.mxu0 %v1771
    %3271 = vmatpush1.bf16.msra.mxu0 %v1770
    %3272 = vmatprep.subr.bf16.mxu0 %v1775
    %3273 = vmatpush1.bf16.msra.mxu0 %v1774
    %3274 = vmatprep.subr.bf16.mxu0 %v1779
    %3275 = vmatpush1.bf16.msra.mxu0 %v1778
    %3276 = vmatprep.subr.bf16.mxu0 %v1783
    %3277 = vmatpush1.bf16.msra.mxu0 %v1782
    %3278 = vmatprep.subr.bf16.mxu0 %v1787
    %3279 = vmatpush1.bf16.msra.mxu0 %v1786
    %3280 = vmatprep.subr.bf16.mxu0 %v1791
    %3281 = vmatpush1.bf16.msra.mxu0 %v1790
    %3282 = vmatprep.subr.bf16.mxu0 %v1795
    %3283 = vmatpush1.bf16.msra.mxu0 %v1794
    %3284 = vmatprep.mubr.bf16.mxu0 %v3251
    %3285 = vmatmul.mubr.bf16.gmra.mrb[0].mxu0 %v3250
    %v3286 = vpop.f32.mrb[0].mxu0
    %v3287 = vadd.f32 0.0, %v3286
    %v3288 = vpop.f32.mrb[0].mxu0
    %v3289 = vadd.f32 0.0, %v3288
    %v3290 = vpop.f32.mrb[0].mxu0
    %v3291 = vpop.f32.mrb[0].mxu0
    %3292 = vdwg.mxu0
    %3293 = vmatprep.subr.bf16.mxu0 %v1737
    %3294 = vmatpush1.bf16.msra.mxu0 %v1736
    %3295 = vmatprep.subr.bf16.mxu0 %v1741
    %3296 = vmatpush1.bf16.msra.mxu0 %v1740
    %3297 = vmatprep.subr.bf16.mxu0 %v1745
    %3298 = vmatpush1.bf16.msra.mxu0 %v1744
    %3299 = vmatprep.subr.bf16.mxu0 %v1749
    %3300 = vmatpush1.bf16.msra.mxu0 %v1748
    %3301 = vmatprep.subr.bf16.mxu0 %v1753
    %3302 = vmatpush1.bf16.msra.mxu0 %v1752
    %3303 = vmatprep.subr.bf16.mxu0 %v1757
    %3304 = vmatpush1.bf16.msra.mxu0 %v1756
    %3305 = vmatprep.subr.bf16.mxu0 %v1761
    %3306 = vmatpush1.bf16.msra.mxu0 %v1760
    %3307 = vmatprep.subr.bf16.mxu0 %v1765
    %3308 = vmatpush1.bf16.msra.mxu0 %v1764
    %3309 = vmatprep.subr.bf16.mxu0 %v1769
    %3310 = vmatpush1.bf16.msra.mxu0 %v1768
    %3311 = vmatprep.subr.bf16.mxu0 %v1773
    %3312 = vmatpush1.bf16.msra.mxu0 %v1772
    %3313 = vmatprep.subr.bf16.mxu0 %v1777
    %3314 = vmatpush1.bf16.msra.mxu0 %v1776
    %3315 = vmatprep.subr.bf16.mxu0 %v1781
    %3316 = vmatpush1.bf16.msra.mxu0 %v1780
    %3317 = vmatprep.subr.bf16.mxu0 %v1785
    %3318 = vmatpush1.bf16.msra.mxu0 %v1784
    %3319 = vmatprep.subr.bf16.mxu0 %v1789
    %3320 = vmatpush1.bf16.msra.mxu0 %v1788
    %3321 = vmatprep.subr.bf16.mxu0 %v1793
    %3322 = vmatpush1.bf16.msra.mxu0 %v1792
    %3323 = vmatprep.subr.bf16.mxu0 %v1797
    %3324 = vmatpush1.bf16.msra.mxu0 %v1796
    %3325 = vmatprep.mubr.bf16.mxu0 %v3251
    %3326 = vmatmul.mubr.bf16.gmra.mrb[0].mxu0 %v3250
    %v3327 = vpop.f32.mrb[0].mxu0
    %v3328 = vadd.f32 0.0, %v3327
    %v3329 = vpop.f32.mrb[0].mxu0
    %v3330 = vadd.f32 0.0, %v3329
    %v3331 = vpop.f32.mrb[0].mxu0
    %v3332 = vpop.f32.mrb[0].mxu0
    %3333 = vdwg.mxu0
    %v3334 = vadd.f32 %v1051, %v3287
    %v3335 = vadd.f32 %v1055, %v3289
    %v3336 = vadd.f32 %v1059, %v3328
    %v3337 = vadd.f32 %v1063, %v3330
    %v3338 = vmul.f32 %v3334, 0.5
    %v3339 = vmul.f32 %v3335, 0.5
    %v3340 = vmul.f32 %v3336, 0.5
    %v3341 = vtanh.pop %v3338
    %v3342 = vtanh.pop %v3339
    %v3343 = vtanh.pop %v3340
    %v3344 = vmul.f32 %v3341, 0.5
    %v3345 = vmul.f32 %v3342, 0.5
    %v3346 = vmul.f32 %v3343, 0.5
    %v3347 = vadd.f32 %v3344, 0.5
    %v3348 = vadd.f32 %v3345, 0.5
    %v3349 = vadd.f32 %v3346, 0.5
    %v3350 = vtanh.pop %v3337
    %v3351 = vmul.f32 %v3348, %v3247
    %v3352 = vmul.f32 %v3347, %v3350
    %v3353 = vadd.f32 %v3351, %v3352
    %v3354 = vtanh.pop %v3353
    %v3355 = vmul.f32 %v3349, %v3354
    %v3356 = vld [vmem:[#allocation11] sm:$0xff]
    %v3357 = vld [vmem:[#allocation11 + $0x8] sm:$0xff]
    %v3358 = vld [vmem:[#allocation11 + $0x10] sm:$0xff]
    %v3359 = vld [vmem:[#allocation11 + $0x18] sm:$0xff]
    %v3360 = vld [vmem:[#allocation11 + $0x20] sm:$0xff]
    %v3361 = vld [vmem:[#allocation11 + $0x28] sm:$0xff]
    %v3362 = vld [vmem:[#allocation11 + $0x30] sm:$0xff]
    %v3363 = vld [vmem:[#allocation11 + $0x38] sm:$0xff]
    %v3364 = vld [vmem:[#allocation11 + $0x40] sm:$0xff]
    %v3365 = vld [vmem:[#allocation11 + $0x48] sm:$0xff]
    %v3366 = vld [vmem:[#allocation11 + $0x50] sm:$0xff]
    %v3367 = vld [vmem:[#allocation11 + $0x58] sm:$0xff]
    %v3368 = vld [vmem:[#allocation11 + $0x60] sm:$0xff]
    %v3369 = vld [vmem:[#allocation11 + $0x68] sm:$0xff]
    %v3370 = vld [vmem:[#allocation11 + $0x70] sm:$0xff]
    %v3371 = vld [vmem:[#allocation11 + $0x78] sm:$0xff]
    %v3372 = vld [vmem:[%s6] sm:$0x1]
    %v3374 = vlaneseq
    %v3375 = vshrl.u32 %v3374, 7
    %v3376 = vsub.s32 0, %v3375
    %v3377 = vrot.slane %v3372, %v3376
    %3379 = vmatprep.subr.mxu0 0.0
    %3380 = vmatpush1.msra.mxu0 %v3356
    %3381 = vmatprep.subr.mxu0 0.0
    %3382 = vmatpush1.msra.mxu0 %v3357
    %3383 = vmatprep.subr.mxu0 0.0
    %3384 = vmatpush1.msra.mxu0 %v3358
    %3385 = vmatprep.subr.mxu0 0.0
    %3386 = vmatpush1.msra.mxu0 %v3359
    %3387 = vmatprep.subr.mxu0 0.0
    %3388 = vmatpush1.msra.mxu0 %v3360
    %3389 = vmatprep.subr.mxu0 0.0
    %3390 = vmatpush1.msra.mxu0 %v3361
    %3391 = vmatprep.subr.mxu0 0.0
    %3392 = vmatpush1.msra.mxu0 %v3362
    %3393 = vmatprep.subr.mxu0 0.0
    %3394 = vmatpush1.msra.mxu0 %v3363
    %3395 = vmatprep.subr.mxu0 0.0
    %3396 = vmatpush1.msra.mxu0 %v3364
    %3397 = vmatprep.subr.mxu0 0.0
    %3398 = vmatpush1.msra.mxu0 %v3365
    %3399 = vmatprep.subr.mxu0 0.0
    %3400 = vmatpush1.msra.mxu0 %v3366
    %3401 = vmatprep.subr.mxu0 0.0
    %3402 = vmatpush1.msra.mxu0 %v3367
    %3403 = vmatprep.subr.mxu0 0.0
    %3404 = vmatpush1.msra.mxu0 %v3368
    %3405 = vmatprep.subr.mxu0 0.0
    %3406 = vmatpush1.msra.mxu0 %v3369
    %3407 = vmatprep.subr.mxu0 0.0
    %3408 = vmatpush1.msra.mxu0 %v3370
    %3409 = vmatprep.subr.mxu0 0.0
    %3410 = vmatpush1.msra.mxu0 %v3371
    %3411 = vmatprep.subr.mxu0 0.0
    %3412 = vmatpush1.msra.mxu0 0.0
    %3413 = vmatprep.subr.mxu0 0.0
    %3414 = vmatpush1.msra.mxu0 0.0
    %3415 = vmatprep.subr.mxu0 0.0
    %3416 = vmatpush1.msra.mxu0 0.0
    %3417 = vmatprep.subr.mxu0 0.0
    %3418 = vmatpush1.msra.mxu0 0.0
    %3419 = vmatprep.subr.mxu0 0.0
    %3420 = vmatpush1.msra.mxu0 0.0
    %3421 = vmatprep.subr.mxu0 0.0
    %3422 = vmatpush1.msra.mxu0 0.0
    %3423 = vmatprep.subr.mxu0 0.0
    %3424 = vmatpush1.msra.mxu0 0.0
    %3425 = vmatprep.subr.mxu0 0.0
    %3426 = vmatpush1.msra.mxu0 0.0
    %3427 = vmatprep.subr.mxu0 0.0
    %3428 = vmatpush1.msra.mxu0 0.0
    %3429 = vmatprep.subr.mxu0 0.0
    %3430 = vmatpush1.msra.mxu0 0.0
    %3431 = vmatprep.subr.mxu0 0.0
    %3432 = vmatpush1.msra.mxu0 0.0
    %3433 = vmatprep.subr.mxu0 0.0
    %3434 = vmatpush1.msra.mxu0 0.0
    %3435 = vmatprep.subr.mxu0 0.0
    %3436 = vmatpush1.msra.mxu0 0.0
    %3437 = vmatprep.subr.mxu0 0.0
    %3438 = vmatpush1.msra.mxu0 0.0
    %3439 = vmatprep.subr.mxu0 0.0
    %3440 = vmatpush1.msra.mxu0 0.0
    %3441 = vmatprep.subr.mxu0 0.0
    %3442 = vmatpush1.msra.mxu0 0.0
    %3443 = vmatprep.mubr.f32.mxu0 0.0
    %3444 = vmatmul.mubr.f32.gmra.mrb[0].mxu0 %v3355
    %v3445 = vpop.f32.mrb[0].mxu0
    %v3446 = vadd.f32 %v3377, %v3445
    %v3447 = vpop.f32.mrb[0].mxu0
    %3448 = vdwg.mxu0
    %3449 = vst [vmem:[#allocation12] sm:$0xff] %v3446
    // Predicated region
    $region50: #{tpu_custom_call.1} parent=1 // pred_check
      _
    $region51: #{tpu_custom_call.1} parent=1 // pred_check_branch
      %3451 = sbr.rel (0) target = $region53
    $region52: #{tpu_custom_call.1} parent=1 // pred_region
      %s3453 = ssub.s32 128, 128
      %3454 = vsyncadd [#allocation5], %s3453
      %s3456 = sshll.u32 [#allocation12], 4
      %s3457 = int_to_ptr.vmem [resolvable:$true] %s3456
      %3459 = dma.vmem_to_hbm [thread:$0]  %s3457, 128, %s7, [#allocation5]
    $region53: #{tpu_custom_call.1} parent=1 // pred_fallthru
      _
    // Predicated region
    $region54: #{tpu_custom_call.1} parent=1 // pred_check
      _
    $region55: #{tpu_custom_call.1} parent=1 // pred_check_branch
      %3461 = sbr.rel (0) target = $region57
    $region56: #{tpu_custom_call.1} parent=1 // pred_region
      %3462 = dma.done [#allocation5], 128
    $region57: #{tpu_custom_call.1} parent=1 // pred_fallthru
      _
    %3463 = vsyncpa [#allocation4], 1
    %3464 = vsyncpa [#allocation7], 1
    %3465 = vsyncpa [#allocation10], 1
    %3466 = vsyncpa [#allocation5], 1

</llo_original>
